<compile_context>
chip_gen: v7x
topology: tpu7x:2x2x1
jax: 0.10.0
libtpu: 0.0.40
codegen_flags: <defaults>
</compile_context>

<pallas_src>
import functools

import jax
import jax.numpy as jnp
from jax import lax
from jax.experimental import pallas as pl
from jax.experimental.pallas import tpu as pltpu

EMB = 50           # embedding_length
HIDDEN = 100       # hidden_size
HPAD = 128         # lane-padded hidden size
FC1 = 512          # output_layer width
NUM_CLASSES = 12   # output_size
OUTP = 128         # lane-padded logits width


def bilstm_head_kernel(x_ref,        # (T*TB, E)      bf16, time-major batch tile
                       wih_ref,      # (E, 8*HPAD)    bf16 [fwd i f g o | bwd i f g o]
                       bias_ref,     # (1, 8*HPAD)    f32
                       whhf_ref,     # (HPAD, 4*HPAD) bf16
                       whhb_ref,     # (HPAD, 4*HPAD) bf16
                       w1_ref,       # (2*HPAD, FC1)  bf16
                       b1_ref,       # (1, FC1)       f32
                       w2_ref,       # (FC1, OUTP)    bf16
                       b2_ref,       # (1, OUTP)      f32
                       out_ref,      # (TB, OUTP)     f32
                       xg_ref,       # scratch (T*TB, 8*HPAD) f32  precomputed gates
                       hsumf_ref,    # scratch (TB, HPAD) f32      running sum of h_fwd
                       hsumb_ref,    # scratch (TB, HPAD) f32      running sum of h_bwd
                       *, T, TB):
    HP = HPAD
    G = 4 * HP                      # gate width per direction (512)

    # --- (1) Hoisted input projection: one bf16 MXU matmul for all timesteps
    #         and both directions, f32 accumulate, biases folded in.
    #         Rows t*TB:(t+1)*TB correspond to timestep t.
    xg_ref[...] = (jnp.dot(x_ref[...], wih_ref[...],
                           preferred_element_type=jnp.float32)
                   + bias_ref[...])

    # Scratch persists across grid iterations -> zero per tile.
    hsumf_ref[...] = jnp.zeros_like(hsumf_ref)
    hsumb_ref[...] = jnp.zeros_like(hsumb_ref)

    whh_f = whhf_ref[...]           # loop-invariant, hoisted
    whh_b = whhb_ref[...]

    def lstm_cell(gates, c):        # PyTorch gate order: i, f, g, o (f32 math)
        i = jax.nn.sigmoid(gates[:, 0 * HP:1 * HP])
        f = jax.nn.sigmoid(gates[:, 1 * HP:2 * HP])
        g = jnp.tanh(gates[:, 2 * HP:3 * HP])
        o = jax.nn.sigmoid(gates[:, 3 * HP:4 * HP])
        c_new = f * c + i * g
        return o * jnp.tanh(c_new), c_new

    # --- (2) Serial bidirectional recurrence: two per-direction bf16 dots per
    #         step; each direction reads only its 512-lane half of the gates.
    def step(t, carry):
        h_f, c_f, h_b, c_b = carry
        rf = pl.multiple_of(t * TB, TB)              # forward reads step t
        rb = pl.multiple_of((T - 1 - t) * TB, TB)    # backward reads step T-1-t

        hg_f = jnp.dot(h_f.astype(jnp.bfloat16), whh_f,
                       preferred_element_type=jnp.float32)          # (TB, 4HP)
        hg_b = jnp.dot(h_b.astype(jnp.bfloat16), whh_b,
                       preferred_element_type=jnp.float32)
        gx_f = xg_ref[pl.ds(rf, TB), pl.ds(0, G)]                   # fwd half only
        gx_b = xg_ref[pl.ds(rb, TB), pl.ds(G, G)]                   # bwd half only

        h_f, c_f = lstm_cell(hg_f + gx_f, c_f)
        h_b, c_b = lstm_cell(hg_b + gx_b, c_b)

        hsumf_ref[...] += h_f
        hsumb_ref[...] += h_b
        return h_f, c_f, h_b, c_b

    z = jnp.zeros((TB, HP), jnp.float32)
    lax.fori_loop(0, T, step, (z, z, z, z), unroll=min(T, 8))

    # --- (3) Mean pool + FC head (bf16 MXU, f32 bias/activation math). Padded
    #         hidden lanes are exactly zero and the matching W1 rows are zero,
    #         so padding never leaks into the logits.
    mean_cat = (jnp.concatenate([hsumf_ref[...], hsumb_ref[...]], axis=1)
                * (1.0 / T))                                         # (TB, 2HP)
    h1 = jnp.maximum(
        jnp.dot(mean_cat.astype(jnp.bfloat16), w1_ref[...],
                preferred_element_type=jnp.float32) + b1_ref[...], 0.0)
    out_ref[...] = (jnp.dot(h1.astype(jnp.bfloat16), w2_ref[...],
                            preferred_element_type=jnp.float32) + b2_ref[...])


def bilstm_classifier_forward(tokens, lens, emb_table, params, *, batch_tile=64):
    """tokens: (B, T) int32; lens unused (matches the PyTorch forward)."""
    del lens
    B, T = tokens.shape
    H, HP = HIDDEN, HPAD

    # ---- batch tiling: sublane-aligned tile TB, batch padded to a multiple.
    BP8 = ((B + 7) // 8) * 8
    TB = min(((batch_tile + 7) // 8) * 8, BP8)
    BP = ((BP8 + TB - 1) // TB) * TB
    n_tiles = BP // TB

    # Embedding gather + layout glue (plain JAX / XLA).
    x = emb_table[tokens].astype(jnp.float32)            # (B, T, E)
    x = jnp.transpose(x, (1, 0, 2))                      # (T, B, E) time-major
    if BP != B:
        x = jnp.pad(x, ((0, 0), (0, BP - B), (0, 0)))
    # (T, BP, E) -> (n_tiles, T*TB, E): per batch tile, time-major row blocks.
    x = (x.reshape(T, n_tiles, TB, EMB)
           .transpose(1, 0, 2, 3)
           .reshape(n_tiles, T * TB, EMB)
           .astype(jnp.bfloat16))

    # --- weight prep: pad every gate block 100 -> 128 with zeros -------------
    def pad_gate_cols(w):                                # (rows, 4H) -> (rows, 4HP)
        r = w.shape[0]
        return jnp.pad(w.reshape(r, 4, H),
                       ((0, 0), (0, 0), (0, HP - H))).reshape(r, 4 * HP)

    bf = jnp.bfloat16
    wih = jnp.concatenate([pad_gate_cols(params['w_ih_f'].T),
                           pad_gate_cols(params['w_ih_b'].T)], axis=1)   # (E, 8HP)
    bias = jnp.concatenate(
        [pad_gate_cols((params['b_ih_f'] + params['b_hh_f']).reshape(1, 4 * H)),
         pad_gate_cols((params['b_ih_b'] + params['b_hh_b']).reshape(1, 4 * H))],
        axis=1)                                                          # (1, 8HP) f32

    whh_f = jnp.pad(pad_gate_cols(params['w_hh_f'].T), ((0, HP - H), (0, 0)))
    whh_b = jnp.pad(pad_gate_cols(params['w_hh_b'].T), ((0, HP - H), (0, 0)))

    w1t = params['w1'].T                                                 # (2H, 512)
    w1 = jnp.concatenate([jnp.pad(w1t[:H], ((0, HP - H), (0, 0))),
                          jnp.pad(w1t[H:], ((0, HP - H), (0, 0)))], axis=0)
    b1 = params['b1'].reshape(1, FC1)

    w2 = jnp.pad(params['w2'].T, ((0, 0), (0, OUTP - NUM_CLASSES)))      # (512, 128)
    b2 = jnp.pad(params['b2'], (0, OUTP - NUM_CLASSES)).reshape(1, OUTP)

    args = (x, wih.astype(bf), bias, whh_f.astype(bf), whh_b.astype(bf),
            w1.astype(bf), b1, w2.astype(bf), b2)

    def full_spec(a):                                    # whole array, fetched once
        nd = a.ndim
        return pl.BlockSpec(a.shape, lambda b, _nd=nd: (0,) * _nd)

    in_specs = ([pl.BlockSpec((None, T * TB, EMB), lambda b: (b, 0, 0))]
                + [full_spec(a) for a in args[1:]])

    kernel = functools.partial(bilstm_head_kernel, T=T, TB=TB)
    out = pl.pallas_call(
        kernel,
        out_shape=jax.ShapeDtypeStruct((BP, OUTP), jnp.float32),
        grid=(n_tiles,),
        in_specs=in_specs,
        out_specs=pl.BlockSpec((TB, OUTP), lambda b: (b, 0)),
        scratch_shapes=[pltpu.VMEM((T * TB, 8 * HP), jnp.float32),
                        pltpu.VMEM((TB, HP), jnp.float32),
                        pltpu.VMEM((TB, HP), jnp.float32)],
        compiler_params=pltpu.CompilerParams(
            dimension_semantics=("parallel",),
            # 48 MiB: above v5e/v6e's 16/32 MiB scoped defaults, still under
            # v7x's 64 MiB physical VMEM.
            vmem_limit_bytes=48 * 1024 * 1024),
    )(*args)
    return out[:B, :NUM_CLASSES]


def reference_forward(tokens, emb_table, params):
    """Pure-JAX f32 reference mirroring the PyTorch semantics."""
    x = emb_table[tokens].astype(jnp.float32)            # (B, T, E)
    B, T, _ = x.shape
    H = HIDDEN

    def run(wih, whh, bih, bhh, reverse):
        xs = x[:, ::-1, :] if reverse else x

        def step(carry, xt):
            h, c = carry
            gates = xt @ wih.T + h @ whh.T + bih + bhh
            i = jax.nn.sigmoid(gates[:, :H])
            f = jax.nn.sigmoid(gates[:, H:2 * H])
            g = jnp.tanh(gates[:, 2 * H:3 * H])
            o = jax.nn.sigmoid(gates[:, 3 * H:])
            c = f * c + i * g
            h = o * jnp.tanh(c)
            return (h, c), h

        z = jnp.zeros((B, H), jnp.float32)
        _, hs = lax.scan(step, (z, z), jnp.transpose(xs, (1, 0, 2)))
        return hs.mean(axis=0)

    mf = run(params['w_ih_f'], params['w_hh_f'], params['b_ih_f'], params['b_hh_f'], False)
    mb = run(params['w_ih_b'], params['w_hh_b'], params['b_ih_b'], params['b_hh_b'], True)
    sent = jnp.concatenate([mf, mb], axis=1)
    h1 = jax.nn.relu(sent @ params['w1'].T + params['b1'])
    return h1 @ params['w2'].T + params['b2']


def init_params(key):
    H, E = HIDDEN, EMB
    ks = jax.random.split(key, 16)

    def u(k, shape, scale):
        return jax.random.uniform(k, shape, jnp.float32, -scale, scale)

    k_lstm = 1.0 / jnp.sqrt(H)
    k_fc1 = 1.0 / jnp.sqrt(2 * H)
    k_fc2 = 1.0 / jnp.sqrt(FC1)
    return {
        'w_ih_f': u(ks[0], (4 * H, E), k_lstm), 'w_hh_f': u(ks[1], (4 * H, H), k_lstm),
        'b_ih_f': u(ks[2], (4 * H,), k_lstm),   'b_hh_f': u(ks[3], (4 * H,), k_lstm),
        'w_ih_b': u(ks[4], (4 * H, E), k_lstm), 'w_hh_b': u(ks[5], (4 * H, H), k_lstm),
        'b_ih_b': u(ks[6], (4 * H,), k_lstm),   'b_hh_b': u(ks[7], (4 * H,), k_lstm),
        'w1': u(ks[8], (FC1, 2 * H), k_fc1),    'b1': u(ks[9], (FC1,), k_fc1),
        'w2': u(ks[10], (NUM_CLASSES, FC1), k_fc2), 'b2': u(ks[11], (NUM_CLASSES,), k_fc2),
    }


if __name__ == "__main__":
    key = jax.random.PRNGKey(0)
    k_emb, k_tok, k_len, k_par = jax.random.split(key, 4)

    B, T, VOCAB = 2, 8, 32
    # Embedding table (the pretrained-glove load in __init__ never touches the
    # nn.Embedding weights in the reference code; synthetic init is used).
    emb_table = 0.1 * jax.random.normal(k_emb, (VOCAB, EMB), jnp.float32)
    emb_table = emb_table.at[0].set(0.0)          # padding_idx=0

    tokens = jax.random.randint(k_tok, (B, T), 0, VOCAB, dtype=jnp.int32)
    lens = jax.random.randint(k_len, (B,), 1, T + 1, dtype=jnp.int32)  # unused, as in torch forward
    params = init_params(k_par)

    logits = bilstm_classifier_forward(tokens, lens, emb_table, params)
    logits = jax.block_until_ready(logits)

    ref = reference_forward(tokens, emb_table, params)
    assert logits.shape == (B, NUM_CLASSES)
    # bf16 MXU operands with f32 accumulation vs full-f32 reference.
    assert jnp.allclose(logits, ref, atol=2e-2, rtol=2e-2)
    print("KERNEL_OK")
</pallas_src>

<mosaic_0001>
module attributes {stable_mosaic.version = 11 : i64} {
  func.func @bilstm_head_kernel(%arg0: i32, %arg1: memref<1x64x50xbf16, #tpu.memory_space<vmem>>, %arg2: memref<50x1024xbf16, #tpu.memory_space<vmem>>, %arg3: memref<1x1024xf32, #tpu.memory_space<vmem>>, %arg4: memref<128x512xbf16, #tpu.memory_space<vmem>>, %arg5: memref<128x512xbf16, #tpu.memory_space<vmem>>, %arg6: memref<256x512xbf16, #tpu.memory_space<vmem>>, %arg7: memref<1x512xf32, #tpu.memory_space<vmem>>, %arg8: memref<512x128xbf16, #tpu.memory_space<vmem>>, %arg9: memref<1x128xf32, #tpu.memory_space<vmem>>, %arg10: memref<8x128xf32, #tpu.memory_space<vmem>>, %arg11: memref<64x1024xf32, #tpu.memory_space<vmem>>, %arg12: memref<8x128xf32, #tpu.memory_space<vmem>>, %arg13: memref<8x128xf32, #tpu.memory_space<vmem>>) attributes {dimension_semantics = [#tpu.dimension_semantics<parallel>], iteration_bounds = array<i64: 1>, scalar_prefetch = 0 : i64, scratch_operands = 3 : i64, tpu.core_type = #tpu.core_type<tc>, window_params = [{transform_indices = @transform_0, window_bounds = array<i64: 1, 64, 50>}, {pipeline_mode = #tpu.pipeline_mode<synchronous>, transform_indices = @transform_1, window_bounds = array<i64: 50, 1024>}, {pipeline_mode = #tpu.pipeline_mode<synchronous>, transform_indices = @transform_2, window_bounds = array<i64: 1, 1024>}, {pipeline_mode = #tpu.pipeline_mode<synchronous>, transform_indices = @transform_3, window_bounds = array<i64: 128, 512>}, {pipeline_mode = #tpu.pipeline_mode<synchronous>, transform_indices = @transform_4, window_bounds = array<i64: 128, 512>}, {pipeline_mode = #tpu.pipeline_mode<synchronous>, transform_indices = @transform_5, window_bounds = array<i64: 256, 512>}, {pipeline_mode = #tpu.pipeline_mode<synchronous>, transform_indices = @transform_6, window_bounds = array<i64: 1, 512>}, {pipeline_mode = #tpu.pipeline_mode<synchronous>, transform_indices = @transform_7, window_bounds = array<i64: 512, 128>}, {pipeline_mode = #tpu.pipeline_mode<synchronous>, transform_indices = @transform_8, window_bounds = array<i64: 1, 128>}, {transform_indices = @transform_9, window_bounds = array<i64: 8, 128>}]} {
    %c0 = arith.constant 0 : index
    %c0_0 = arith.constant 0 : index
    %c0_1 = arith.constant 0 : index
    %0 = vector.load %arg1[%c0, %c0_0, %c0_1] : memref<1x64x50xbf16, #tpu.memory_space<vmem>>, vector<1x64x50xbf16>
    %1 = vector.shape_cast %0 : vector<1x64x50xbf16> to vector<64x50xbf16>
    %c0_2 = arith.constant 0 : index
    %c0_3 = arith.constant 0 : index
    %2 = vector.load %arg2[%c0_2, %c0_3] : memref<50x1024xbf16, #tpu.memory_space<vmem>>, vector<50x1024xbf16>
    %cst = arith.constant dense<0.000000e+00> : vector<64x1024xf32>
    %3 = tpu.matmul %1, %2, %cst {dimension_numbers = #tpu.dot_dimension_numbers<[1], [0], [0], [1], [0, 0, 1, 1], [], []>} : vector<64x50xbf16>, vector<50x1024xbf16>, vector<64x1024xf32> -> vector<64x1024xf32>
    %c0_4 = arith.constant 0 : index
    %c0_5 = arith.constant 0 : index
    %4 = vector.load %arg3[%c0_4, %c0_5] : memref<1x1024xf32, #tpu.memory_space<vmem>>, vector<1x1024xf32>
    %5 = vector.broadcast %4 : vector<1x1024xf32> to vector<64x1024xf32>
    %6 = arith.addf %3, %5 : vector<64x1024xf32>
    %c0_6 = arith.constant 0 : index
    %c0_7 = arith.constant 0 : index
    %7 = vector.load %arg11[%c0_6, %c0_7] : memref<64x1024xf32, #tpu.memory_space<vmem>>, vector<64x1024xf32>
    tpu.vector_store %arg11[%c0_6, %c0_7], %6 {strides = array<i32>} : memref<64x1024xf32, #tpu.memory_space<vmem>>, vector<64x1024xf32>,
    %cst_8 = arith.constant 0.000000e+00 : f32
    %8 = vector.broadcast %cst_8 : f32 to vector<8x128xf32>
    %c0_9 = arith.constant 0 : index
    %c0_10 = arith.constant 0 : index
    %9 = vector.load %arg12[%c0_9, %c0_10] : memref<8x128xf32, #tpu.memory_space<vmem>>, vector<8x128xf32>
    tpu.vector_store %arg12[%c0_9, %c0_10], %8 {strides = array<i32>} : memref<8x128xf32, #tpu.memory_space<vmem>>, vector<8x128xf32>,
    %cst_11 = arith.constant 0.000000e+00 : f32
    %10 = vector.broadcast %cst_11 : f32 to vector<8x128xf32>
    %c0_12 = arith.constant 0 : index
    %c0_13 = arith.constant 0 : index
    %11 = vector.load %arg13[%c0_12, %c0_13] : memref<8x128xf32, #tpu.memory_space<vmem>>, vector<8x128xf32>
    tpu.vector_store %arg13[%c0_12, %c0_13], %10 {strides = array<i32>} : memref<8x128xf32, #tpu.memory_space<vmem>>, vector<8x128xf32>,
    %c0_14 = arith.constant 0 : index
    %c0_15 = arith.constant 0 : index
    %12 = vector.load %arg4[%c0_14, %c0_15] : memref<128x512xbf16, #tpu.memory_space<vmem>>, vector<128x512xbf16>
    %c0_16 = arith.constant 0 : index
    %c0_17 = arith.constant 0 : index
    %13 = vector.load %arg5[%c0_16, %c0_17] : memref<128x512xbf16, #tpu.memory_space<vmem>>, vector<128x512xbf16>
    %cst_18 = arith.constant 0.000000e+00 : f32
    %14 = vector.broadcast %cst_18 : f32 to vector<8x128xf32>
    %c0_i32 = arith.constant 0 : i32
    %c8_i32 = arith.constant 8 : i32
    %15 = arith.muli %c0_i32, %c8_i32 : i32
    %16 = tpu.assume_multiple %15, 8 : i32
    %c7_i32 = arith.constant 7 : i32
    %17 = arith.subi %c7_i32, %c0_i32 : i32
    %c8_i32_19 = arith.constant 8 : i32
    %18 = arith.muli %17, %c8_i32_19 : i32
    %19 = tpu.assume_multiple %18, 8 : i32
    %20 = arith.truncf %14 : vector<8x128xf32> to vector<8x128xbf16>
    %cst_20 = arith.constant dense<0.000000e+00> : vector<8x512xf32>
    %21 = tpu.matmul %20, %12, %cst_20 {dimension_numbers = #tpu.dot_dimension_numbers<[1], [0], [0], [1], [0, 0, 1, 1], [], []>} : vector<8x128xbf16>, vector<128x512xbf16>, vector<8x512xf32> -> vector<8x512xf32>
    %22 = arith.truncf %14 : vector<8x128xf32> to vector<8x128xbf16>
    %cst_21 = arith.constant dense<0.000000e+00> : vector<8x512xf32>
    %23 = tpu.matmul %22, %13, %cst_21 {dimension_numbers = #tpu.dot_dimension_numbers<[1], [0], [0], [1], [0, 0, 1, 1], [], []>} : vector<8x128xbf16>, vector<128x512xbf16>, vector<8x512xf32> -> vector<8x512xf32>
    %24 = arith.index_cast %16 : i32 to index
    %c0_22 = arith.constant 0 : index
    %25 = vector.load %arg11[%24, %c0_22] : memref<64x1024xf32, #tpu.memory_space<vmem>>, vector<8x512xf32>
    %26 = arith.index_cast %19 : i32 to index
    %c512 = arith.constant 512 : index
    %27 = vector.load %arg11[%26, %c512] : memref<64x1024xf32, #tpu.memory_space<vmem>>, vector<8x512xf32>
    %28 = arith.addf %21, %25 : vector<8x512xf32>
    %29 = vector.extract_strided_slice %28 {offsets = [0, 0], sizes = [8, 128], strides = [1, 1]} : vector<8x512xf32> to vector<8x128xf32>
    %30 = arith.negf %29 : vector<8x128xf32>
    %31 = math.exp %30 : vector<8x128xf32>
    %cst_23 = arith.constant 1.000000e+00 : f32
    %32 = vector.broadcast %cst_23 : f32 to vector<8x128xf32>
    %33 = arith.addf %32, %31 : vector<8x128xf32>
    %34 = arith.divf %32, %33 : vector<8x128xf32>
    %35 = vector.extract_strided_slice %28 {offsets = [0, 128], sizes = [8, 128], strides = [1, 1]} : vector<8x512xf32> to vector<8x128xf32>
    %36 = arith.negf %35 : vector<8x128xf32>
    %37 = math.exp %36 : vector<8x128xf32>
    %cst_24 = arith.constant 1.000000e+00 : f32
    %38 = vector.broadcast %cst_24 : f32 to vector<8x128xf32>
    %39 = arith.addf %38, %37 : vector<8x128xf32>
    %40 = arith.divf %38, %39 : vector<8x128xf32>
    %41 = vector.extract_strided_slice %28 {offsets = [0, 256], sizes = [8, 128], strides = [1, 1]} : vector<8x512xf32> to vector<8x128xf32>
    %42 = math.tanh %41 : vector<8x128xf32>
    %43 = vector.extract_strided_slice %28 {offsets = [0, 384], sizes = [8, 128], strides = [1, 1]} : vector<8x512xf32> to vector<8x128xf32>
    %44 = arith.negf %43 : vector<8x128xf32>
    %45 = math.exp %44 : vector<8x128xf32>
    %cst_25 = arith.constant 1.000000e+00 : f32
    %46 = vector.broadcast %cst_25 : f32 to vector<8x128xf32>
    %47 = arith.addf %46, %45 : vector<8x128xf32>
    %48 = arith.divf %46, %47 : vector<8x128xf32>
    %49 = arith.mulf %40, %14 : vector<8x128xf32>
    %50 = arith.mulf %34, %42 : vector<8x128xf32>
    %51 = arith.addf %49, %50 : vector<8x128xf32>
    %52 = math.tanh %51 : vector<8x128xf32>
    %53 = arith.mulf %48, %52 : vector<8x128xf32>
    %54 = arith.addf %23, %27 : vector<8x512xf32>
    %55 = vector.extract_strided_slice %54 {offsets = [0, 0], sizes = [8, 128], strides = [1, 1]} : vector<8x512xf32> to vector<8x128xf32>
    %56 = arith.negf %55 : vector<8x128xf32>
    %57 = math.exp %56 : vector<8x128xf32>
    %cst_26 = arith.constant 1.000000e+00 : f32
    %58 = vector.broadcast %cst_26 : f32 to vector<8x128xf32>
    %59 = arith.addf %58, %57 : vector<8x128xf32>
    %60 = arith.divf %58, %59 : vector<8x128xf32>
    %61 = vector.extract_strided_slice %54 {offsets = [0, 128], sizes = [8, 128], strides = [1, 1]} : vector<8x512xf32> to vector<8x128xf32>
    %62 = arith.negf %61 : vector<8x128xf32>
    %63 = math.exp %62 : vector<8x128xf32>
    %cst_27 = arith.constant 1.000000e+00 : f32
    %64 = vector.broadcast %cst_27 : f32 to vector<8x128xf32>
    %65 = arith.addf %64, %63 : vector<8x128xf32>
    %66 = arith.divf %64, %65 : vector<8x128xf32>
    %67 = vector.extract_strided_slice %54 {offsets = [0, 256], sizes = [8, 128], strides = [1, 1]} : vector<8x512xf32> to vector<8x128xf32>
    %68 = math.tanh %67 : vector<8x128xf32>
    %69 = vector.extract_strided_slice %54 {offsets = [0, 384], sizes = [8, 128], strides = [1, 1]} : vector<8x512xf32> to vector<8x128xf32>
    %70 = arith.negf %69 : vector<8x128xf32>
    %71 = math.exp %70 : vector<8x128xf32>
    %cst_28 = arith.constant 1.000000e+00 : f32
    %72 = vector.broadcast %cst_28 : f32 to vector<8x128xf32>
    %73 = arith.addf %72, %71 : vector<8x128xf32>
    %74 = arith.divf %72, %73 : vector<8x128xf32>
    %75 = arith.mulf %66, %14 : vector<8x128xf32>
    %76 = arith.mulf %60, %68 : vector<8x128xf32>
    %77 = arith.addf %75, %76 : vector<8x128xf32>
    %78 = math.tanh %77 : vector<8x128xf32>
    %79 = arith.mulf %74, %78 : vector<8x128xf32>
    %c0_29 = arith.constant 0 : index
    %c0_30 = arith.constant 0 : index
    %80 = vector.load %arg12[%c0_29, %c0_30] : memref<8x128xf32, #tpu.memory_space<vmem>>, vector<8x128xf32>
    %81 = arith.addf %80, %53 : vector<8x128xf32>
    %c0_31 = arith.constant 0 : index
    %c0_32 = arith.constant 0 : index
    %82 = vector.load %arg12[%c0_31, %c0_32] : memref<8x128xf32, #tpu.memory_space<vmem>>, vector<8x128xf32>
    tpu.vector_store %arg12[%c0_31, %c0_32], %81 {strides = array<i32>} : memref<8x128xf32, #tpu.memory_space<vmem>>, vector<8x128xf32>,
    %c0_33 = arith.constant 0 : index
    %c0_34 = arith.constant 0 : index
    %83 = vector.load %arg13[%c0_33, %c0_34] : memref<8x128xf32, #tpu.memory_space<vmem>>, vector<8x128xf32>
    %84 = arith.addf %83, %79 : vector<8x128xf32>
    %c0_35 = arith.constant 0 : index
    %c0_36 = arith.constant 0 : index
    %85 = vector.load %arg13[%c0_35, %c0_36] : memref<8x128xf32, #tpu.memory_space<vmem>>, vector<8x128xf32>
    tpu.vector_store %arg13[%c0_35, %c0_36], %84 {strides = array<i32>} : memref<8x128xf32, #tpu.memory_space<vmem>>, vector<8x128xf32>,
    %c1_i32 = arith.constant 1 : i32
    %c8_i32_37 = arith.constant 8 : i32
    %86 = arith.muli %c1_i32, %c8_i32_37 : i32
    %87 = tpu.assume_multiple %86, 8 : i32
    %c7_i32_38 = arith.constant 7 : i32
    %88 = arith.subi %c7_i32_38, %c1_i32 : i32
    %c8_i32_39 = arith.constant 8 : i32
    %89 = arith.muli %88, %c8_i32_39 : i32
    %90 = tpu.assume_multiple %89, 8 : i32
    %91 = arith.truncf %53 : vector<8x128xf32> to vector<8x128xbf16>
    %cst_40 = arith.constant dense<0.000000e+00> : vector<8x512xf32>
    %92 = tpu.matmul %91, %12, %cst_40 {dimension_numbers = #tpu.dot_dimension_numbers<[1], [0], [0], [1], [0, 0, 1, 1], [], []>} : vector<8x128xbf16>, vector<128x512xbf16>, vector<8x512xf32> -> vector<8x512xf32>
    %93 = arith.truncf %79 : vector<8x128xf32> to vector<8x128xbf16>
    %cst_41 = arith.constant dense<0.000000e+00> : vector<8x512xf32>
    %94 = tpu.matmul %93, %13, %cst_41 {dimension_numbers = #tpu.dot_dimension_numbers<[1], [0], [0], [1], [0, 0, 1, 1], [], []>} : vector<8x128xbf16>, vector<128x512xbf16>, vector<8x512xf32> -> vector<8x512xf32>
    %95 = arith.index_cast %87 : i32 to index
    %c0_42 = arith.constant 0 : index
    %96 = vector.load %arg11[%95, %c0_42] : memref<64x1024xf32, #tpu.memory_space<vmem>>, vector<8x512xf32>
    %97 = arith.index_cast %90 : i32 to index
    %c512_43 = arith.constant 512 : index
    %98 = vector.load %arg11[%97, %c512_43] : memref<64x1024xf32, #tpu.memory_space<vmem>>, vector<8x512xf32>
    %99 = arith.addf %92, %96 : vector<8x512xf32>
    %100 = vector.extract_strided_slice %99 {offsets = [0, 0], sizes = [8, 128], strides = [1, 1]} : vector<8x512xf32> to vector<8x128xf32>
    %101 = arith.negf %100 : vector<8x128xf32>
    %102 = math.exp %101 : vector<8x128xf32>
    %cst_44 = arith.constant 1.000000e+00 : f32
    %103 = vector.broadcast %cst_44 : f32 to vector<8x128xf32>
    %104 = arith.addf %103, %102 : vector<8x128xf32>
    %105 = arith.divf %103, %104 : vector<8x128xf32>
    %106 = vector.extract_strided_slice %99 {offsets = [0, 128], sizes = [8, 128], strides = [1, 1]} : vector<8x512xf32> to vector<8x128xf32>
    %107 = arith.negf %106 : vector<8x128xf32>
    %108 = math.exp %107 : vector<8x128xf32>
    %cst_45 = arith.constant 1.000000e+00 : f32
    %109 = vector.broadcast %cst_45 : f32 to vector<8x128xf32>
    %110 = arith.addf %109, %108 : vector<8x128xf32>
    %111 = arith.divf %109, %110 : vector<8x128xf32>
    %112 = vector.extract_strided_slice %99 {offsets = [0, 256], sizes = [8, 128], strides = [1, 1]} : vector<8x512xf32> to vector<8x128xf32>
    %113 = math.tanh %112 : vector<8x128xf32>
    %114 = vector.extract_strided_slice %99 {offsets = [0, 384], sizes = [8, 128], strides = [1, 1]} : vector<8x512xf32> to vector<8x128xf32>
    %115 = arith.negf %114 : vector<8x128xf32>
    %116 = math.exp %115 : vector<8x128xf32>
    %cst_46 = arith.constant 1.000000e+00 : f32
    %117 = vector.broadcast %cst_46 : f32 to vector<8x128xf32>
    %118 = arith.addf %117, %116 : vector<8x128xf32>
    %119 = arith.divf %117, %118 : vector<8x128xf32>
    %120 = arith.mulf %111, %51 : vector<8x128xf32>
    %121 = arith.mulf %105, %113 : vector<8x128xf32>
    %122 = arith.addf %120, %121 : vector<8x128xf32>
    %123 = math.tanh %122 : vector<8x128xf32>
    %124 = arith.mulf %119, %123 : vector<8x128xf32>
    %125 = arith.addf %94, %98 : vector<8x512xf32>
    %126 = vector.extract_strided_slice %125 {offsets = [0, 0], sizes = [8, 128], strides = [1, 1]} : vector<8x512xf32> to vector<8x128xf32>
    %127 = arith.negf %126 : vector<8x128xf32>
    %128 = math.exp %127 : vector<8x128xf32>
    %cst_47 = arith.constant 1.000000e+00 : f32
    %129 = vector.broadcast %cst_47 : f32 to vector<8x128xf32>
    %130 = arith.addf %129, %128 : vector<8x128xf32>
    %131 = arith.divf %129, %130 : vector<8x128xf32>
    %132 = vector.extract_strided_slice %125 {offsets = [0, 128], sizes = [8, 128], strides = [1, 1]} : vector<8x512xf32> to vector<8x128xf32>
    %133 = arith.negf %132 : vector<8x128xf32>
    %134 = math.exp %133 : vector<8x128xf32>
    %cst_48 = arith.constant 1.000000e+00 : f32
    %135 = vector.broadcast %cst_48 : f32 to vector<8x128xf32>
    %136 = arith.addf %135, %134 : vector<8x128xf32>
    %137 = arith.divf %135, %136 : vector<8x128xf32>
    %138 = vector.extract_strided_slice %125 {offsets = [0, 256], sizes = [8, 128], strides = [1, 1]} : vector<8x512xf32> to vector<8x128xf32>
    %139 = math.tanh %138 : vector<8x128xf32>
    %140 = vector.extract_strided_slice %125 {offsets = [0, 384], sizes = [8, 128], strides = [1, 1]} : vector<8x512xf32> to vector<8x128xf32>
    %141 = arith.negf %140 : vector<8x128xf32>
    %142 = math.exp %141 : vector<8x128xf32>
    %cst_49 = arith.constant 1.000000e+00 : f32
    %143 = vector.broadcast %cst_49 : f32 to vector<8x128xf32>
    %144 = arith.addf %143, %142 : vector<8x128xf32>
    %145 = arith.divf %143, %144 : vector<8x128xf32>
    %146 = arith.mulf %137, %77 : vector<8x128xf32>
    %147 = arith.mulf %131, %139 : vector<8x128xf32>
    %148 = arith.addf %146, %147 : vector<8x128xf32>
    %149 = math.tanh %148 : vector<8x128xf32>
    %150 = arith.mulf %145, %149 : vector<8x128xf32>
    %c0_50 = arith.constant 0 : index
    %c0_51 = arith.constant 0 : index
    %151 = vector.load %arg12[%c0_50, %c0_51] : memref<8x128xf32, #tpu.memory_space<vmem>>, vector<8x128xf32>
    %152 = arith.addf %151, %124 : vector<8x128xf32>
    %c0_52 = arith.constant 0 : index
    %c0_53 = arith.constant 0 : index
    %153 = vector.load %arg12[%c0_52, %c0_53] : memref<8x128xf32, #tpu.memory_space<vmem>>, vector<8x128xf32>
    tpu.vector_store %arg12[%c0_52, %c0_53], %152 {strides = array<i32>} : memref<8x128xf32, #tpu.memory_space<vmem>>, vector<8x128xf32>,
    %c0_54 = arith.constant 0 : index
    %c0_55 = arith.constant 0 : index
    %154 = vector.load %arg13[%c0_54, %c0_55] : memref<8x128xf32, #tpu.memory_space<vmem>>, vector<8x128xf32>
    %155 = arith.addf %154, %150 : vector<8x128xf32>
    %c0_56 = arith.constant 0 : index
    %c0_57 = arith.constant 0 : index
    %156 = vector.load %arg13[%c0_56, %c0_57] : memref<8x128xf32, #tpu.memory_space<vmem>>, vector<8x128xf32>
    tpu.vector_store %arg13[%c0_56, %c0_57], %155 {strides = array<i32>} : memref<8x128xf32, #tpu.memory_space<vmem>>, vector<8x128xf32>,
    %c2_i32 = arith.constant 2 : i32
    %c8_i32_58 = arith.constant 8 : i32
    %157 = arith.muli %c2_i32, %c8_i32_58 : i32
    %158 = tpu.assume_multiple %157, 8 : i32
    %c7_i32_59 = arith.constant 7 : i32
    %159 = arith.subi %c7_i32_59, %c2_i32 : i32
    %c8_i32_60 = arith.constant 8 : i32
    %160 = arith.muli %159, %c8_i32_60 : i32
    %161 = tpu.assume_multiple %160, 8 : i32
    %162 = arith.truncf %124 : vector<8x128xf32> to vector<8x128xbf16>
    %cst_61 = arith.constant dense<0.000000e+00> : vector<8x512xf32>
    %163 = tpu.matmul %162, %12, %cst_61 {dimension_numbers = #tpu.dot_dimension_numbers<[1], [0], [0], [1], [0, 0, 1, 1], [], []>} : vector<8x128xbf16>, vector<128x512xbf16>, vector<8x512xf32> -> vector<8x512xf32>
    %164 = arith.truncf %150 : vector<8x128xf32> to vector<8x128xbf16>
    %cst_62 = arith.constant dense<0.000000e+00> : vector<8x512xf32>
    %165 = tpu.matmul %164, %13, %cst_62 {dimension_numbers = #tpu.dot_dimension_numbers<[1], [0], [0], [1], [0, 0, 1, 1], [], []>} : vector<8x128xbf16>, vector<128x512xbf16>, vector<8x512xf32> -> vector<8x512xf32>
    %166 = arith.index_cast %158 : i32 to index
    %c0_63 = arith.constant 0 : index
    %167 = vector.load %arg11[%166, %c0_63] : memref<64x1024xf32, #tpu.memory_space<vmem>>, vector<8x512xf32>
    %168 = arith.index_cast %161 : i32 to index
    %c512_64 = arith.constant 512 : index
    %169 = vector.load %arg11[%168, %c512_64] : memref<64x1024xf32, #tpu.memory_space<vmem>>, vector<8x512xf32>
    %170 = arith.addf %163, %167 : vector<8x512xf32>
    %171 = vector.extract_strided_slice %170 {offsets = [0, 0], sizes = [8, 128], strides = [1, 1]} : vector<8x512xf32> to vector<8x128xf32>
    %172 = arith.negf %171 : vector<8x128xf32>
    %173 = math.exp %172 : vector<8x128xf32>
    %cst_65 = arith.constant 1.000000e+00 : f32
    %174 = vector.broadcast %cst_65 : f32 to vector<8x128xf32>
    %175 = arith.addf %174, %173 : vector<8x128xf32>
    %176 = arith.divf %174, %175 : vector<8x128xf32>
    %177 = vector.extract_strided_slice %170 {offsets = [0, 128], sizes = [8, 128], strides = [1, 1]} : vector<8x512xf32> to vector<8x128xf32>
    %178 = arith.negf %177 : vector<8x128xf32>
    %179 = math.exp %178 : vector<8x128xf32>
    %cst_66 = arith.constant 1.000000e+00 : f32
    %180 = vector.broadcast %cst_66 : f32 to vector<8x128xf32>
    %181 = arith.addf %180, %179 : vector<8x128xf32>
    %182 = arith.divf %180, %181 : vector<8x128xf32>
    %183 = vector.extract_strided_slice %170 {offsets = [0, 256], sizes = [8, 128], strides = [1, 1]} : vector<8x512xf32> to vector<8x128xf32>
    %184 = math.tanh %183 : vector<8x128xf32>
    %185 = vector.extract_strided_slice %170 {offsets = [0, 384], sizes = [8, 128], strides = [1, 1]} : vector<8x512xf32> to vector<8x128xf32>
    %186 = arith.negf %185 : vector<8x128xf32>
    %187 = math.exp %186 : vector<8x128xf32>
    %cst_67 = arith.constant 1.000000e+00 : f32
    %188 = vector.broadcast %cst_67 : f32 to vector<8x128xf32>
    %189 = arith.addf %188, %187 : vector<8x128xf32>
    %190 = arith.divf %188, %189 : vector<8x128xf32>
    %191 = arith.mulf %182, %122 : vector<8x128xf32>
    %192 = arith.mulf %176, %184 : vector<8x128xf32>
    %193 = arith.addf %191, %192 : vector<8x128xf32>
    %194 = math.tanh %193 : vector<8x128xf32>
    %195 = arith.mulf %190, %194 : vector<8x128xf32>
    %196 = arith.addf %165, %169 : vector<8x512xf32>
    %197 = vector.extract_strided_slice %196 {offsets = [0, 0], sizes = [8, 128], strides = [1, 1]} : vector<8x512xf32> to vector<8x128xf32>
    %198 = arith.negf %197 : vector<8x128xf32>
    %199 = math.exp %198 : vector<8x128xf32>
    %cst_68 = arith.constant 1.000000e+00 : f32
    %200 = vector.broadcast %cst_68 : f32 to vector<8x128xf32>
    %201 = arith.addf %200, %199 : vector<8x128xf32>
    %202 = arith.divf %200, %201 : vector<8x128xf32>
    %203 = vector.extract_strided_slice %196 {offsets = [0, 128], sizes = [8, 128], strides = [1, 1]} : vector<8x512xf32> to vector<8x128xf32>
    %204 = arith.negf %203 : vector<8x128xf32>
    %205 = math.exp %204 : vector<8x128xf32>
    %cst_69 = arith.constant 1.000000e+00 : f32
    %206 = vector.broadcast %cst_69 : f32 to vector<8x128xf32>
    %207 = arith.addf %206, %205 : vector<8x128xf32>
    %208 = arith.divf %206, %207 : vector<8x128xf32>
    %209 = vector.extract_strided_slice %196 {offsets = [0, 256], sizes = [8, 128], strides = [1, 1]} : vector<8x512xf32> to vector<8x128xf32>
    %210 = math.tanh %209 : vector<8x128xf32>
    %211 = vector.extract_strided_slice %196 {offsets = [0, 384], sizes = [8, 128], strides = [1, 1]} : vector<8x512xf32> to vector<8x128xf32>
    %212 = arith.negf %211 : vector<8x128xf32>
    %213 = math.exp %212 : vector<8x128xf32>
    %cst_70 = arith.constant 1.000000e+00 : f32
    %214 = vector.broadcast %cst_70 : f32 to vector<8x128xf32>
    %215 = arith.addf %214, %213 : vector<8x128xf32>
    %216 = arith.divf %214, %215 : vector<8x128xf32>
    %217 = arith.mulf %208, %148 : vector<8x128xf32>
    %218 = arith.mulf %202, %210 : vector<8x128xf32>
    %219 = arith.addf %217, %218 : vector<8x128xf32>
    %220 = math.tanh %219 : vector<8x128xf32>
    %221 = arith.mulf %216, %220 : vector<8x128xf32>
    %c0_71 = arith.constant 0 : index
    %c0_72 = arith.constant 0 : index
    %222 = vector.load %arg12[%c0_71, %c0_72] : memref<8x128xf32, #tpu.memory_space<vmem>>, vector<8x128xf32>
    %223 = arith.addf %222, %195 : vector<8x128xf32>
    %c0_73 = arith.constant 0 : index
    %c0_74 = arith.constant 0 : index
    %224 = vector.load %arg12[%c0_73, %c0_74] : memref<8x128xf32, #tpu.memory_space<vmem>>, vector<8x128xf32>
    tpu.vector_store %arg12[%c0_73, %c0_74], %223 {strides = array<i32>} : memref<8x128xf32, #tpu.memory_space<vmem>>, vector<8x128xf32>,
    %c0_75 = arith.constant 0 : index
    %c0_76 = arith.constant 0 : index
    %225 = vector.load %arg13[%c0_75, %c0_76] : memref<8x128xf32, #tpu.memory_space<vmem>>, vector<8x128xf32>
    %226 = arith.addf %225, %221 : vector<8x128xf32>
    %c0_77 = arith.constant 0 : index
    %c0_78 = arith.constant 0 : index
    %227 = vector.load %arg13[%c0_77, %c0_78] : memref<8x128xf32, #tpu.memory_space<vmem>>, vector<8x128xf32>
    tpu.vector_store %arg13[%c0_77, %c0_78], %226 {strides = array<i32>} : memref<8x128xf32, #tpu.memory_space<vmem>>, vector<8x128xf32>,
    %c3_i32 = arith.constant 3 : i32
    %c8_i32_79 = arith.constant 8 : i32
    %228 = arith.muli %c3_i32, %c8_i32_79 : i32
    %229 = tpu.assume_multiple %228, 8 : i32
    %c7_i32_80 = arith.constant 7 : i32
    %230 = arith.subi %c7_i32_80, %c3_i32 : i32
    %c8_i32_81 = arith.constant 8 : i32
    %231 = arith.muli %230, %c8_i32_81 : i32
    %232 = tpu.assume_multiple %231, 8 : i32
    %233 = arith.truncf %195 : vector<8x128xf32> to vector<8x128xbf16>
    %cst_82 = arith.constant dense<0.000000e+00> : vector<8x512xf32>
    %234 = tpu.matmul %233, %12, %cst_82 {dimension_numbers = #tpu.dot_dimension_numbers<[1], [0], [0], [1], [0, 0, 1, 1], [], []>} : vector<8x128xbf16>, vector<128x512xbf16>, vector<8x512xf32> -> vector<8x512xf32>
    %235 = arith.truncf %221 : vector<8x128xf32> to vector<8x128xbf16>
    %cst_83 = arith.constant dense<0.000000e+00> : vector<8x512xf32>
    %236 = tpu.matmul %235, %13, %cst_83 {dimension_numbers = #tpu.dot_dimension_numbers<[1], [0], [0], [1], [0, 0, 1, 1], [], []>} : vector<8x128xbf16>, vector<128x512xbf16>, vector<8x512xf32> -> vector<8x512xf32>
    %237 = arith.index_cast %229 : i32 to index
    %c0_84 = arith.constant 0 : index
    %238 = vector.load %arg11[%237, %c0_84] : memref<64x1024xf32, #tpu.memory_space<vmem>>, vector<8x512xf32>
    %239 = arith.index_cast %232 : i32 to index
    %c512_85 = arith.constant 512 : index
    %240 = vector.load %arg11[%239, %c512_85] : memref<64x1024xf32, #tpu.memory_space<vmem>>, vector<8x512xf32>
    %241 = arith.addf %234, %238 : vector<8x512xf32>
    %242 = vector.extract_strided_slice %241 {offsets = [0, 0], sizes = [8, 128], strides = [1, 1]} : vector<8x512xf32> to vector<8x128xf32>
    %243 = arith.negf %242 : vector<8x128xf32>
    %244 = math.exp %243 : vector<8x128xf32>
    %cst_86 = arith.constant 1.000000e+00 : f32
    %245 = vector.broadcast %cst_86 : f32 to vector<8x128xf32>
    %246 = arith.addf %245, %244 : vector<8x128xf32>
    %247 = arith.divf %245, %246 : vector<8x128xf32>
    %248 = vector.extract_strided_slice %241 {offsets = [0, 128], sizes = [8, 128], strides = [1, 1]} : vector<8x512xf32> to vector<8x128xf32>
    %249 = arith.negf %248 : vector<8x128xf32>
    %250 = math.exp %249 : vector<8x128xf32>
    %cst_87 = arith.constant 1.000000e+00 : f32
    %251 = vector.broadcast %cst_87 : f32 to vector<8x128xf32>
    %252 = arith.addf %251, %250 : vector<8x128xf32>
    %253 = arith.divf %251, %252 : vector<8x128xf32>
    %254 = vector.extract_strided_slice %241 {offsets = [0, 256], sizes = [8, 128], strides = [1, 1]} : vector<8x512xf32> to vector<8x128xf32>
    %255 = math.tanh %254 : vector<8x128xf32>
    %256 = vector.extract_strided_slice %241 {offsets = [0, 384], sizes = [8, 128], strides = [1, 1]} : vector<8x512xf32> to vector<8x128xf32>
    %257 = arith.negf %256 : vector<8x128xf32>
    %258 = math.exp %257 : vector<8x128xf32>
    %cst_88 = arith.constant 1.000000e+00 : f32
    %259 = vector.broadcast %cst_88 : f32 to vector<8x128xf32>
    %260 = arith.addf %259, %258 : vector<8x128xf32>
    %261 = arith.divf %259, %260 : vector<8x128xf32>
    %262 = arith.mulf %253, %193 : vector<8x128xf32>
    %263 = arith.mulf %247, %255 : vector<8x128xf32>
    %264 = arith.addf %262, %263 : vector<8x128xf32>
    %265 = math.tanh %264 : vector<8x128xf32>
    %266 = arith.mulf %261, %265 : vector<8x128xf32>
    %267 = arith.addf %236, %240 : vector<8x512xf32>
    %268 = vector.extract_strided_slice %267 {offsets = [0, 0], sizes = [8, 128], strides = [1, 1]} : vector<8x512xf32> to vector<8x128xf32>
    %269 = arith.negf %268 : vector<8x128xf32>
    %270 = math.exp %269 : vector<8x128xf32>
    %cst_89 = arith.constant 1.000000e+00 : f32
    %271 = vector.broadcast %cst_89 : f32 to vector<8x128xf32>
    %272 = arith.addf %271, %270 : vector<8x128xf32>
    %273 = arith.divf %271, %272 : vector<8x128xf32>
    %274 = vector.extract_strided_slice %267 {offsets = [0, 128], sizes = [8, 128], strides = [1, 1]} : vector<8x512xf32> to vector<8x128xf32>
    %275 = arith.negf %274 : vector<8x128xf32>
    %276 = math.exp %275 : vector<8x128xf32>
    %cst_90 = arith.constant 1.000000e+00 : f32
    %277 = vector.broadcast %cst_90 : f32 to vector<8x128xf32>
    %278 = arith.addf %277, %276 : vector<8x128xf32>
    %279 = arith.divf %277, %278 : vector<8x128xf32>
    %280 = vector.extract_strided_slice %267 {offsets = [0, 256], sizes = [8, 128], strides = [1, 1]} : vector<8x512xf32> to vector<8x128xf32>
    %281 = math.tanh %280 : vector<8x128xf32>
    %282 = vector.extract_strided_slice %267 {offsets = [0, 384], sizes = [8, 128], strides = [1, 1]} : vector<8x512xf32> to vector<8x128xf32>
    %283 = arith.negf %282 : vector<8x128xf32>
    %284 = math.exp %283 : vector<8x128xf32>
    %cst_91 = arith.constant 1.000000e+00 : f32
    %285 = vector.broadcast %cst_91 : f32 to vector<8x128xf32>
    %286 = arith.addf %285, %284 : vector<8x128xf32>
    %287 = arith.divf %285, %286 : vector<8x128xf32>
    %288 = arith.mulf %279, %219 : vector<8x128xf32>
    %289 = arith.mulf %273, %281 : vector<8x128xf32>
    %290 = arith.addf %288, %289 : vector<8x128xf32>
    %291 = math.tanh %290 : vector<8x128xf32>
    %292 = arith.mulf %287, %291 : vector<8x128xf32>
    %c0_92 = arith.constant 0 : index
    %c0_93 = arith.constant 0 : index
    %293 = vector.load %arg12[%c0_92, %c0_93] : memref<8x128xf32, #tpu.memory_space<vmem>>, vector<8x128xf32>
    %294 = arith.addf %293, %266 : vector<8x128xf32>
    %c0_94 = arith.constant 0 : index
    %c0_95 = arith.constant 0 : index
    %295 = vector.load %arg12[%c0_94, %c0_95] : memref<8x128xf32, #tpu.memory_space<vmem>>, vector<8x128xf32>
    tpu.vector_store %arg12[%c0_94, %c0_95], %294 {strides = array<i32>} : memref<8x128xf32, #tpu.memory_space<vmem>>, vector<8x128xf32>,
    %c0_96 = arith.constant 0 : index
    %c0_97 = arith.constant 0 : index
    %296 = vector.load %arg13[%c0_96, %c0_97] : memref<8x128xf32, #tpu.memory_space<vmem>>, vector<8x128xf32>
    %297 = arith.addf %296, %292 : vector<8x128xf32>
    %c0_98 = arith.constant 0 : index
    %c0_99 = arith.constant 0 : index
    %298 = vector.load %arg13[%c0_98, %c0_99] : memref<8x128xf32, #tpu.memory_space<vmem>>, vector<8x128xf32>
    tpu.vector_store %arg13[%c0_98, %c0_99], %297 {strides = array<i32>} : memref<8x128xf32, #tpu.memory_space<vmem>>, vector<8x128xf32>,
    %c4_i32 = arith.constant 4 : i32
    %c8_i32_100 = arith.constant 8 : i32
    %299 = arith.muli %c4_i32, %c8_i32_100 : i32
    %300 = tpu.assume_multiple %299, 8 : i32
    %c7_i32_101 = arith.constant 7 : i32
    %301 = arith.subi %c7_i32_101, %c4_i32 : i32
    %c8_i32_102 = arith.constant 8 : i32
    %302 = arith.muli %301, %c8_i32_102 : i32
    %303 = tpu.assume_multiple %302, 8 : i32
    %304 = arith.truncf %266 : vector<8x128xf32> to vector<8x128xbf16>
    %cst_103 = arith.constant dense<0.000000e+00> : vector<8x512xf32>
    %305 = tpu.matmul %304, %12, %cst_103 {dimension_numbers = #tpu.dot_dimension_numbers<[1], [0], [0], [1], [0, 0, 1, 1], [], []>} : vector<8x128xbf16>, vector<128x512xbf16>, vector<8x512xf32> -> vector<8x512xf32>
    %306 = arith.truncf %292 : vector<8x128xf32> to vector<8x128xbf16>
    %cst_104 = arith.constant dense<0.000000e+00> : vector<8x512xf32>
    %307 = tpu.matmul %306, %13, %cst_104 {dimension_numbers = #tpu.dot_dimension_numbers<[1], [0], [0], [1], [0, 0, 1, 1], [], []>} : vector<8x128xbf16>, vector<128x512xbf16>, vector<8x512xf32> -> vector<8x512xf32>
    %308 = arith.index_cast %300 : i32 to index
    %c0_105 = arith.constant 0 : index
    %309 = vector.load %arg11[%308, %c0_105] : memref<64x1024xf32, #tpu.memory_space<vmem>>, vector<8x512xf32>
    %310 = arith.index_cast %303 : i32 to index
    %c512_106 = arith.constant 512 : index
    %311 = vector.load %arg11[%310, %c512_106] : memref<64x1024xf32, #tpu.memory_space<vmem>>, vector<8x512xf32>
    %312 = arith.addf %305, %309 : vector<8x512xf32>
    %313 = vector.extract_strided_slice %312 {offsets = [0, 0], sizes = [8, 128], strides = [1, 1]} : vector<8x512xf32> to vector<8x128xf32>
    %314 = arith.negf %313 : vector<8x128xf32>
    %315 = math.exp %314 : vector<8x128xf32>
    %cst_107 = arith.constant 1.000000e+00 : f32
    %316 = vector.broadcast %cst_107 : f32 to vector<8x128xf32>
    %317 = arith.addf %316, %315 : vector<8x128xf32>
    %318 = arith.divf %316, %317 : vector<8x128xf32>
    %319 = vector.extract_strided_slice %312 {offsets = [0, 128], sizes = [8, 128], strides = [1, 1]} : vector<8x512xf32> to vector<8x128xf32>
    %320 = arith.negf %319 : vector<8x128xf32>
    %321 = math.exp %320 : vector<8x128xf32>
    %cst_108 = arith.constant 1.000000e+00 : f32
    %322 = vector.broadcast %cst_108 : f32 to vector<8x128xf32>
    %323 = arith.addf %322, %321 : vector<8x128xf32>
    %324 = arith.divf %322, %323 : vector<8x128xf32>
    %325 = vector.extract_strided_slice %312 {offsets = [0, 256], sizes = [8, 128], strides = [1, 1]} : vector<8x512xf32> to vector<8x128xf32>
    %326 = math.tanh %325 : vector<8x128xf32>
    %327 = vector.extract_strided_slice %312 {offsets = [0, 384], sizes = [8, 128], strides = [1, 1]} : vector<8x512xf32> to vector<8x128xf32>
    %328 = arith.negf %327 : vector<8x128xf32>
    %329 = math.exp %328 : vector<8x128xf32>
    %cst_109 = arith.constant 1.000000e+00 : f32
    %330 = vector.broadcast %cst_109 : f32 to vector<8x128xf32>
    %331 = arith.addf %330, %329 : vector<8x128xf32>
    %332 = arith.divf %330, %331 : vector<8x128xf32>
    %333 = arith.mulf %324, %264 : vector<8x128xf32>
    %334 = arith.mulf %318, %326 : vector<8x128xf32>
    %335 = arith.addf %333, %334 : vector<8x128xf32>
    %336 = math.tanh %335 : vector<8x128xf32>
    %337 = arith.mulf %332, %336 : vector<8x128xf32>
    %338 = arith.addf %307, %311 : vector<8x512xf32>
    %339 = vector.extract_strided_slice %338 {offsets = [0, 0], sizes = [8, 128], strides = [1, 1]} : vector<8x512xf32> to vector<8x128xf32>
    %340 = arith.negf %339 : vector<8x128xf32>
    %341 = math.exp %340 : vector<8x128xf32>
    %cst_110 = arith.constant 1.000000e+00 : f32
    %342 = vector.broadcast %cst_110 : f32 to vector<8x128xf32>
    %343 = arith.addf %342, %341 : vector<8x128xf32>
    %344 = arith.divf %342, %343 : vector<8x128xf32>
    %345 = vector.extract_strided_slice %338 {offsets = [0, 128], sizes = [8, 128], strides = [1, 1]} : vector<8x512xf32> to vector<8x128xf32>
    %346 = arith.negf %345 : vector<8x128xf32>
    %347 = math.exp %346 : vector<8x128xf32>
    %cst_111 = arith.constant 1.000000e+00 : f32
    %348 = vector.broadcast %cst_111 : f32 to vector<8x128xf32>
    %349 = arith.addf %348, %347 : vector<8x128xf32>
    %350 = arith.divf %348, %349 : vector<8x128xf32>
    %351 = vector.extract_strided_slice %338 {offsets = [0, 256], sizes = [8, 128], strides = [1, 1]} : vector<8x512xf32> to vector<8x128xf32>
    %352 = math.tanh %351 : vector<8x128xf32>
    %353 = vector.extract_strided_slice %338 {offsets = [0, 384], sizes = [8, 128], strides = [1, 1]} : vector<8x512xf32> to vector<8x128xf32>
    %354 = arith.negf %353 : vector<8x128xf32>
    %355 = math.exp %354 : vector<8x128xf32>
    %cst_112 = arith.constant 1.000000e+00 : f32
    %356 = vector.broadcast %cst_112 : f32 to vector<8x128xf32>
    %357 = arith.addf %356, %355 : vector<8x128xf32>
    %358 = arith.divf %356, %357 : vector<8x128xf32>
    %359 = arith.mulf %350, %290 : vector<8x128xf32>
    %360 = arith.mulf %344, %352 : vector<8x128xf32>
    %361 = arith.addf %359, %360 : vector<8x128xf32>
    %362 = math.tanh %361 : vector<8x128xf32>
    %363 = arith.mulf %358, %362 : vector<8x128xf32>
    %c0_113 = arith.constant 0 : index
    %c0_114 = arith.constant 0 : index
    %364 = vector.load %arg12[%c0_113, %c0_114] : memref<8x128xf32, #tpu.memory_space<vmem>>, vector<8x128xf32>
    %365 = arith.addf %364, %337 : vector<8x128xf32>
    %c0_115 = arith.constant 0 : index
    %c0_116 = arith.constant 0 : index
    %366 = vector.load %arg12[%c0_115, %c0_116] : memref<8x128xf32, #tpu.memory_space<vmem>>, vector<8x128xf32>
    tpu.vector_store %arg12[%c0_115, %c0_116], %365 {strides = array<i32>} : memref<8x128xf32, #tpu.memory_space<vmem>>, vector<8x128xf32>,
    %c0_117 = arith.constant 0 : index
    %c0_118 = arith.constant 0 : index
    %367 = vector.load %arg13[%c0_117, %c0_118] : memref<8x128xf32, #tpu.memory_space<vmem>>, vector<8x128xf32>
    %368 = arith.addf %367, %363 : vector<8x128xf32>
    %c0_119 = arith.constant 0 : index
    %c0_120 = arith.constant 0 : index
    %369 = vector.load %arg13[%c0_119, %c0_120] : memref<8x128xf32, #tpu.memory_space<vmem>>, vector<8x128xf32>
    tpu.vector_store %arg13[%c0_119, %c0_120], %368 {strides = array<i32>} : memref<8x128xf32, #tpu.memory_space<vmem>>, vector<8x128xf32>,
    %c5_i32 = arith.constant 5 : i32
    %c8_i32_121 = arith.constant 8 : i32
    %370 = arith.muli %c5_i32, %c8_i32_121 : i32
    %371 = tpu.assume_multiple %370, 8 : i32
    %c7_i32_122 = arith.constant 7 : i32
    %372 = arith.subi %c7_i32_122, %c5_i32 : i32
    %c8_i32_123 = arith.constant 8 : i32
    %373 = arith.muli %372, %c8_i32_123 : i32
    %374 = tpu.assume_multiple %373, 8 : i32
    %375 = arith.truncf %337 : vector<8x128xf32> to vector<8x128xbf16>
    %cst_124 = arith.constant dense<0.000000e+00> : vector<8x512xf32>
    %376 = tpu.matmul %375, %12, %cst_124 {dimension_numbers = #tpu.dot_dimension_numbers<[1], [0], [0], [1], [0, 0, 1, 1], [], []>} : vector<8x128xbf16>, vector<128x512xbf16>, vector<8x512xf32> -> vector<8x512xf32>
    %377 = arith.truncf %363 : vector<8x128xf32> to vector<8x128xbf16>
    %cst_125 = arith.constant dense<0.000000e+00> : vector<8x512xf32>
    %378 = tpu.matmul %377, %13, %cst_125 {dimension_numbers = #tpu.dot_dimension_numbers<[1], [0], [0], [1], [0, 0, 1, 1], [], []>} : vector<8x128xbf16>, vector<128x512xbf16>, vector<8x512xf32> -> vector<8x512xf32>
    %379 = arith.index_cast %371 : i32 to index
    %c0_126 = arith.constant 0 : index
    %380 = vector.load %arg11[%379, %c0_126] : memref<64x1024xf32, #tpu.memory_space<vmem>>, vector<8x512xf32>
    %381 = arith.index_cast %374 : i32 to index
    %c512_127 = arith.constant 512 : index
    %382 = vector.load %arg11[%381, %c512_127] : memref<64x1024xf32, #tpu.memory_space<vmem>>, vector<8x512xf32>
    %383 = arith.addf %376, %380 : vector<8x512xf32>
    %384 = vector.extract_strided_slice %383 {offsets = [0, 0], sizes = [8, 128], strides = [1, 1]} : vector<8x512xf32> to vector<8x128xf32>
    %385 = arith.negf %384 : vector<8x128xf32>
    %386 = math.exp %385 : vector<8x128xf32>
    %cst_128 = arith.constant 1.000000e+00 : f32
    %387 = vector.broadcast %cst_128 : f32 to vector<8x128xf32>
    %388 = arith.addf %387, %386 : vector<8x128xf32>
    %389 = arith.divf %387, %388 : vector<8x128xf32>
    %390 = vector.extract_strided_slice %383 {offsets = [0, 128], sizes = [8, 128], strides = [1, 1]} : vector<8x512xf32> to vector<8x128xf32>
    %391 = arith.negf %390 : vector<8x128xf32>
    %392 = math.exp %391 : vector<8x128xf32>
    %cst_129 = arith.constant 1.000000e+00 : f32
    %393 = vector.broadcast %cst_129 : f32 to vector<8x128xf32>
    %394 = arith.addf %393, %392 : vector<8x128xf32>
    %395 = arith.divf %393, %394 : vector<8x128xf32>
    %396 = vector.extract_strided_slice %383 {offsets = [0, 256], sizes = [8, 128], strides = [1, 1]} : vector<8x512xf32> to vector<8x128xf32>
    %397 = math.tanh %396 : vector<8x128xf32>
    %398 = vector.extract_strided_slice %383 {offsets = [0, 384], sizes = [8, 128], strides = [1, 1]} : vector<8x512xf32> to vector<8x128xf32>
    %399 = arith.negf %398 : vector<8x128xf32>
    %400 = math.exp %399 : vector<8x128xf32>
    %cst_130 = arith.constant 1.000000e+00 : f32
    %401 = vector.broadcast %cst_130 : f32 to vector<8x128xf32>
    %402 = arith.addf %401, %400 : vector<8x128xf32>
    %403 = arith.divf %401, %402 : vector<8x128xf32>
    %404 = arith.mulf %395, %335 : vector<8x128xf32>
    %405 = arith.mulf %389, %397 : vector<8x128xf32>
    %406 = arith.addf %404, %405 : vector<8x128xf32>
    %407 = math.tanh %406 : vector<8x128xf32>
    %408 = arith.mulf %403, %407 : vector<8x128xf32>
    %409 = arith.addf %378, %382 : vector<8x512xf32>
    %410 = vector.extract_strided_slice %409 {offsets = [0, 0], sizes = [8, 128], strides = [1, 1]} : vector<8x512xf32> to vector<8x128xf32>
    %411 = arith.negf %410 : vector<8x128xf32>
    %412 = math.exp %411 : vector<8x128xf32>
    %cst_131 = arith.constant 1.000000e+00 : f32
    %413 = vector.broadcast %cst_131 : f32 to vector<8x128xf32>
    %414 = arith.addf %413, %412 : vector<8x128xf32>
    %415 = arith.divf %413, %414 : vector<8x128xf32>
    %416 = vector.extract_strided_slice %409 {offsets = [0, 128], sizes = [8, 128], strides = [1, 1]} : vector<8x512xf32> to vector<8x128xf32>
    %417 = arith.negf %416 : vector<8x128xf32>
    %418 = math.exp %417 : vector<8x128xf32>
    %cst_132 = arith.constant 1.000000e+00 : f32
    %419 = vector.broadcast %cst_132 : f32 to vector<8x128xf32>
    %420 = arith.addf %419, %418 : vector<8x128xf32>
    %421 = arith.divf %419, %420 : vector<8x128xf32>
    %422 = vector.extract_strided_slice %409 {offsets = [0, 256], sizes = [8, 128], strides = [1, 1]} : vector<8x512xf32> to vector<8x128xf32>
    %423 = math.tanh %422 : vector<8x128xf32>
    %424 = vector.extract_strided_slice %409 {offsets = [0, 384], sizes = [8, 128], strides = [1, 1]} : vector<8x512xf32> to vector<8x128xf32>
    %425 = arith.negf %424 : vector<8x128xf32>
    %426 = math.exp %425 : vector<8x128xf32>
    %cst_133 = arith.constant 1.000000e+00 : f32
    %427 = vector.broadcast %cst_133 : f32 to vector<8x128xf32>
    %428 = arith.addf %427, %426 : vector<8x128xf32>
    %429 = arith.divf %427, %428 : vector<8x128xf32>
    %430 = arith.mulf %421, %361 : vector<8x128xf32>
    %431 = arith.mulf %415, %423 : vector<8x128xf32>
    %432 = arith.addf %430, %431 : vector<8x128xf32>
    %433 = math.tanh %432 : vector<8x128xf32>
    %434 = arith.mulf %429, %433 : vector<8x128xf32>
    %c0_134 = arith.constant 0 : index
    %c0_135 = arith.constant 0 : index
    %435 = vector.load %arg12[%c0_134, %c0_135] : memref<8x128xf32, #tpu.memory_space<vmem>>, vector<8x128xf32>
    %436 = arith.addf %435, %408 : vector<8x128xf32>
    %c0_136 = arith.constant 0 : index
    %c0_137 = arith.constant 0 : index
    %437 = vector.load %arg12[%c0_136, %c0_137] : memref<8x128xf32, #tpu.memory_space<vmem>>, vector<8x128xf32>
    tpu.vector_store %arg12[%c0_136, %c0_137], %436 {strides = array<i32>} : memref<8x128xf32, #tpu.memory_space<vmem>>, vector<8x128xf32>,
    %c0_138 = arith.constant 0 : index
    %c0_139 = arith.constant 0 : index
    %438 = vector.load %arg13[%c0_138, %c0_139] : memref<8x128xf32, #tpu.memory_space<vmem>>, vector<8x128xf32>
    %439 = arith.addf %438, %434 : vector<8x128xf32>
    %c0_140 = arith.constant 0 : index
    %c0_141 = arith.constant 0 : index
    %440 = vector.load %arg13[%c0_140, %c0_141] : memref<8x128xf32, #tpu.memory_space<vmem>>, vector<8x128xf32>
    tpu.vector_store %arg13[%c0_140, %c0_141], %439 {strides = array<i32>} : memref<8x128xf32, #tpu.memory_space<vmem>>, vector<8x128xf32>,
    %c6_i32 = arith.constant 6 : i32
    %c8_i32_142 = arith.constant 8 : i32
    %441 = arith.muli %c6_i32, %c8_i32_142 : i32
    %442 = tpu.assume_multiple %441, 8 : i32
    %c7_i32_143 = arith.constant 7 : i32
    %443 = arith.subi %c7_i32_143, %c6_i32 : i32
    %c8_i32_144 = arith.constant 8 : i32
    %444 = arith.muli %443, %c8_i32_144 : i32
    %445 = tpu.assume_multiple %444, 8 : i32
    %446 = arith.truncf %408 : vector<8x128xf32> to vector<8x128xbf16>
    %cst_145 = arith.constant dense<0.000000e+00> : vector<8x512xf32>
    %447 = tpu.matmul %446, %12, %cst_145 {dimension_numbers = #tpu.dot_dimension_numbers<[1], [0], [0], [1], [0, 0, 1, 1], [], []>} : vector<8x128xbf16>, vector<128x512xbf16>, vector<8x512xf32> -> vector<8x512xf32>
    %448 = arith.truncf %434 : vector<8x128xf32> to vector<8x128xbf16>
    %cst_146 = arith.constant dense<0.000000e+00> : vector<8x512xf32>
    %449 = tpu.matmul %448, %13, %cst_146 {dimension_numbers = #tpu.dot_dimension_numbers<[1], [0], [0], [1], [0, 0, 1, 1], [], []>} : vector<8x128xbf16>, vector<128x512xbf16>, vector<8x512xf32> -> vector<8x512xf32>
    %450 = arith.index_cast %442 : i32 to index
    %c0_147 = arith.constant 0 : index
    %451 = vector.load %arg11[%450, %c0_147] : memref<64x1024xf32, #tpu.memory_space<vmem>>, vector<8x512xf32>
    %452 = arith.index_cast %445 : i32 to index
    %c512_148 = arith.constant 512 : index
    %453 = vector.load %arg11[%452, %c512_148] : memref<64x1024xf32, #tpu.memory_space<vmem>>, vector<8x512xf32>
    %454 = arith.addf %447, %451 : vector<8x512xf32>
    %455 = vector.extract_strided_slice %454 {offsets = [0, 0], sizes = [8, 128], strides = [1, 1]} : vector<8x512xf32> to vector<8x128xf32>
    %456 = arith.negf %455 : vector<8x128xf32>
    %457 = math.exp %456 : vector<8x128xf32>
    %cst_149 = arith.constant 1.000000e+00 : f32
    %458 = vector.broadcast %cst_149 : f32 to vector<8x128xf32>
    %459 = arith.addf %458, %457 : vector<8x128xf32>
    %460 = arith.divf %458, %459 : vector<8x128xf32>
    %461 = vector.extract_strided_slice %454 {offsets = [0, 128], sizes = [8, 128], strides = [1, 1]} : vector<8x512xf32> to vector<8x128xf32>
    %462 = arith.negf %461 : vector<8x128xf32>
    %463 = math.exp %462 : vector<8x128xf32>
    %cst_150 = arith.constant 1.000000e+00 : f32
    %464 = vector.broadcast %cst_150 : f32 to vector<8x128xf32>
    %465 = arith.addf %464, %463 : vector<8x128xf32>
    %466 = arith.divf %464, %465 : vector<8x128xf32>
    %467 = vector.extract_strided_slice %454 {offsets = [0, 256], sizes = [8, 128], strides = [1, 1]} : vector<8x512xf32> to vector<8x128xf32>
    %468 = math.tanh %467 : vector<8x128xf32>
    %469 = vector.extract_strided_slice %454 {offsets = [0, 384], sizes = [8, 128], strides = [1, 1]} : vector<8x512xf32> to vector<8x128xf32>
    %470 = arith.negf %469 : vector<8x128xf32>
    %471 = math.exp %470 : vector<8x128xf32>
    %cst_151 = arith.constant 1.000000e+00 : f32
    %472 = vector.broadcast %cst_151 : f32 to vector<8x128xf32>
    %473 = arith.addf %472, %471 : vector<8x128xf32>
    %474 = arith.divf %472, %473 : vector<8x128xf32>
    %475 = arith.mulf %466, %406 : vector<8x128xf32>
    %476 = arith.mulf %460, %468 : vector<8x128xf32>
    %477 = arith.addf %475, %476 : vector<8x128xf32>
    %478 = math.tanh %477 : vector<8x128xf32>
    %479 = arith.mulf %474, %478 : vector<8x128xf32>
    %480 = arith.addf %449, %453 : vector<8x512xf32>
    %481 = vector.extract_strided_slice %480 {offsets = [0, 0], sizes = [8, 128], strides = [1, 1]} : vector<8x512xf32> to vector<8x128xf32>
    %482 = arith.negf %481 : vector<8x128xf32>
    %483 = math.exp %482 : vector<8x128xf32>
    %cst_152 = arith.constant 1.000000e+00 : f32
    %484 = vector.broadcast %cst_152 : f32 to vector<8x128xf32>
    %485 = arith.addf %484, %483 : vector<8x128xf32>
    %486 = arith.divf %484, %485 : vector<8x128xf32>
    %487 = vector.extract_strided_slice %480 {offsets = [0, 128], sizes = [8, 128], strides = [1, 1]} : vector<8x512xf32> to vector<8x128xf32>
    %488 = arith.negf %487 : vector<8x128xf32>
    %489 = math.exp %488 : vector<8x128xf32>
    %cst_153 = arith.constant 1.000000e+00 : f32
    %490 = vector.broadcast %cst_153 : f32 to vector<8x128xf32>
    %491 = arith.addf %490, %489 : vector<8x128xf32>
    %492 = arith.divf %490, %491 : vector<8x128xf32>
    %493 = vector.extract_strided_slice %480 {offsets = [0, 256], sizes = [8, 128], strides = [1, 1]} : vector<8x512xf32> to vector<8x128xf32>
    %494 = math.tanh %493 : vector<8x128xf32>
    %495 = vector.extract_strided_slice %480 {offsets = [0, 384], sizes = [8, 128], strides = [1, 1]} : vector<8x512xf32> to vector<8x128xf32>
    %496 = arith.negf %495 : vector<8x128xf32>
    %497 = math.exp %496 : vector<8x128xf32>
    %cst_154 = arith.constant 1.000000e+00 : f32
    %498 = vector.broadcast %cst_154 : f32 to vector<8x128xf32>
    %499 = arith.addf %498, %497 : vector<8x128xf32>
    %500 = arith.divf %498, %499 : vector<8x128xf32>
    %501 = arith.mulf %492, %432 : vector<8x128xf32>
    %502 = arith.mulf %486, %494 : vector<8x128xf32>
    %503 = arith.addf %501, %502 : vector<8x128xf32>
    %504 = math.tanh %503 : vector<8x128xf32>
    %505 = arith.mulf %500, %504 : vector<8x128xf32>
    %c0_155 = arith.constant 0 : index
    %c0_156 = arith.constant 0 : index
    %506 = vector.load %arg12[%c0_155, %c0_156] : memref<8x128xf32, #tpu.memory_space<vmem>>, vector<8x128xf32>
    %507 = arith.addf %506, %479 : vector<8x128xf32>
    %c0_157 = arith.constant 0 : index
    %c0_158 = arith.constant 0 : index
    %508 = vector.load %arg12[%c0_157, %c0_158] : memref<8x128xf32, #tpu.memory_space<vmem>>, vector<8x128xf32>
    tpu.vector_store %arg12[%c0_157, %c0_158], %507 {strides = array<i32>} : memref<8x128xf32, #tpu.memory_space<vmem>>, vector<8x128xf32>,
    %c0_159 = arith.constant 0 : index
    %c0_160 = arith.constant 0 : index
    %509 = vector.load %arg13[%c0_159, %c0_160] : memref<8x128xf32, #tpu.memory_space<vmem>>, vector<8x128xf32>
    %510 = arith.addf %509, %505 : vector<8x128xf32>
    %c0_161 = arith.constant 0 : index
    %c0_162 = arith.constant 0 : index
    %511 = vector.load %arg13[%c0_161, %c0_162] : memref<8x128xf32, #tpu.memory_space<vmem>>, vector<8x128xf32>
    tpu.vector_store %arg13[%c0_161, %c0_162], %510 {strides = array<i32>} : memref<8x128xf32, #tpu.memory_space<vmem>>, vector<8x128xf32>,
    %c7_i32_163 = arith.constant 7 : i32
    %c8_i32_164 = arith.constant 8 : i32
    %512 = arith.muli %c7_i32_163, %c8_i32_164 : i32
    %513 = tpu.assume_multiple %512, 8 : i32
    %c7_i32_165 = arith.constant 7 : i32
    %514 = arith.subi %c7_i32_165, %c7_i32_163 : i32
    %c8_i32_166 = arith.constant 8 : i32
    %515 = arith.muli %514, %c8_i32_166 : i32
    %516 = tpu.assume_multiple %515, 8 : i32
    %517 = arith.truncf %479 : vector<8x128xf32> to vector<8x128xbf16>
    %cst_167 = arith.constant dense<0.000000e+00> : vector<8x512xf32>
    %518 = tpu.matmul %517, %12, %cst_167 {dimension_numbers = #tpu.dot_dimension_numbers<[1], [0], [0], [1], [0, 0, 1, 1], [], []>} : vector<8x128xbf16>, vector<128x512xbf16>, vector<8x512xf32> -> vector<8x512xf32>
    %519 = arith.truncf %505 : vector<8x128xf32> to vector<8x128xbf16>
    %cst_168 = arith.constant dense<0.000000e+00> : vector<8x512xf32>
    %520 = tpu.matmul %519, %13, %cst_168 {dimension_numbers = #tpu.dot_dimension_numbers<[1], [0], [0], [1], [0, 0, 1, 1], [], []>} : vector<8x128xbf16>, vector<128x512xbf16>, vector<8x512xf32> -> vector<8x512xf32>
    %521 = arith.index_cast %513 : i32 to index
    %c0_169 = arith.constant 0 : index
    %522 = vector.load %arg11[%521, %c0_169] : memref<64x1024xf32, #tpu.memory_space<vmem>>, vector<8x512xf32>
    %523 = arith.index_cast %516 : i32 to index
    %c512_170 = arith.constant 512 : index
    %524 = vector.load %arg11[%523, %c512_170] : memref<64x1024xf32, #tpu.memory_space<vmem>>, vector<8x512xf32>
    %525 = arith.addf %518, %522 : vector<8x512xf32>
    %526 = vector.extract_strided_slice %525 {offsets = [0, 0], sizes = [8, 128], strides = [1, 1]} : vector<8x512xf32> to vector<8x128xf32>
    %527 = arith.negf %526 : vector<8x128xf32>
    %528 = math.exp %527 : vector<8x128xf32>
    %cst_171 = arith.constant 1.000000e+00 : f32
    %529 = vector.broadcast %cst_171 : f32 to vector<8x128xf32>
    %530 = arith.addf %529, %528 : vector<8x128xf32>
    %531 = arith.divf %529, %530 : vector<8x128xf32>
    %532 = vector.extract_strided_slice %525 {offsets = [0, 128], sizes = [8, 128], strides = [1, 1]} : vector<8x512xf32> to vector<8x128xf32>
    %533 = arith.negf %532 : vector<8x128xf32>
    %534 = math.exp %533 : vector<8x128xf32>
    %cst_172 = arith.constant 1.000000e+00 : f32
    %535 = vector.broadcast %cst_172 : f32 to vector<8x128xf32>
    %536 = arith.addf %535, %534 : vector<8x128xf32>
    %537 = arith.divf %535, %536 : vector<8x128xf32>
    %538 = vector.extract_strided_slice %525 {offsets = [0, 256], sizes = [8, 128], strides = [1, 1]} : vector<8x512xf32> to vector<8x128xf32>
    %539 = math.tanh %538 : vector<8x128xf32>
    %540 = vector.extract_strided_slice %525 {offsets = [0, 384], sizes = [8, 128], strides = [1, 1]} : vector<8x512xf32> to vector<8x128xf32>
    %541 = arith.negf %540 : vector<8x128xf32>
    %542 = math.exp %541 : vector<8x128xf32>
    %cst_173 = arith.constant 1.000000e+00 : f32
    %543 = vector.broadcast %cst_173 : f32 to vector<8x128xf32>
    %544 = arith.addf %543, %542 : vector<8x128xf32>
    %545 = arith.divf %543, %544 : vector<8x128xf32>
    %546 = arith.mulf %537, %477 : vector<8x128xf32>
    %547 = arith.mulf %531, %539 : vector<8x128xf32>
    %548 = arith.addf %546, %547 : vector<8x128xf32>
    %549 = math.tanh %548 : vector<8x128xf32>
    %550 = arith.mulf %545, %549 : vector<8x128xf32>
    %551 = arith.addf %520, %524 : vector<8x512xf32>
    %552 = vector.extract_strided_slice %551 {offsets = [0, 0], sizes = [8, 128], strides = [1, 1]} : vector<8x512xf32> to vector<8x128xf32>
    %553 = arith.negf %552 : vector<8x128xf32>
    %554 = math.exp %553 : vector<8x128xf32>
    %cst_174 = arith.constant 1.000000e+00 : f32
    %555 = vector.broadcast %cst_174 : f32 to vector<8x128xf32>
    %556 = arith.addf %555, %554 : vector<8x128xf32>
    %557 = arith.divf %555, %556 : vector<8x128xf32>
    %558 = vector.extract_strided_slice %551 {offsets = [0, 128], sizes = [8, 128], strides = [1, 1]} : vector<8x512xf32> to vector<8x128xf32>
    %559 = arith.negf %558 : vector<8x128xf32>
    %560 = math.exp %559 : vector<8x128xf32>
    %cst_175 = arith.constant 1.000000e+00 : f32
    %561 = vector.broadcast %cst_175 : f32 to vector<8x128xf32>
    %562 = arith.addf %561, %560 : vector<8x128xf32>
    %563 = arith.divf %561, %562 : vector<8x128xf32>
    %564 = vector.extract_strided_slice %551 {offsets = [0, 256], sizes = [8, 128], strides = [1, 1]} : vector<8x512xf32> to vector<8x128xf32>
    %565 = math.tanh %564 : vector<8x128xf32>
    %566 = vector.extract_strided_slice %551 {offsets = [0, 384], sizes = [8, 128], strides = [1, 1]} : vector<8x512xf32> to vector<8x128xf32>
    %567 = arith.negf %566 : vector<8x128xf32>
    %568 = math.exp %567 : vector<8x128xf32>
    %cst_176 = arith.constant 1.000000e+00 : f32
    %569 = vector.broadcast %cst_176 : f32 to vector<8x128xf32>
    %570 = arith.addf %569, %568 : vector<8x128xf32>
    %571 = arith.divf %569, %570 : vector<8x128xf32>
    %572 = arith.mulf %563, %503 : vector<8x128xf32>
    %573 = arith.mulf %557, %565 : vector<8x128xf32>
    %574 = arith.addf %572, %573 : vector<8x128xf32>
    %575 = math.tanh %574 : vector<8x128xf32>
    %576 = arith.mulf %571, %575 : vector<8x128xf32>
    %c0_177 = arith.constant 0 : index
    %c0_178 = arith.constant 0 : index
    %577 = vector.load %arg12[%c0_177, %c0_178] : memref<8x128xf32, #tpu.memory_space<vmem>>, vector<8x128xf32>
    %578 = arith.addf %577, %550 : vector<8x128xf32>
    %c0_179 = arith.constant 0 : index
    %c0_180 = arith.constant 0 : index
    %579 = vector.load %arg12[%c0_179, %c0_180] : memref<8x128xf32, #tpu.memory_space<vmem>>, vector<8x128xf32>
    tpu.vector_store %arg12[%c0_179, %c0_180], %578 {strides = array<i32>} : memref<8x128xf32, #tpu.memory_space<vmem>>, vector<8x128xf32>,
    %c0_181 = arith.constant 0 : index
    %c0_182 = arith.constant 0 : index
    %580 = vector.load %arg13[%c0_181, %c0_182] : memref<8x128xf32, #tpu.memory_space<vmem>>, vector<8x128xf32>
    %581 = arith.addf %580, %576 : vector<8x128xf32>
    %c0_183 = arith.constant 0 : index
    %c0_184 = arith.constant 0 : index
    %582 = vector.load %arg13[%c0_183, %c0_184] : memref<8x128xf32, #tpu.memory_space<vmem>>, vector<8x128xf32>
    tpu.vector_store %arg13[%c0_183, %c0_184], %581 {strides = array<i32>} : memref<8x128xf32, #tpu.memory_space<vmem>>, vector<8x128xf32>,
    %c8_i32_185 = arith.constant 8 : i32
    %c0_186 = arith.constant 0 : index
    %c0_187 = arith.constant 0 : index
    %583 = vector.load %arg12[%c0_186, %c0_187] : memref<8x128xf32, #tpu.memory_space<vmem>>, vector<8x128xf32>
    %c0_188 = arith.constant 0 : index
    %c0_189 = arith.constant 0 : index
    %584 = vector.load %arg13[%c0_188, %c0_189] : memref<8x128xf32, #tpu.memory_space<vmem>>, vector<8x128xf32>
    %585 = tpu.concatenate %583, %584 in 1 : vector<8x128xf32>, vector<8x128xf32> -> vector<8x256xf32>
    %cst_190 = arith.constant 1.250000e-01 : f32
    %586 = vector.broadcast %cst_190 : f32 to vector<8x256xf32>
    %587 = arith.mulf %585, %586 : vector<8x256xf32>
    %588 = arith.truncf %587 : vector<8x256xf32> to vector<8x256xbf16>
    %c0_191 = arith.constant 0 : index
    %c0_192 = arith.constant 0 : index
    %589 = vector.load %arg6[%c0_191, %c0_192] : memref<256x512xbf16, #tpu.memory_space<vmem>>, vector<256x512xbf16>
    %cst_193 = arith.constant dense<0.000000e+00> : vector<8x512xf32>
    %590 = tpu.matmul %588, %589, %cst_193 {dimension_numbers = #tpu.dot_dimension_numbers<[1], [0], [0], [1], [0, 0, 1, 1], [], []>} : vector<8x256xbf16>, vector<256x512xbf16>, vector<8x512xf32> -> vector<8x512xf32>
    %c0_194 = arith.constant 0 : index
    %c0_195 = arith.constant 0 : index
    %591 = vector.load %arg7[%c0_194, %c0_195] : memref<1x512xf32, #tpu.memory_space<vmem>>, vector<1x512xf32>
    %592 = vector.broadcast %591 : vector<1x512xf32> to vector<8x512xf32>
    %593 = arith.addf %590, %592 : vector<8x512xf32>
    %cst_196 = arith.constant 0.000000e+00 : f32
    %594 = vector.broadcast %cst_196 : f32 to vector<8x512xf32>
    %595 = arith.maximumf %593, %594 : vector<8x512xf32>
    %596 = arith.truncf %595 : vector<8x512xf32> to vector<8x512xbf16>
    %c0_197 = arith.constant 0 : index
    %c0_198 = arith.constant 0 : index
    %597 = vector.load %arg8[%c0_197, %c0_198] : memref<512x128xbf16, #tpu.memory_space<vmem>>, vector<512x128xbf16>
    %cst_199 = arith.constant dense<0.000000e+00> : vector<8x128xf32>
    %598 = tpu.matmul %596, %597, %cst_199 {dimension_numbers = #tpu.dot_dimension_numbers<[1], [0], [0], [1], [0, 0, 1, 1], [], []>} : vector<8x512xbf16>, vector<512x128xbf16>, vector<8x128xf32> -> vector<8x128xf32>
    %c0_200 = arith.constant 0 : index
    %c0_201 = arith.constant 0 : index
    %599 = vector.load %arg9[%c0_200, %c0_201] : memref<1x128xf32, #tpu.memory_space<vmem>>, vector<1x128xf32>
    %600 = vector.broadcast %599 : vector<1x128xf32> to vector<8x128xf32>
    %601 = arith.addf %598, %600 : vector<8x128xf32>
    %c0_202 = arith.constant 0 : index
    %c0_203 = arith.constant 0 : index
    %602 = vector.load %arg10[%c0_202, %c0_203] : memref<8x128xf32, #tpu.memory_space<vmem>>, vector<8x128xf32>
    tpu.vector_store %arg10[%c0_202, %c0_203], %601 {strides = array<i32>} : memref<8x128xf32, #tpu.memory_space<vmem>>, vector<8x128xf32>,
    return
  }
  func.func @transform_0(%arg0: i32) -> (i32, i32, i32) {
    %c0_i32 = arith.constant 0 : i32
    %c0_i32_0 = arith.constant 0 : i32
    %c0_i32_1 = arith.constant 0 : i32
    return %arg0, %c0_i32, %c0_i32_0 : i32, i32, i32
  }
  func.func @transform_1(%arg0: i32) -> (i32, i32) {
    %c0_i32 = arith.constant 0 : i32
    %c0_i32_0 = arith.constant 0 : i32
    %c0_i32_1 = arith.constant 0 : i32
    return %c0_i32, %c0_i32_0 : i32, i32
  }
  func.func @transform_2(%arg0: i32) -> (i32, i32) {
    %c0_i32 = arith.constant 0 : i32
    %c0_i32_0 = arith.constant 0 : i32
    %c0_i32_1 = arith.constant 0 : i32
    return %c0_i32, %c0_i32_0 : i32, i32
  }
  func.func @transform_3(%arg0: i32) -> (i32, i32) {
    %c0_i32 = arith.constant 0 : i32
    %c0_i32_0 = arith.constant 0 : i32
    %c0_i32_1 = arith.constant 0 : i32
    return %c0_i32, %c0_i32_0 : i32, i32
  }
  func.func @transform_4(%arg0: i32) -> (i32, i32) {
    %c0_i32 = arith.constant 0 : i32
    %c0_i32_0 = arith.constant 0 : i32
    %c0_i32_1 = arith.constant 0 : i32
    return %c0_i32, %c0_i32_0 : i32, i32
  }
  func.func @transform_5(%arg0: i32) -> (i32, i32) {
    %c0_i32 = arith.constant 0 : i32
    %c0_i32_0 = arith.constant 0 : i32
    %c0_i32_1 = arith.constant 0 : i32
    return %c0_i32, %c0_i32_0 : i32, i32
  }
  func.func @transform_6(%arg0: i32) -> (i32, i32) {
    %c0_i32 = arith.constant 0 : i32
    %c0_i32_0 = arith.constant 0 : i32
    %c0_i32_1 = arith.constant 0 : i32
    return %c0_i32, %c0_i32_0 : i32, i32
  }
  func.func @transform_7(%arg0: i32) -> (i32, i32) {
    %c0_i32 = arith.constant 0 : i32
    %c0_i32_0 = arith.constant 0 : i32
    %c0_i32_1 = arith.constant 0 : i32
    return %c0_i32, %c0_i32_0 : i32, i32
  }
  func.func @transform_8(%arg0: i32) -> (i32, i32) {
    %c0_i32 = arith.constant 0 : i32
    %c0_i32_0 = arith.constant 0 : i32
    %c0_i32_1 = arith.constant 0 : i32
    return %c0_i32, %c0_i32_0 : i32, i32
  }
  func.func @transform_9(%arg0: i32) -> (i32, i32) {
    %c0_i32 = arith.constant 0 : i32
    %c0_i32_0 = arith.constant 0 : i32
    return %arg0, %c0_i32 : i32, i32
  }
}

</mosaic_0001>

<llo_original>
// kernel: tpu_custom_call.1
$region0: #{tpu_custom_call.1}
  #allocation0 [shape = 'u32[]', space=smem, size = 0x4, offset = 0x4, fixed_abs, tag = 'smem constant byte address 0x4 - core index']
  #allocation1 [shape = 'u32[144,128]{1,0:T(1,128)}', space=vmem, size = 0x12000, scoped, tag = 'internal scratch']
  #allocation2 [shape = 'f32[64,1024]{1,0:T(8,128)}', space=vmem, size = 0x40000, scoped, tag = 'scratch operand']
  #allocation3 [shape = 'f32[8,128]{1,0:T(8,128)}', space=vmem, size = 0x1000, scoped, tag = 'scratch operand']
  #allocation4 [shape = 'f32[8,128]{1,0:T(8,128)}', space=vmem, size = 0x1000, scoped, tag = 'scratch operand']
  %s0 = inlined_call_operand.vmem [shape: bf16[1,64,50], index: 0, kind: input, shape index: {}]
  %s1 = inlined_call_operand.hbm [shape: bf16[50,1024], index: 1, kind: input, shape index: {}]
  %s2 = inlined_call_operand.vmem [shape: f32[1,1024], index: 2, kind: input, shape index: {}]
  %s3 = inlined_call_operand.hbm [shape: bf16[128,512], index: 3, kind: input, shape index: {}]
  %s4 = inlined_call_operand.hbm [shape: bf16[128,512], index: 4, kind: input, shape index: {}]
  %s5 = inlined_call_operand.hbm [shape: bf16[256,512], index: 5, kind: input, shape index: {}]
  %s6 = inlined_call_operand.vmem [shape: f32[1,512], index: 6, kind: input, shape index: {}]
  %s7 = inlined_call_operand.hbm [shape: bf16[512,128], index: 7, kind: input, shape index: {}]
  %s8 = inlined_call_operand.vmem [shape: f32[1,128], index: 8, kind: input, shape index: {}]
  %s9 = inlined_call_operand.hbm [shape: f32[8,128], index: 9, kind: output, shape index: {}]
  %s10 = sld [smem:[#allocation0]]
  $region66: #{tpu_custom_call.1} parent=0
    _
  %s12 = ssub.s32 1, %s10
  %s13 = scalar_select 0, %s12, %s10
  $region1: #{tpu_custom_call.1} parent=0
    #allocation5 [shape = 'u8[114688]{0}', space=vmem, size = 0x1c000, scoped, tag = 'input window, operand 1, single buffered']
    #allocation6 [shape = 's32[1]{0}', space=sflag, size = 0x4, scoped, tag = 'scoped memory for tpu_custom_call.1']
    #allocation7 [shape = 's32[1]{0}', space=sflag, size = 0x4, scoped, tag = 'scoped memory for tpu_custom_call.1']
    #allocation8 [shape = 'u8[131072]{0}', space=vmem, size = 0x20000, scoped, tag = 'input window, operand 3, single buffered']
    #allocation9 [shape = 's32[1]{0}', space=sflag, size = 0x4, scoped, tag = 'scoped memory for tpu_custom_call.1']
    #allocation10 [shape = 'u8[131072]{0}', space=vmem, size = 0x20000, scoped, tag = 'input window, operand 4, single buffered']
    #allocation11 [shape = 'u8[262144]{0}', space=vmem, size = 0x40000, scoped, tag = 'input window, operand 5, single buffered']
    #allocation12 [shape = 's32[1]{0}', space=sflag, size = 0x4, scoped, tag = 'scoped memory for tpu_custom_call.1']
    #allocation13 [shape = 'u8[131072]{0}', space=vmem, size = 0x20000, scoped, tag = 'input window, operand 7, single buffered']
    #allocation14 [shape = 'u8[4096]{0}', space=vmem, size = 0x1000, scoped, tag = 'output window, operand 0, single buffered']
    %14 = vsyncpa [#allocation6], 0
    %15 = vsyncpa [#allocation9], 0
    %16 = vsyncpa [#allocation12], 0
    %17 = vsyncpa [#allocation7], 0
    // Predicated region
    $region2: #{tpu_custom_call.1} parent=1 // pred_check
      _
    $region3: #{tpu_custom_call.1} parent=1 // pred_check_branch
      %19 = sbr.rel (0) target = $region5
    $region4: #{tpu_custom_call.1} parent=1 // pred_region
      _
    $region5: #{tpu_custom_call.1} parent=1 // pred_fallthru
      _
    // Predicated region
    $region6: #{tpu_custom_call.1} parent=1 // pred_check
      _
    $region7: #{tpu_custom_call.1} parent=1 // pred_check_branch
      %21 = sbr.rel (0) target = $region9
    $region8: #{tpu_custom_call.1} parent=1 // pred_region
      %s23 = ssub.s32 3584, 3584
      %24 = vsyncadd [#allocation6], %s23
      %s25 = sshll.u32 [#allocation5], 4
      %s26 = int_to_ptr.vmem [resolvable:$true] %s25
      %31 = dma.hbm_to_vmem [thread:$0]  %s1, 3584, %s26, [#allocation6], 512, 512, 32
    $region9: #{tpu_custom_call.1} parent=1 // pred_fallthru
      _
    // Predicated region
    $region10: #{tpu_custom_call.1} parent=1 // pred_check
      _
    $region11: #{tpu_custom_call.1} parent=1 // pred_check_branch
      %33 = sbr.rel (0) target = $region13
    $region12: #{tpu_custom_call.1} parent=1 // pred_region
      _
    $region13: #{tpu_custom_call.1} parent=1 // pred_fallthru
      _
    // Predicated region
    $region14: #{tpu_custom_call.1} parent=1 // pred_check
      _
    $region15: #{tpu_custom_call.1} parent=1 // pred_check_branch
      %35 = sbr.rel (0) target = $region17
    $region16: #{tpu_custom_call.1} parent=1 // pred_region
      %s37 = ssub.s32 4096, 4096
      %38 = vsyncadd [#allocation9], %s37
      %s39 = sshll.u32 [#allocation8], 4
      %s40 = int_to_ptr.vmem [resolvable:$true] %s39
      %45 = dma.hbm_to_vmem [thread:$0]  %s3, 4096, %s40, [#allocation9], 256, 256, 16
    $region17: #{tpu_custom_call.1} parent=1 // pred_fallthru
      _
    // Predicated region
    $region18: #{tpu_custom_call.1} parent=1 // pred_check
      _
    $region19: #{tpu_custom_call.1} parent=1 // pred_check_branch
      %47 = sbr.rel (0) target = $region21
    $region20: #{tpu_custom_call.1} parent=1 // pred_region
      %s49 = ssub.s32 4096, 4096
      %50 = vsyncadd [#allocation9], %s49
      %s51 = sshll.u32 [#allocation10], 4
      %s52 = int_to_ptr.vmem [resolvable:$true] %s51
      %57 = dma.hbm_to_vmem [thread:$0]  %s4, 4096, %s52, [#allocation9], 256, 256, 16
    $region21: #{tpu_custom_call.1} parent=1 // pred_fallthru
      _
    // Predicated region
    $region22: #{tpu_custom_call.1} parent=1 // pred_check
      _
    $region23: #{tpu_custom_call.1} parent=1 // pred_check_branch
      %59 = sbr.rel (0) target = $region25
    $region24: #{tpu_custom_call.1} parent=1 // pred_region
      %s61 = ssub.s32 8192, 8192
      %62 = vsyncadd [#allocation12], %s61
      %s63 = sshll.u32 [#allocation11], 4
      %s64 = int_to_ptr.vmem [resolvable:$true] %s63
      %69 = dma.hbm_to_vmem [thread:$0]  %s5, 8192, %s64, [#allocation12], 256, 256, 16
    $region25: #{tpu_custom_call.1} parent=1 // pred_fallthru
      _
    // Predicated region
    $region26: #{tpu_custom_call.1} parent=1 // pred_check
      _
    $region27: #{tpu_custom_call.1} parent=1 // pred_check_branch
      %71 = sbr.rel (0) target = $region29
    $region28: #{tpu_custom_call.1} parent=1 // pred_region
      _
    $region29: #{tpu_custom_call.1} parent=1 // pred_fallthru
      _
    // Predicated region
    $region30: #{tpu_custom_call.1} parent=1 // pred_check
      _
    $region31: #{tpu_custom_call.1} parent=1 // pred_check_branch
      %73 = sbr.rel (0) target = $region33
    $region32: #{tpu_custom_call.1} parent=1 // pred_region
      %s75 = ssub.s32 4096, 4096
      %76 = vsyncadd [#allocation12], %s75
      %s77 = sshll.u32 [#allocation13], 4
      %s78 = int_to_ptr.vmem [resolvable:$true] %s77
      %83 = dma.hbm_to_vmem [thread:$0]  %s7, 4096, %s78, [#allocation12], 64, 64, 4
    $region33: #{tpu_custom_call.1} parent=1 // pred_fallthru
      _
    // Predicated region
    $region34: #{tpu_custom_call.1} parent=1 // pred_check
      _
    $region35: #{tpu_custom_call.1} parent=1 // pred_check_branch
      %85 = sbr.rel (0) target = $region37
    $region36: #{tpu_custom_call.1} parent=1 // pred_region
      _
    $region37: #{tpu_custom_call.1} parent=1 // pred_fallthru
      _
    // Predicated region
    $region38: #{tpu_custom_call.1} parent=1 // pred_check
      _
    $region39: #{tpu_custom_call.1} parent=1 // pred_check_branch
      %87 = sbr.rel (0) target = $region41
    $region40: #{tpu_custom_call.1} parent=1 // pred_region
      %88 = dma.done [#allocation6], 3584
    $region41: #{tpu_custom_call.1} parent=1 // pred_fallthru
      _
    // Predicated region
    $region42: #{tpu_custom_call.1} parent=1 // pred_check
      _
    $region43: #{tpu_custom_call.1} parent=1 // pred_check_branch
      %90 = sbr.rel (0) target = $region45
    $region44: #{tpu_custom_call.1} parent=1 // pred_region
      %91 = dma.done [#allocation9], 4096
    $region45: #{tpu_custom_call.1} parent=1 // pred_fallthru
      _
    // Predicated region
    $region46: #{tpu_custom_call.1} parent=1 // pred_check
      _
    $region47: #{tpu_custom_call.1} parent=1 // pred_check_branch
      %93 = sbr.rel (0) target = $region49
    $region48: #{tpu_custom_call.1} parent=1 // pred_region
      %94 = dma.done [#allocation9], 4096
    $region49: #{tpu_custom_call.1} parent=1 // pred_fallthru
      _
    // Predicated region
    $region50: #{tpu_custom_call.1} parent=1 // pred_check
      _
    $region51: #{tpu_custom_call.1} parent=1 // pred_check_branch
      %96 = sbr.rel (0) target = $region53
    $region52: #{tpu_custom_call.1} parent=1 // pred_region
      %97 = dma.done [#allocation12], 8192
    $region53: #{tpu_custom_call.1} parent=1 // pred_fallthru
      _
    // Predicated region
    $region54: #{tpu_custom_call.1} parent=1 // pred_check
      _
    $region55: #{tpu_custom_call.1} parent=1 // pred_check_branch
      %99 = sbr.rel (0) target = $region57
    $region56: #{tpu_custom_call.1} parent=1 // pred_region
      %100 = dma.done [#allocation12], 4096
    $region57: #{tpu_custom_call.1} parent=1 // pred_fallthru
      _
    %v102 = vld [vmem:[%s0] sm:$0xf]
    %v103 = vld [vmem:[%s0 + $0x4] sm:$0xf]
    %v104 = vld [vmem:[%s0 + $0x8] sm:$0xf]
    %v105 = vld [vmem:[%s0 + $0xc] sm:$0xf]
    %v106 = vld [vmem:[%s0 + $0x10] sm:$0xf]
    %v107 = vld [vmem:[%s0 + $0x14] sm:$0xf]
    %v108 = vld [vmem:[%s0 + $0x18] sm:$0xf]
    %v109 = vld [vmem:[%s0 + $0x1c] sm:$0xf]
    %v110 = vld [vmem:[#allocation5] sm:$0xff]
    %v111 = vld [vmem:[#allocation5 + $0x8] sm:$0xff]
    %v112 = vld [vmem:[#allocation5 + $0x10] sm:$0xff]
    %v113 = vld [vmem:[#allocation5 + $0x18] sm:$0xff]
    %v114 = vld [vmem:[#allocation5 + $0x20] sm:$0xff]
    %v115 = vld [vmem:[#allocation5 + $0x28] sm:$0xff]
    %v116 = vld [vmem:[#allocation5 + $0x30] sm:$0xff]
    %v117 = vld [vmem:[#allocation5 + $0x38] sm:$0xff]
    %v118 = vld [vmem:[#allocation5 + $0x40] sm:$0xff]
    %v119 = vld [vmem:[#allocation5 + $0x48] sm:$0xff]
    %v120 = vld [vmem:[#allocation5 + $0x50] sm:$0xff]
    %v121 = vld [vmem:[#allocation5 + $0x58] sm:$0xff]
    %v122 = vld [vmem:[#allocation5 + $0x60] sm:$0xff]
    %v123 = vld [vmem:[#allocation5 + $0x68] sm:$0xff]
    %v124 = vld [vmem:[#allocation5 + $0x70] sm:$0xff]
    %v125 = vld [vmem:[#allocation5 + $0x78] sm:$0xff]
    %v126 = vld [vmem:[#allocation5 + $0x80] sm:$0xff]
    %v127 = vld [vmem:[#allocation5 + $0x88] sm:$0xff]
    %v128 = vld [vmem:[#allocation5 + $0x90] sm:$0xff]
    %v129 = vld [vmem:[#allocation5 + $0x98] sm:$0xff]
    %v130 = vld [vmem:[#allocation5 + $0xa0] sm:$0xff]
    %v131 = vld [vmem:[#allocation5 + $0xa8] sm:$0xff]
    %v132 = vld [vmem:[#allocation5 + $0xb0] sm:$0xff]
    %v133 = vld [vmem:[#allocation5 + $0xb8] sm:$0xff]
    %v134 = vld [vmem:[#allocation5 + $0xc0] sm:$0x11]
    %v135 = vld [vmem:[#allocation5 + $0xc8] sm:$0x11]
    %v136 = vld [vmem:[#allocation5 + $0xd0] sm:$0x11]
    %v137 = vld [vmem:[#allocation5 + $0xd8] sm:$0x11]
    %v138 = vld [vmem:[%s2] sm:$0xff]
    %v140 = vlaneseq
    %v141 = vshrl.u32 %v140, 7
    %v142 = vsub.s32 0, %v141
    %v143 = vrot.slane %v138, %v142
    %v144 = vlaneseq
    %v145 = vshrl.u32 %v144, 7
    %v146 = vsub.s32 1, %v145
    %v147 = vrot.slane %v138, %v146
    %v148 = vlaneseq
    %v149 = vshrl.u32 %v148, 7
    %v150 = vsub.s32 2, %v149
    %v151 = vrot.slane %v138, %v150
    %v152 = vlaneseq
    %v153 = vshrl.u32 %v152, 7
    %v154 = vsub.s32 3, %v153
    %v155 = vrot.slane %v138, %v154
    %v156 = vlaneseq
    %v157 = vshrl.u32 %v156, 7
    %v158 = vsub.s32 4, %v157
    %v159 = vrot.slane %v138, %v158
    %v160 = vlaneseq
    %v161 = vshrl.u32 %v160, 7
    %v162 = vsub.s32 5, %v161
    %v163 = vrot.slane %v138, %v162
    %v164 = vlaneseq
    %v165 = vshrl.u32 %v164, 7
    %v166 = vsub.s32 6, %v165
    %v167 = vrot.slane %v138, %v166
    %v168 = vlaneseq
    %v169 = vshrl.u32 %v168, 7
    %v170 = vsub.s32 7, %v169
    %v171 = vrot.slane %v138, %v170
    %v188 = vunpack.c.l.b16 %v102
    %v189 = vunpack.c.l.b16 %v103
    %v190 = vunpack.c.l.b16 %v104
    %v191 = vunpack.c.l.b16 %v105
    %v192 = vunpack.c.l.b16 %v106
    %v193 = vunpack.c.l.b16 %v107
    %v194 = vunpack.c.l.b16 %v108
    %v195 = vunpack.c.l.b16 %v109
    %v196 = vpack.c.b16 %v189, %v188
    %v197 = vpack.c.b16 %v191, %v190
    %v198 = vpack.c.b16 %v193, %v192
    %v199 = vpack.c.b16 %v195, %v194
    %v228 = vunpack.c.l.b16 %v110
    %v229 = vunpack.c.h.b16 %v110
    %v230 = vunpack.c.l.b16 %v111
    %v231 = vunpack.c.h.b16 %v111
    %v232 = vunpack.c.l.b16 %v112
    %v233 = vunpack.c.h.b16 %v112
    %v234 = vunpack.c.l.b16 %v113
    %v235 = vunpack.c.h.b16 %v113
    %v236 = vunpack.c.l.b16 %v114
    %v237 = vunpack.c.h.b16 %v114
    %v238 = vunpack.c.l.b16 %v115
    %v239 = vunpack.c.h.b16 %v115
    %v240 = vunpack.c.l.b16 %v116
    %v241 = vunpack.c.h.b16 %v116
    %v242 = vunpack.c.l.b16 %v117
    %v243 = vunpack.c.h.b16 %v117
    %v244 = vunpack.c.l.b16 %v118
    %v245 = vunpack.c.h.b16 %v118
    %v246 = vunpack.c.l.b16 %v119
    %v247 = vunpack.c.h.b16 %v119
    %v248 = vunpack.c.l.b16 %v120
    %v249 = vunpack.c.h.b16 %v120
    %v250 = vunpack.c.l.b16 %v121
    %v251 = vunpack.c.h.b16 %v121
    %v252 = vunpack.c.l.b16 %v122
    %v253 = vunpack.c.h.b16 %v122
    %v254 = vunpack.c.l.b16 %v123
    %v255 = vunpack.c.h.b16 %v123
    %v256 = vunpack.c.l.b16 %v124
    %v257 = vunpack.c.h.b16 %v124
    %v258 = vunpack.c.l.b16 %v125
    %v259 = vunpack.c.h.b16 %v125
    %v260 = vunpack.c.l.b16 %v126
    %v261 = vunpack.c.h.b16 %v126
    %v262 = vunpack.c.l.b16 %v127
    %v263 = vunpack.c.h.b16 %v127
    %v264 = vunpack.c.l.b16 %v128
    %v265 = vunpack.c.h.b16 %v128
    %v266 = vunpack.c.l.b16 %v129
    %v267 = vunpack.c.h.b16 %v129
    %v268 = vunpack.c.l.b16 %v130
    %v269 = vunpack.c.h.b16 %v130
    %v270 = vunpack.c.l.b16 %v131
    %v271 = vunpack.c.h.b16 %v131
    %v272 = vunpack.c.l.b16 %v132
    %v273 = vunpack.c.h.b16 %v132
    %v274 = vunpack.c.l.b16 %v133
    %v275 = vunpack.c.h.b16 %v133
    %v276 = vunpack.c.l.b16 %v134
    %v277 = vunpack.c.h.b16 %v134
    %v278 = vunpack.c.l.b16 %v135
    %v279 = vunpack.c.h.b16 %v135
    %v280 = vunpack.c.l.b16 %v136
    %v281 = vunpack.c.h.b16 %v136
    %v282 = vunpack.c.l.b16 %v137
    %v283 = vunpack.c.h.b16 %v137
    %v284 = vpack.c.b16 %v236, %v228
    %v285 = vpack.c.b16 %v237, %v229
    %v286 = vpack.c.b16 %v238, %v230
    %v287 = vpack.c.b16 %v239, %v231
    %v288 = vpack.c.b16 %v240, %v232
    %v289 = vpack.c.b16 %v241, %v233
    %v290 = vpack.c.b16 %v242, %v234
    %v291 = vpack.c.b16 %v243, %v235
    %v292 = vpack.c.b16 %v252, %v244
    %v293 = vpack.c.b16 %v253, %v245
    %v294 = vpack.c.b16 %v254, %v246
    %v295 = vpack.c.b16 %v255, %v247
    %v296 = vpack.c.b16 %v256, %v248
    %v297 = vpack.c.b16 %v257, %v249
    %v298 = vpack.c.b16 %v258, %v250
    %v299 = vpack.c.b16 %v259, %v251
    %v300 = vpack.c.b16 %v268, %v260
    %v301 = vpack.c.b16 %v269, %v261
    %v302 = vpack.c.b16 %v270, %v262
    %v303 = vpack.c.b16 %v271, %v263
    %v304 = vpack.c.b16 %v272, %v264
    %v305 = vpack.c.b16 %v273, %v265
    %v306 = vpack.c.b16 %v274, %v266
    %v307 = vpack.c.b16 %v275, %v267
    %v308 = vpack.c.b16 %v276, %v276
    %v309 = vpack.c.b16 %v277, %v277
    %v310 = vpack.c.b16 %v278, %v278
    %v311 = vpack.c.b16 %v279, %v279
    %v312 = vpack.c.b16 %v280, %v280
    %v313 = vpack.c.b16 %v281, %v281
    %v314 = vpack.c.b16 %v282, %v282
    %v315 = vpack.c.b16 %v283, %v283
    %vm340 = vcmask 408576
    %v342 = vsel %vm340, %v196, 0
    %v345 = vsel %vm340, %v197, 0
    %v348 = vsel %vm340, %v198, 0
    %v351 = vsel %vm340, %v199, 0
    %vm353 = vcmask 1040384
    %v355 = vsel %vm353, %v308, 0
    %v358 = vsel %vm353, %v309, 0
    %v361 = vsel %vm353, %v310, 0
    %v364 = vsel %vm353, %v311, 0
    %v367 = vsel %vm353, %v312, 0
    %v370 = vsel %vm353, %v313, 0
    %v373 = vsel %vm353, %v314, 0
    %v376 = vsel %vm353, %v315, 0
    %378 = vmatprep.subr.bf16.mxu0 %v285
    %379 = vmatpush1.bf16.msra.mxu0 %v284
    %380 = vmatprep.subr.bf16.mxu0 %v293
    %381 = vmatpush1.bf16.msra.mxu0 %v292
    %382 = vmatprep.subr.bf16.mxu0 %v301
    %383 = vmatpush1.bf16.msra.mxu0 %v300
    %384 = vmatprep.subr.bf16.mxu0 %v358
    %385 = vmatpush1.bf16.msra.mxu0 %v355
    %386 = vmatprep.subr.bf16.mxu0 0
    %387 = vmatpush1.bf16.msra.mxu0 0
    %388 = vmatprep.subr.bf16.mxu0 0
    %389 = vmatpush1.bf16.msra.mxu0 0
    %390 = vmatprep.subr.bf16.mxu0 0
    %391 = vmatpush1.bf16.msra.mxu0 0
    %392 = vmatprep.subr.bf16.mxu0 0
    %393 = vmatpush1.bf16.msra.mxu0 0
    %394 = vmatprep.subr.bf16.mxu0 0
    %395 = vmatpush1.bf16.msra.mxu0 0
    %396 = vmatprep.subr.bf16.mxu0 0
    %397 = vmatpush1.bf16.msra.mxu0 0
    %398 = vmatprep.subr.bf16.mxu0 0
    %399 = vmatpush1.bf16.msra.mxu0 0
    %400 = vmatprep.subr.bf16.mxu0 0
    %401 = vmatpush1.bf16.msra.mxu0 0
    %402 = vmatprep.subr.bf16.mxu0 0
    %403 = vmatpush1.bf16.msra.mxu0 0
    %404 = vmatprep.subr.bf16.mxu0 0
    %405 = vmatpush1.bf16.msra.mxu0 0
    %406 = vmatprep.subr.bf16.mxu0 0
    %407 = vmatpush1.bf16.msra.mxu0 0
    %408 = vmatprep.subr.bf16.mxu0 0
    %409 = vmatpush1.bf16.msra.mxu0 0
    %410 = vmatprep.mubr.bf16.mxu0 0
    %411 = vmatmul.mubr.bf16.gmra.mrb[0].mxu0 %v342
    %v412 = vpop.f32.mrb[0].mxu0
    %v413 = vadd.f32 %v143, %v412
    %v414 = vpop.f32.mrb[0].mxu0
    %v415 = vadd.f32 %v147, %v414
    %v416 = vpop.f32.mrb[0].mxu0
    %v417 = vadd.f32 %v143, %v416
    %v418 = vpop.f32.mrb[0].mxu0
    %v419 = vadd.f32 %v147, %v418
    %420 = vmatprep.mubr.bf16.mxu0 0
    %421 = vmatmul.mubr.bf16.gmra.mrb[0].mxu0 %v345
    %v422 = vpop.f32.mrb[0].mxu0
    %v423 = vadd.f32 %v143, %v422
    %v424 = vpop.f32.mrb[0].mxu0
    %v425 = vadd.f32 %v147, %v424
    %v426 = vpop.f32.mrb[0].mxu0
    %v427 = vadd.f32 %v143, %v426
    %v428 = vpop.f32.mrb[0].mxu0
    %v429 = vadd.f32 %v147, %v428
    %430 = vmatprep.mubr.bf16.mxu0 0
    %431 = vmatmul.mubr.bf16.gmra.mrb[0].mxu0 %v348
    %v432 = vpop.f32.mrb[0].mxu0
    %v433 = vadd.f32 %v143, %v432
    %v434 = vpop.f32.mrb[0].mxu0
    %v435 = vadd.f32 %v147, %v434
    %v436 = vpop.f32.mrb[0].mxu0
    %v437 = vadd.f32 %v143, %v436
    %v438 = vpop.f32.mrb[0].mxu0
    %v439 = vadd.f32 %v147, %v438
    %440 = vmatprep.mubr.bf16.mxu0 0
    %441 = vmatmul.mubr.bf16.gmra.mrb[0].mxu0 %v351
    %v442 = vpop.f32.mrb[0].mxu0
    %v443 = vadd.f32 %v143, %v442
    %v444 = vpop.f32.mrb[0].mxu0
    %v445 = vadd.f32 %v147, %v444
    %v446 = vpop.f32.mrb[0].mxu0
    %v447 = vadd.f32 %v143, %v446
    %v448 = vpop.f32.mrb[0].mxu0
    %v449 = vadd.f32 %v147, %v448
    %450 = vdwg.mxu0
    %451 = vmatprep.subr.bf16.mxu0 %v287
    %452 = vmatpush1.bf16.msra.mxu0 %v286
    %453 = vmatprep.subr.bf16.mxu0 %v295
    %454 = vmatpush1.bf16.msra.mxu0 %v294
    %455 = vmatprep.subr.bf16.mxu0 %v303
    %456 = vmatpush1.bf16.msra.mxu0 %v302
    %457 = vmatprep.subr.bf16.mxu0 %v364
    %458 = vmatpush1.bf16.msra.mxu0 %v361
    %459 = vmatprep.subr.bf16.mxu0 0
    %460 = vmatpush1.bf16.msra.mxu0 0
    %461 = vmatprep.subr.bf16.mxu0 0
    %462 = vmatpush1.bf16.msra.mxu0 0
    %463 = vmatprep.subr.bf16.mxu0 0
    %464 = vmatpush1.bf16.msra.mxu0 0
    %465 = vmatprep.subr.bf16.mxu0 0
    %466 = vmatpush1.bf16.msra.mxu0 0
    %467 = vmatprep.subr.bf16.mxu0 0
    %468 = vmatpush1.bf16.msra.mxu0 0
    %469 = vmatprep.subr.bf16.mxu0 0
    %470 = vmatpush1.bf16.msra.mxu0 0
    %471 = vmatprep.subr.bf16.mxu0 0
    %472 = vmatpush1.bf16.msra.mxu0 0
    %473 = vmatprep.subr.bf16.mxu0 0
    %474 = vmatpush1.bf16.msra.mxu0 0
    %475 = vmatprep.subr.bf16.mxu0 0
    %476 = vmatpush1.bf16.msra.mxu0 0
    %477 = vmatprep.subr.bf16.mxu0 0
    %478 = vmatpush1.bf16.msra.mxu0 0
    %479 = vmatprep.subr.bf16.mxu0 0
    %480 = vmatpush1.bf16.msra.mxu0 0
    %481 = vmatprep.subr.bf16.mxu0 0
    %482 = vmatpush1.bf16.msra.mxu0 0
    %483 = vmatprep.mubr.bf16.mxu0 0
    %484 = vmatmul.mubr.bf16.gmra.mrb[0].mxu0 %v342
    %v485 = vpop.f32.mrb[0].mxu0
    %v486 = vadd.f32 %v151, %v485
    %v487 = vpop.f32.mrb[0].mxu0
    %v488 = vadd.f32 %v155, %v487
    %v489 = vpop.f32.mrb[0].mxu0
    %v490 = vadd.f32 %v151, %v489
    %v491 = vpop.f32.mrb[0].mxu0
    %v492 = vadd.f32 %v155, %v491
    %493 = vmatprep.mubr.bf16.mxu0 0
    %494 = vmatmul.mubr.bf16.gmra.mrb[0].mxu0 %v345
    %v495 = vpop.f32.mrb[0].mxu0
    %v496 = vadd.f32 %v151, %v495
    %v497 = vpop.f32.mrb[0].mxu0
    %v498 = vadd.f32 %v155, %v497
    %v499 = vpop.f32.mrb[0].mxu0
    %v500 = vadd.f32 %v151, %v499
    %v501 = vpop.f32.mrb[0].mxu0
    %v502 = vadd.f32 %v155, %v501
    %503 = vmatprep.mubr.bf16.mxu0 0
    %504 = vmatmul.mubr.bf16.gmra.mrb[0].mxu0 %v348
    %v505 = vpop.f32.mrb[0].mxu0
    %v506 = vadd.f32 %v151, %v505
    %v507 = vpop.f32.mrb[0].mxu0
    %v508 = vadd.f32 %v155, %v507
    %v509 = vpop.f32.mrb[0].mxu0
    %v510 = vadd.f32 %v151, %v509
    %v511 = vpop.f32.mrb[0].mxu0
    %v512 = vadd.f32 %v155, %v511
    %513 = vmatprep.mubr.bf16.mxu0 0
    %514 = vmatmul.mubr.bf16.gmra.mrb[0].mxu0 %v351
    %v515 = vpop.f32.mrb[0].mxu0
    %v516 = vadd.f32 %v151, %v515
    %v517 = vpop.f32.mrb[0].mxu0
    %v518 = vadd.f32 %v155, %v517
    %v519 = vpop.f32.mrb[0].mxu0
    %v520 = vadd.f32 %v151, %v519
    %v521 = vpop.f32.mrb[0].mxu0
    %v522 = vadd.f32 %v155, %v521
    %523 = vdwg.mxu0
    %524 = vmatprep.subr.bf16.mxu0 %v289
    %525 = vmatpush1.bf16.msra.mxu0 %v288
    %526 = vmatprep.subr.bf16.mxu0 %v297
    %527 = vmatpush1.bf16.msra.mxu0 %v296
    %528 = vmatprep.subr.bf16.mxu0 %v305
    %529 = vmatpush1.bf16.msra.mxu0 %v304
    %530 = vmatprep.subr.bf16.mxu0 %v370
    %531 = vmatpush1.bf16.msra.mxu0 %v367
    %532 = vmatprep.subr.bf16.mxu0 0
    %533 = vmatpush1.bf16.msra.mxu0 0
    %534 = vmatprep.subr.bf16.mxu0 0
    %535 = vmatpush1.bf16.msra.mxu0 0
    %536 = vmatprep.subr.bf16.mxu0 0
    %537 = vmatpush1.bf16.msra.mxu0 0
    %538 = vmatprep.subr.bf16.mxu0 0
    %539 = vmatpush1.bf16.msra.mxu0 0
    %540 = vmatprep.subr.bf16.mxu0 0
    %541 = vmatpush1.bf16.msra.mxu0 0
    %542 = vmatprep.subr.bf16.mxu0 0
    %543 = vmatpush1.bf16.msra.mxu0 0
    %544 = vmatprep.subr.bf16.mxu0 0
    %545 = vmatpush1.bf16.msra.mxu0 0
    %546 = vmatprep.subr.bf16.mxu0 0
    %547 = vmatpush1.bf16.msra.mxu0 0
    %548 = vmatprep.subr.bf16.mxu0 0
    %549 = vmatpush1.bf16.msra.mxu0 0
    %550 = vmatprep.subr.bf16.mxu0 0
    %551 = vmatpush1.bf16.msra.mxu0 0
    %552 = vmatprep.subr.bf16.mxu0 0
    %553 = vmatpush1.bf16.msra.mxu0 0
    %554 = vmatprep.subr.bf16.mxu0 0
    %555 = vmatpush1.bf16.msra.mxu0 0
    %556 = vmatprep.mubr.bf16.mxu0 0
    %557 = vmatmul.mubr.bf16.gmra.mrb[0].mxu0 %v342
    %v558 = vpop.f32.mrb[0].mxu0
    %v559 = vadd.f32 %v159, %v558
    %v560 = vpop.f32.mrb[0].mxu0
    %v561 = vadd.f32 %v163, %v560
    %v562 = vpop.f32.mrb[0].mxu0
    %v563 = vadd.f32 %v159, %v562
    %v564 = vpop.f32.mrb[0].mxu0
    %v565 = vadd.f32 %v163, %v564
    %566 = vmatprep.mubr.bf16.mxu0 0
    %567 = vmatmul.mubr.bf16.gmra.mrb[0].mxu0 %v345
    %v568 = vpop.f32.mrb[0].mxu0
    %v569 = vadd.f32 %v159, %v568
    %v570 = vpop.f32.mrb[0].mxu0
    %v571 = vadd.f32 %v163, %v570
    %v572 = vpop.f32.mrb[0].mxu0
    %v573 = vadd.f32 %v159, %v572
    %v574 = vpop.f32.mrb[0].mxu0
    %v575 = vadd.f32 %v163, %v574
    %576 = vmatprep.mubr.bf16.mxu0 0
    %577 = vmatmul.mubr.bf16.gmra.mrb[0].mxu0 %v348
    %v578 = vpop.f32.mrb[0].mxu0
    %v579 = vadd.f32 %v159, %v578
    %v580 = vpop.f32.mrb[0].mxu0
    %v581 = vadd.f32 %v163, %v580
    %v582 = vpop.f32.mrb[0].mxu0
    %v583 = vadd.f32 %v159, %v582
    %v584 = vpop.f32.mrb[0].mxu0
    %v585 = vadd.f32 %v163, %v584
    %586 = vmatprep.mubr.bf16.mxu0 0
    %587 = vmatmul.mubr.bf16.gmra.mrb[0].mxu0 %v351
    %v588 = vpop.f32.mrb[0].mxu0
    %v589 = vadd.f32 %v159, %v588
    %v590 = vpop.f32.mrb[0].mxu0
    %v591 = vadd.f32 %v163, %v590
    %v592 = vpop.f32.mrb[0].mxu0
    %v593 = vadd.f32 %v159, %v592
    %v594 = vpop.f32.mrb[0].mxu0
    %v595 = vadd.f32 %v163, %v594
    %596 = vdwg.mxu0
    %597 = vmatprep.subr.bf16.mxu0 %v291
    %598 = vmatpush1.bf16.msra.mxu0 %v290
    %599 = vmatprep.subr.bf16.mxu0 %v299
    %600 = vmatpush1.bf16.msra.mxu0 %v298
    %601 = vmatprep.subr.bf16.mxu0 %v307
    %602 = vmatpush1.bf16.msra.mxu0 %v306
    %603 = vmatprep.subr.bf16.mxu0 %v376
    %604 = vmatpush1.bf16.msra.mxu0 %v373
    %605 = vmatprep.subr.bf16.mxu0 0
    %606 = vmatpush1.bf16.msra.mxu0 0
    %607 = vmatprep.subr.bf16.mxu0 0
    %608 = vmatpush1.bf16.msra.mxu0 0
    %609 = vmatprep.subr.bf16.mxu0 0
    %610 = vmatpush1.bf16.msra.mxu0 0
    %611 = vmatprep.subr.bf16.mxu0 0
    %612 = vmatpush1.bf16.msra.mxu0 0
    %613 = vmatprep.subr.bf16.mxu0 0
    %614 = vmatpush1.bf16.msra.mxu0 0
    %615 = vmatprep.subr.bf16.mxu0 0
    %616 = vmatpush1.bf16.msra.mxu0 0
    %617 = vmatprep.subr.bf16.mxu0 0
    %618 = vmatpush1.bf16.msra.mxu0 0
    %619 = vmatprep.subr.bf16.mxu0 0
    %620 = vmatpush1.bf16.msra.mxu0 0
    %621 = vmatprep.subr.bf16.mxu0 0
    %622 = vmatpush1.bf16.msra.mxu0 0
    %623 = vmatprep.subr.bf16.mxu0 0
    %624 = vmatpush1.bf16.msra.mxu0 0
    %625 = vmatprep.subr.bf16.mxu0 0
    %626 = vmatpush1.bf16.msra.mxu0 0
    %627 = vmatprep.subr.bf16.mxu0 0
    %628 = vmatpush1.bf16.msra.mxu0 0
    %629 = vmatprep.mubr.bf16.mxu0 0
    %630 = vmatmul.mubr.bf16.gmra.mrb[0].mxu0 %v342
    %v631 = vpop.f32.mrb[0].mxu0
    %v632 = vadd.f32 %v167, %v631
    %v633 = vpop.f32.mrb[0].mxu0
    %v634 = vadd.f32 %v171, %v633
    %v635 = vpop.f32.mrb[0].mxu0
    %v636 = vadd.f32 %v167, %v635
    %v637 = vpop.f32.mrb[0].mxu0
    %v638 = vadd.f32 %v171, %v637
    %639 = vmatprep.mubr.bf16.mxu0 0
    %640 = vmatmul.mubr.bf16.gmra.mrb[0].mxu0 %v345
    %v641 = vpop.f32.mrb[0].mxu0
    %v642 = vadd.f32 %v167, %v641
    %v643 = vpop.f32.mrb[0].mxu0
    %v644 = vadd.f32 %v171, %v643
    %v645 = vpop.f32.mrb[0].mxu0
    %v646 = vadd.f32 %v167, %v645
    %v647 = vpop.f32.mrb[0].mxu0
    %v648 = vadd.f32 %v171, %v647
    %649 = vmatprep.mubr.bf16.mxu0 0
    %650 = vmatmul.mubr.bf16.gmra.mrb[0].mxu0 %v348
    %v651 = vpop.f32.mrb[0].mxu0
    %v652 = vadd.f32 %v167, %v651
    %v653 = vpop.f32.mrb[0].mxu0
    %v654 = vadd.f32 %v171, %v653
    %v655 = vpop.f32.mrb[0].mxu0
    %v656 = vadd.f32 %v167, %v655
    %v657 = vpop.f32.mrb[0].mxu0
    %v658 = vadd.f32 %v171, %v657
    %659 = vmatprep.mubr.bf16.mxu0 0
    %660 = vmatmul.mubr.bf16.gmra.mrb[0].mxu0 %v351
    %v661 = vpop.f32.mrb[0].mxu0
    %v662 = vadd.f32 %v167, %v661
    %v663 = vpop.f32.mrb[0].mxu0
    %v664 = vadd.f32 %v171, %v663
    %v665 = vpop.f32.mrb[0].mxu0
    %v666 = vadd.f32 %v167, %v665
    %v667 = vpop.f32.mrb[0].mxu0
    %v668 = vadd.f32 %v171, %v667
    %669 = vdwg.mxu0
    %670 = vst [vmem:[#allocation2] sm:$0xff] %v413
    %671 = vst [vmem:[#allocation2 + $0x8] sm:$0xff] %v415
    %672 = vst [vmem:[#allocation2 + $0x10] sm:$0xff] %v486
    %673 = vst [vmem:[#allocation2 + $0x18] sm:$0xff] %v488
    %674 = vst [vmem:[#allocation2 + $0x20] sm:$0xff] %v559
    %675 = vst [vmem:[#allocation2 + $0x28] sm:$0xff] %v561
    %676 = vst [vmem:[#allocation2 + $0x30] sm:$0xff] %v632
    %677 = vst [vmem:[#allocation2 + $0x38] sm:$0xff] %v634
    %678 = vst [vmem:[#allocation2 + $0x40] sm:$0xff] %v417
    %679 = vst [vmem:[#allocation2 + $0x48] sm:$0xff] %v419
    %680 = vst [vmem:[#allocation2 + $0x50] sm:$0xff] %v490
    %681 = vst [vmem:[#allocation2 + $0x58] sm:$0xff] %v492
    %682 = vst [vmem:[#allocation2 + $0x60] sm:$0xff] %v563
    %683 = vst [vmem:[#allocation2 + $0x68] sm:$0xff] %v565
    %684 = vst [vmem:[#allocation2 + $0x70] sm:$0xff] %v636
    %685 = vst [vmem:[#allocation2 + $0x78] sm:$0xff] %v638
    %686 = vst [vmem:[#allocation2 + $0x80] sm:$0xff] %v423
    %687 = vst [vmem:[#allocation2 + $0x88] sm:$0xff] %v425
    %688 = vst [vmem:[#allocation2 + $0x90] sm:$0xff] %v496
    %689 = vst [vmem:[#allocation2 + $0x98] sm:$0xff] %v498
    %690 = vst [vmem:[#allocation2 + $0xa0] sm:$0xff] %v569
    %691 = vst [vmem:[#allocation2 + $0xa8] sm:$0xff] %v571
    %692 = vst [vmem:[#allocation2 + $0xb0] sm:$0xff] %v642
    %693 = vst [vmem:[#allocation2 + $0xb8] sm:$0xff] %v644
    %694 = vst [vmem:[#allocation2 + $0xc0] sm:$0xff] %v427
    %695 = vst [vmem:[#allocation2 + $0xc8] sm:$0xff] %v429
    %696 = vst [vmem:[#allocation2 + $0xd0] sm:$0xff] %v500
    %697 = vst [vmem:[#allocation2 + $0xd8] sm:$0xff] %v502
    %698 = vst [vmem:[#allocation2 + $0xe0] sm:$0xff] %v573
    %699 = vst [vmem:[#allocation2 + $0xe8] sm:$0xff] %v575
    %700 = vst [vmem:[#allocation2 + $0xf0] sm:$0xff] %v646
    %701 = vst [vmem:[#allocation2 + $0xf8] sm:$0xff] %v648
    %702 = vst [vmem:[#allocation2 + $0x100] sm:$0xff] %v433
    %703 = vst [vmem:[#allocation2 + $0x108] sm:$0xff] %v435
    %704 = vst [vmem:[#allocation2 + $0x110] sm:$0xff] %v506
    %705 = vst [vmem:[#allocation2 + $0x118] sm:$0xff] %v508
    %706 = vst [vmem:[#allocation2 + $0x120] sm:$0xff] %v579
    %707 = vst [vmem:[#allocation2 + $0x128] sm:$0xff] %v581
    %708 = vst [vmem:[#allocation2 + $0x130] sm:$0xff] %v652
    %709 = vst [vmem:[#allocation2 + $0x138] sm:$0xff] %v654
    %710 = vst [vmem:[#allocation2 + $0x140] sm:$0xff] %v437
    %711 = vst [vmem:[#allocation2 + $0x148] sm:$0xff] %v439
    %712 = vst [vmem:[#allocation2 + $0x150] sm:$0xff] %v510
    %713 = vst [vmem:[#allocation2 + $0x158] sm:$0xff] %v512
    %714 = vst [vmem:[#allocation2 + $0x160] sm:$0xff] %v583
    %715 = vst [vmem:[#allocation2 + $0x168] sm:$0xff] %v585
    %716 = vst [vmem:[#allocation2 + $0x170] sm:$0xff] %v656
    %717 = vst [vmem:[#allocation2 + $0x178] sm:$0xff] %v658
    %718 = vst [vmem:[#allocation2 + $0x180] sm:$0xff] %v443
    %719 = vst [vmem:[#allocation2 + $0x188] sm:$0xff] %v445
    %720 = vst [vmem:[#allocation2 + $0x190] sm:$0xff] %v516
    %721 = vst [vmem:[#allocation2 + $0x198] sm:$0xff] %v518
    %722 = vst [vmem:[#allocation2 + $0x1a0] sm:$0xff] %v589
    %723 = vst [vmem:[#allocation2 + $0x1a8] sm:$0xff] %v591
    %724 = vst [vmem:[#allocation2 + $0x1b0] sm:$0xff] %v662
    %725 = vst [vmem:[#allocation2 + $0x1b8] sm:$0xff] %v664
    %726 = vst [vmem:[#allocation2 + $0x1c0] sm:$0xff] %v447
    %727 = vst [vmem:[#allocation2 + $0x1c8] sm:$0xff] %v449
    %728 = vst [vmem:[#allocation2 + $0x1d0] sm:$0xff] %v520
    %729 = vst [vmem:[#allocation2 + $0x1d8] sm:$0xff] %v522
    %730 = vst [vmem:[#allocation2 + $0x1e0] sm:$0xff] %v593
    %731 = vst [vmem:[#allocation2 + $0x1e8] sm:$0xff] %v595
    %732 = vst [vmem:[#allocation2 + $0x1f0] sm:$0xff] %v666
    %733 = vst [vmem:[#allocation2 + $0x1f8] sm:$0xff] %v668
    %734 = vst [vmem:[#allocation3] sm:$0xff] 0.0
    %735 = vst [vmem:[#allocation4] sm:$0xff] 0.0
    %v736 = vld [vmem:[#allocation8] sm:$0xff]
    %v737 = vld [vmem:[#allocation8 + $0x8] sm:$0xff]
    %v738 = vld [vmem:[#allocation8 + $0x10] sm:$0xff]
    %v739 = vld [vmem:[#allocation8 + $0x18] sm:$0xff]
    %v740 = vld [vmem:[#allocation8 + $0x20] sm:$0xff]
    %v741 = vld [vmem:[#allocation8 + $0x28] sm:$0xff]
    %v742 = vld [vmem:[#allocation8 + $0x30] sm:$0xff]
    %v743 = vld [vmem:[#allocation8 + $0x38] sm:$0xff]
    %v744 = vld [vmem:[#allocation8 + $0x40] sm:$0xff]
    %v745 = vld [vmem:[#allocation8 + $0x48] sm:$0xff]
    %v746 = vld [vmem:[#allocation8 + $0x50] sm:$0xff]
    %v747 = vld [vmem:[#allocation8 + $0x58] sm:$0xff]
    %v748 = vld [vmem:[#allocation8 + $0x60] sm:$0xff]
    %v749 = vld [vmem:[#allocation8 + $0x68] sm:$0xff]
    %v750 = vld [vmem:[#allocation8 + $0x70] sm:$0xff]
    %v751 = vld [vmem:[#allocation8 + $0x78] sm:$0xff]
    %v752 = vld [vmem:[#allocation8 + $0x80] sm:$0xff]
    %v753 = vld [vmem:[#allocation8 + $0x88] sm:$0xff]
    %v754 = vld [vmem:[#allocation8 + $0x90] sm:$0xff]
    %v755 = vld [vmem:[#allocation8 + $0x98] sm:$0xff]
    %v756 = vld [vmem:[#allocation8 + $0xa0] sm:$0xff]
    %v757 = vld [vmem:[#allocation8 + $0xa8] sm:$0xff]
    %v758 = vld [vmem:[#allocation8 + $0xb0] sm:$0xff]
    %v759 = vld [vmem:[#allocation8 + $0xb8] sm:$0xff]
    %v760 = vld [vmem:[#allocation8 + $0xc0] sm:$0xff]
    %v761 = vld [vmem:[#allocation8 + $0xc8] sm:$0xff]
    %v762 = vld [vmem:[#allocation8 + $0xd0] sm:$0xff]
    %v763 = vld [vmem:[#allocation8 + $0xd8] sm:$0xff]
    %v764 = vld [vmem:[#allocation8 + $0xe0] sm:$0xff]
    %v765 = vld [vmem:[#allocation8 + $0xe8] sm:$0xff]
    %v766 = vld [vmem:[#allocation8 + $0xf0] sm:$0xff]
    %v767 = vld [vmem:[#allocation8 + $0xf8] sm:$0xff]
    %v768 = vld [vmem:[#allocation10] sm:$0xff]
    %v769 = vld [vmem:[#allocation10 + $0x8] sm:$0xff]
    %v770 = vld [vmem:[#allocation10 + $0x10] sm:$0xff]
    %v771 = vld [vmem:[#allocation10 + $0x18] sm:$0xff]
    %v772 = vld [vmem:[#allocation10 + $0x20] sm:$0xff]
    %v773 = vld [vmem:[#allocation10 + $0x28] sm:$0xff]
    %v774 = vld [vmem:[#allocation10 + $0x30] sm:$0xff]
    %v775 = vld [vmem:[#allocation10 + $0x38] sm:$0xff]
    %v776 = vld [vmem:[#allocation10 + $0x40] sm:$0xff]
    %v777 = vld [vmem:[#allocation10 + $0x48] sm:$0xff]
    %v778 = vld [vmem:[#allocation10 + $0x50] sm:$0xff]
    %v779 = vld [vmem:[#allocation10 + $0x58] sm:$0xff]
    %v780 = vld [vmem:[#allocation10 + $0x60] sm:$0xff]
    %v781 = vld [vmem:[#allocation10 + $0x68] sm:$0xff]
    %v782 = vld [vmem:[#allocation10 + $0x70] sm:$0xff]
    %v783 = vld [vmem:[#allocation10 + $0x78] sm:$0xff]
    %v784 = vld [vmem:[#allocation10 + $0x80] sm:$0xff]
    %v785 = vld [vmem:[#allocation10 + $0x88] sm:$0xff]
    %v786 = vld [vmem:[#allocation10 + $0x90] sm:$0xff]
    %v787 = vld [vmem:[#allocation10 + $0x98] sm:$0xff]
    %v788 = vld [vmem:[#allocation10 + $0xa0] sm:$0xff]
    %v789 = vld [vmem:[#allocation10 + $0xa8] sm:$0xff]
    %v790 = vld [vmem:[#allocation10 + $0xb0] sm:$0xff]
    %v791 = vld [vmem:[#allocation10 + $0xb8] sm:$0xff]
    %v792 = vld [vmem:[#allocation10 + $0xc0] sm:$0xff]
    %v793 = vld [vmem:[#allocation10 + $0xc8] sm:$0xff]
    %v794 = vld [vmem:[#allocation10 + $0xd0] sm:$0xff]
    %v795 = vld [vmem:[#allocation10 + $0xd8] sm:$0xff]
    %v796 = vld [vmem:[#allocation10 + $0xe0] sm:$0xff]
    %v797 = vld [vmem:[#allocation10 + $0xe8] sm:$0xff]
    %v798 = vld [vmem:[#allocation10 + $0xf0] sm:$0xff]
    %v799 = vld [vmem:[#allocation10 + $0xf8] sm:$0xff]
    %s800 = smul.u32 0, 8
    %s801 = smul.addr %s800, 8
    %s802 = scalar_lea.vmem [#allocation2], %s801
    %v803 = vld [vmem:[%s802] sm:$0xff]
    %v804 = vld [vmem:[%s802 + $0x8] sm:$0xff]
    %v805 = vld [vmem:[%s802 + $0x10] sm:$0xff]
    %v806 = vld [vmem:[%s802 + $0x18] sm:$0xff]
    %s807 = smul.u32 7, 8
    %s808 = smul.addr %s807, 8
    %s809 = scalar_lea.vmem [#allocation2], %s808
    %v810 = vld [vmem:[%s809 + $0x20] sm:$0xff]
    %v811 = vld [vmem:[%s809 + $0x28] sm:$0xff]
    %v812 = vld [vmem:[%s809 + $0x30] sm:$0xff]
    %v813 = vld [vmem:[%s809 + $0x38] sm:$0xff]
    %v846 = vunpack.c.l.b16 %v736
    %v847 = vunpack.c.h.b16 %v736
    %v848 = vunpack.c.l.b16 %v737
    %v849 = vunpack.c.h.b16 %v737
    %v850 = vunpack.c.l.b16 %v738
    %v851 = vunpack.c.h.b16 %v738
    %v852 = vunpack.c.l.b16 %v739
    %v853 = vunpack.c.h.b16 %v739
    %v854 = vunpack.c.l.b16 %v740
    %v855 = vunpack.c.h.b16 %v740
    %v856 = vunpack.c.l.b16 %v741
    %v857 = vunpack.c.h.b16 %v741
    %v858 = vunpack.c.l.b16 %v742
    %v859 = vunpack.c.h.b16 %v742
    %v860 = vunpack.c.l.b16 %v743
    %v861 = vunpack.c.h.b16 %v743
    %v862 = vunpack.c.l.b16 %v744
    %v863 = vunpack.c.h.b16 %v744
    %v864 = vunpack.c.l.b16 %v745
    %v865 = vunpack.c.h.b16 %v745
    %v866 = vunpack.c.l.b16 %v746
    %v867 = vunpack.c.h.b16 %v746
    %v868 = vunpack.c.l.b16 %v747
    %v869 = vunpack.c.h.b16 %v747
    %v870 = vunpack.c.l.b16 %v748
    %v871 = vunpack.c.h.b16 %v748
    %v872 = vunpack.c.l.b16 %v749
    %v873 = vunpack.c.h.b16 %v749
    %v874 = vunpack.c.l.b16 %v750
    %v875 = vunpack.c.h.b16 %v750
    %v876 = vunpack.c.l.b16 %v751
    %v877 = vunpack.c.h.b16 %v751
    %v878 = vunpack.c.l.b16 %v752
    %v879 = vunpack.c.h.b16 %v752
    %v880 = vunpack.c.l.b16 %v753
    %v881 = vunpack.c.h.b16 %v753
    %v882 = vunpack.c.l.b16 %v754
    %v883 = vunpack.c.h.b16 %v754
    %v884 = vunpack.c.l.b16 %v755
    %v885 = vunpack.c.h.b16 %v755
    %v886 = vunpack.c.l.b16 %v756
    %v887 = vunpack.c.h.b16 %v756
    %v888 = vunpack.c.l.b16 %v757
    %v889 = vunpack.c.h.b16 %v757
    %v890 = vunpack.c.l.b16 %v758
    %v891 = vunpack.c.h.b16 %v758
    %v892 = vunpack.c.l.b16 %v759
    %v893 = vunpack.c.h.b16 %v759
    %v894 = vunpack.c.l.b16 %v760
    %v895 = vunpack.c.h.b16 %v760
    %v896 = vunpack.c.l.b16 %v761
    %v897 = vunpack.c.h.b16 %v761
    %v898 = vunpack.c.l.b16 %v762
    %v899 = vunpack.c.h.b16 %v762
    %v900 = vunpack.c.l.b16 %v763
    %v901 = vunpack.c.h.b16 %v763
    %v902 = vunpack.c.l.b16 %v764
    %v903 = vunpack.c.h.b16 %v764
    %v904 = vunpack.c.l.b16 %v765
    %v905 = vunpack.c.h.b16 %v765
    %v906 = vunpack.c.l.b16 %v766
    %v907 = vunpack.c.h.b16 %v766
    %v908 = vunpack.c.l.b16 %v767
    %v909 = vunpack.c.h.b16 %v767
    %v910 = vpack.c.b16 %v850, %v846
    %v911 = vpack.c.b16 %v851, %v847
    %v912 = vpack.c.b16 %v852, %v848
    %v913 = vpack.c.b16 %v853, %v849
    %v914 = vpack.c.b16 %v858, %v854
    %v915 = vpack.c.b16 %v859, %v855
    %v916 = vpack.c.b16 %v860, %v856
    %v917 = vpack.c.b16 %v861, %v857
    %v918 = vpack.c.b16 %v866, %v862
    %v919 = vpack.c.b16 %v867, %v863
    %v920 = vpack.c.b16 %v868, %v864
    %v921 = vpack.c.b16 %v869, %v865
    %v922 = vpack.c.b16 %v874, %v870
    %v923 = vpack.c.b16 %v875, %v871
    %v924 = vpack.c.b16 %v876, %v872
    %v925 = vpack.c.b16 %v877, %v873
    %v926 = vpack.c.b16 %v882, %v878
    %v927 = vpack.c.b16 %v883, %v879
    %v928 = vpack.c.b16 %v884, %v880
    %v929 = vpack.c.b16 %v885, %v881
    %v930 = vpack.c.b16 %v890, %v886
    %v931 = vpack.c.b16 %v891, %v887
    %v932 = vpack.c.b16 %v892, %v888
    %v933 = vpack.c.b16 %v893, %v889
    %v934 = vpack.c.b16 %v898, %v894
    %v935 = vpack.c.b16 %v899, %v895
    %v936 = vpack.c.b16 %v900, %v896
    %v937 = vpack.c.b16 %v901, %v897
    %v938 = vpack.c.b16 %v906, %v902
    %v939 = vpack.c.b16 %v907, %v903
    %v940 = vpack.c.b16 %v908, %v904
    %v941 = vpack.c.b16 %v909, %v905
    %974 = vmatprep.subr.bf16.mxu0 %v911
    %975 = vmatpush1.bf16.msra.mxu0 %v910
    %976 = vmatprep.subr.bf16.mxu0 %v915
    %977 = vmatpush1.bf16.msra.mxu0 %v914
    %978 = vmatprep.subr.bf16.mxu0 %v919
    %979 = vmatpush1.bf16.msra.mxu0 %v918
    %980 = vmatprep.subr.bf16.mxu0 %v923
    %981 = vmatpush1.bf16.msra.mxu0 %v922
    %982 = vmatprep.subr.bf16.mxu0 %v927
    %983 = vmatpush1.bf16.msra.mxu0 %v926
    %984 = vmatprep.subr.bf16.mxu0 %v931
    %985 = vmatpush1.bf16.msra.mxu0 %v930
    %986 = vmatprep.subr.bf16.mxu0 %v935
    %987 = vmatpush1.bf16.msra.mxu0 %v934
    %988 = vmatprep.subr.bf16.mxu0 %v939
    %989 = vmatpush1.bf16.msra.mxu0 %v938
    %990 = vmatprep.subr.bf16.mxu0 0
    %991 = vmatpush1.bf16.msra.mxu0 0
    %992 = vmatprep.subr.bf16.mxu0 0
    %993 = vmatpush1.bf16.msra.mxu0 0
    %994 = vmatprep.subr.bf16.mxu0 0
    %995 = vmatpush1.bf16.msra.mxu0 0
    %996 = vmatprep.subr.bf16.mxu0 0
    %997 = vmatpush1.bf16.msra.mxu0 0
    %998 = vmatprep.subr.bf16.mxu0 0
    %999 = vmatpush1.bf16.msra.mxu0 0
    %1000 = vmatprep.subr.bf16.mxu0 0
    %1001 = vmatpush1.bf16.msra.mxu0 0
    %1002 = vmatprep.subr.bf16.mxu0 0
    %1003 = vmatpush1.bf16.msra.mxu0 0
    %1004 = vmatprep.subr.bf16.mxu0 0
    %1005 = vmatpush1.bf16.msra.mxu0 0
    %1006 = vmatprep.mubr.bf16.mxu0 0
    %1007 = vmatmul.mubr.bf16.gmra.mrb[0].mxu0 0
    %v1008 = vpop.f32.mrb[0].mxu0
    %v1009 = vadd.f32 %v803, %v1008
    %v1010 = vpop.f32.mrb[0].mxu0
    %v1011 = vadd.f32 %v804, %v1010
    %v1012 = vpop.f32.mrb[0].mxu0
    %v1013 = vpop.f32.mrb[0].mxu0
    %1014 = vdwg.mxu0
    %1015 = vmatprep.subr.bf16.mxu0 %v913
    %1016 = vmatpush1.bf16.msra.mxu0 %v912
    %1017 = vmatprep.subr.bf16.mxu0 %v917
    %1018 = vmatpush1.bf16.msra.mxu0 %v916
    %1019 = vmatprep.subr.bf16.mxu0 %v921
    %1020 = vmatpush1.bf16.msra.mxu0 %v920
    %1021 = vmatprep.subr.bf16.mxu0 %v925
    %1022 = vmatpush1.bf16.msra.mxu0 %v924
    %1023 = vmatprep.subr.bf16.mxu0 %v929
    %1024 = vmatpush1.bf16.msra.mxu0 %v928
    %1025 = vmatprep.subr.bf16.mxu0 %v933
    %1026 = vmatpush1.bf16.msra.mxu0 %v932
    %1027 = vmatprep.subr.bf16.mxu0 %v937
    %1028 = vmatpush1.bf16.msra.mxu0 %v936
    %1029 = vmatprep.subr.bf16.mxu0 %v941
    %1030 = vmatpush1.bf16.msra.mxu0 %v940
    %1031 = vmatprep.subr.bf16.mxu0 0
    %1032 = vmatpush1.bf16.msra.mxu0 0
    %1033 = vmatprep.subr.bf16.mxu0 0
    %1034 = vmatpush1.bf16.msra.mxu0 0
    %1035 = vmatprep.subr.bf16.mxu0 0
    %1036 = vmatpush1.bf16.msra.mxu0 0
    %1037 = vmatprep.subr.bf16.mxu0 0
    %1038 = vmatpush1.bf16.msra.mxu0 0
    %1039 = vmatprep.subr.bf16.mxu0 0
    %1040 = vmatpush1.bf16.msra.mxu0 0
    %1041 = vmatprep.subr.bf16.mxu0 0
    %1042 = vmatpush1.bf16.msra.mxu0 0
    %1043 = vmatprep.subr.bf16.mxu0 0
    %1044 = vmatpush1.bf16.msra.mxu0 0
    %1045 = vmatprep.subr.bf16.mxu0 0
    %1046 = vmatpush1.bf16.msra.mxu0 0
    %1047 = vmatprep.mubr.bf16.mxu0 0
    %1048 = vmatmul.mubr.bf16.gmra.mrb[0].mxu0 0
    %v1049 = vpop.f32.mrb[0].mxu0
    %v1050 = vadd.f32 %v805, %v1049
    %v1051 = vpop.f32.mrb[0].mxu0
    %v1052 = vadd.f32 %v806, %v1051
    %v1053 = vpop.f32.mrb[0].mxu0
    %v1054 = vpop.f32.mrb[0].mxu0
    %1055 = vdwg.mxu0
    %v1056 = vxor.u32 %v1009, 2147483648
    %v1057 = vmul.f32 %v1056, 1.442695
    %v1058 = vpow.pop %v1057
    %v1059 = vadd.f32 %v1058, 1.0
    %v1060 = vrcp.pop %v1059
    %v1061 = vmul.f32 1.0, %v1060
    %v1062 = vxor.u32 %v1011, 2147483648
    %v1063 = vmul.f32 %v1062, 1.442695
    %v1064 = vpow.pop %v1063
    %v1065 = vadd.f32 %v1064, 1.0
    %v1066 = vrcp.pop %v1065
    %v1067 = vmul.f32 1.0, %v1066
    %v1068 = vtanh.pop %v1050
    %v1069 = vxor.u32 %v1052, 2147483648
    %v1070 = vmul.f32 %v1069, 1.442695
    %v1071 = vpow.pop %v1070
    %v1072 = vadd.f32 %v1071, 1.0
    %v1073 = vrcp.pop %v1072
    %v1074 = vmul.f32 1.0, %v1073
    %v1075 = vmul.f32 %v1067, 0.0
    %v1076 = vmul.f32 %v1061, %v1068
    %v1077 = vadd.f32 %v1075, %v1076
    %v1078 = vtanh.pop %v1077
    %v1079 = vmul.f32 %v1074, %v1078
    %v1112 = vunpack.c.l.b16 %v768
    %v1113 = vunpack.c.h.b16 %v768
    %v1114 = vunpack.c.l.b16 %v769
    %v1115 = vunpack.c.h.b16 %v769
    %v1116 = vunpack.c.l.b16 %v770
    %v1117 = vunpack.c.h.b16 %v770
    %v1118 = vunpack.c.l.b16 %v771
    %v1119 = vunpack.c.h.b16 %v771
    %v1120 = vunpack.c.l.b16 %v772
    %v1121 = vunpack.c.h.b16 %v772
    %v1122 = vunpack.c.l.b16 %v773
    %v1123 = vunpack.c.h.b16 %v773
    %v1124 = vunpack.c.l.b16 %v774
    %v1125 = vunpack.c.h.b16 %v774
    %v1126 = vunpack.c.l.b16 %v775
    %v1127 = vunpack.c.h.b16 %v775
    %v1128 = vunpack.c.l.b16 %v776
    %v1129 = vunpack.c.h.b16 %v776
    %v1130 = vunpack.c.l.b16 %v777
    %v1131 = vunpack.c.h.b16 %v777
    %v1132 = vunpack.c.l.b16 %v778
    %v1133 = vunpack.c.h.b16 %v778
    %v1134 = vunpack.c.l.b16 %v779
    %v1135 = vunpack.c.h.b16 %v779
    %v1136 = vunpack.c.l.b16 %v780
    %v1137 = vunpack.c.h.b16 %v780
    %v1138 = vunpack.c.l.b16 %v781
    %v1139 = vunpack.c.h.b16 %v781
    %v1140 = vunpack.c.l.b16 %v782
    %v1141 = vunpack.c.h.b16 %v782
    %v1142 = vunpack.c.l.b16 %v783
    %v1143 = vunpack.c.h.b16 %v783
    %v1144 = vunpack.c.l.b16 %v784
    %v1145 = vunpack.c.h.b16 %v784
    %v1146 = vunpack.c.l.b16 %v785
    %v1147 = vunpack.c.h.b16 %v785
    %v1148 = vunpack.c.l.b16 %v786
    %v1149 = vunpack.c.h.b16 %v786
    %v1150 = vunpack.c.l.b16 %v787
    %v1151 = vunpack.c.h.b16 %v787
    %v1152 = vunpack.c.l.b16 %v788
    %v1153 = vunpack.c.h.b16 %v788
    %v1154 = vunpack.c.l.b16 %v789
    %v1155 = vunpack.c.h.b16 %v789
    %v1156 = vunpack.c.l.b16 %v790
    %v1157 = vunpack.c.h.b16 %v790
    %v1158 = vunpack.c.l.b16 %v791
    %v1159 = vunpack.c.h.b16 %v791
    %v1160 = vunpack.c.l.b16 %v792
    %v1161 = vunpack.c.h.b16 %v792
    %v1162 = vunpack.c.l.b16 %v793
    %v1163 = vunpack.c.h.b16 %v793
    %v1164 = vunpack.c.l.b16 %v794
    %v1165 = vunpack.c.h.b16 %v794
    %v1166 = vunpack.c.l.b16 %v795
    %v1167 = vunpack.c.h.b16 %v795
    %v1168 = vunpack.c.l.b16 %v796
    %v1169 = vunpack.c.h.b16 %v796
    %v1170 = vunpack.c.l.b16 %v797
    %v1171 = vunpack.c.h.b16 %v797
    %v1172 = vunpack.c.l.b16 %v798
    %v1173 = vunpack.c.h.b16 %v798
    %v1174 = vunpack.c.l.b16 %v799
    %v1175 = vunpack.c.h.b16 %v799
    %v1176 = vpack.c.b16 %v1116, %v1112
    %v1177 = vpack.c.b16 %v1117, %v1113
    %v1178 = vpack.c.b16 %v1118, %v1114
    %v1179 = vpack.c.b16 %v1119, %v1115
    %v1180 = vpack.c.b16 %v1124, %v1120
    %v1181 = vpack.c.b16 %v1125, %v1121
    %v1182 = vpack.c.b16 %v1126, %v1122
    %v1183 = vpack.c.b16 %v1127, %v1123
    %v1184 = vpack.c.b16 %v1132, %v1128
    %v1185 = vpack.c.b16 %v1133, %v1129
    %v1186 = vpack.c.b16 %v1134, %v1130
    %v1187 = vpack.c.b16 %v1135, %v1131
    %v1188 = vpack.c.b16 %v1140, %v1136
    %v1189 = vpack.c.b16 %v1141, %v1137
    %v1190 = vpack.c.b16 %v1142, %v1138
    %v1191 = vpack.c.b16 %v1143, %v1139
    %v1192 = vpack.c.b16 %v1148, %v1144
    %v1193 = vpack.c.b16 %v1149, %v1145
    %v1194 = vpack.c.b16 %v1150, %v1146
    %v1195 = vpack.c.b16 %v1151, %v1147
    %v1196 = vpack.c.b16 %v1156, %v1152
    %v1197 = vpack.c.b16 %v1157, %v1153
    %v1198 = vpack.c.b16 %v1158, %v1154
    %v1199 = vpack.c.b16 %v1159, %v1155
    %v1200 = vpack.c.b16 %v1164, %v1160
    %v1201 = vpack.c.b16 %v1165, %v1161
    %v1202 = vpack.c.b16 %v1166, %v1162
    %v1203 = vpack.c.b16 %v1167, %v1163
    %v1204 = vpack.c.b16 %v1172, %v1168
    %v1205 = vpack.c.b16 %v1173, %v1169
    %v1206 = vpack.c.b16 %v1174, %v1170
    %v1207 = vpack.c.b16 %v1175, %v1171
    %1240 = vmatprep.subr.bf16.mxu0 %v1177
    %1241 = vmatpush1.bf16.msra.mxu0 %v1176
    %1242 = vmatprep.subr.bf16.mxu0 %v1181
    %1243 = vmatpush1.bf16.msra.mxu0 %v1180
    %1244 = vmatprep.subr.bf16.mxu0 %v1185
    %1245 = vmatpush1.bf16.msra.mxu0 %v1184
    %1246 = vmatprep.subr.bf16.mxu0 %v1189
    %1247 = vmatpush1.bf16.msra.mxu0 %v1188
    %1248 = vmatprep.subr.bf16.mxu0 %v1193
    %1249 = vmatpush1.bf16.msra.mxu0 %v1192
    %1250 = vmatprep.subr.bf16.mxu0 %v1197
    %1251 = vmatpush1.bf16.msra.mxu0 %v1196
    %1252 = vmatprep.subr.bf16.mxu0 %v1201
    %1253 = vmatpush1.bf16.msra.mxu0 %v1200
    %1254 = vmatprep.subr.bf16.mxu0 %v1205
    %1255 = vmatpush1.bf16.msra.mxu0 %v1204
    %1256 = vmatprep.subr.bf16.mxu0 0
    %1257 = vmatpush1.bf16.msra.mxu0 0
    %1258 = vmatprep.subr.bf16.mxu0 0
    %1259 = vmatpush1.bf16.msra.mxu0 0
    %1260 = vmatprep.subr.bf16.mxu0 0
    %1261 = vmatpush1.bf16.msra.mxu0 0
    %1262 = vmatprep.subr.bf16.mxu0 0
    %1263 = vmatpush1.bf16.msra.mxu0 0
    %1264 = vmatprep.subr.bf16.mxu0 0
    %1265 = vmatpush1.bf16.msra.mxu0 0
    %1266 = vmatprep.subr.bf16.mxu0 0
    %1267 = vmatpush1.bf16.msra.mxu0 0
    %1268 = vmatprep.subr.bf16.mxu0 0
    %1269 = vmatpush1.bf16.msra.mxu0 0
    %1270 = vmatprep.subr.bf16.mxu0 0
    %1271 = vmatpush1.bf16.msra.mxu0 0
    %1272 = vmatprep.mubr.bf16.mxu0 0
    %1273 = vmatmul.mubr.bf16.gmra.mrb[0].mxu0 0
    %v1274 = vpop.f32.mrb[0].mxu0
    %v1275 = vadd.f32 %v810, %v1274
    %v1276 = vpop.f32.mrb[0].mxu0
    %v1277 = vadd.f32 %v811, %v1276
    %v1278 = vpop.f32.mrb[0].mxu0
    %v1279 = vpop.f32.mrb[0].mxu0
    %1280 = vdwg.mxu0
    %1281 = vmatprep.subr.bf16.mxu0 %v1179
    %1282 = vmatpush1.bf16.msra.mxu0 %v1178
    %1283 = vmatprep.subr.bf16.mxu0 %v1183
    %1284 = vmatpush1.bf16.msra.mxu0 %v1182
    %1285 = vmatprep.subr.bf16.mxu0 %v1187
    %1286 = vmatpush1.bf16.msra.mxu0 %v1186
    %1287 = vmatprep.subr.bf16.mxu0 %v1191
    %1288 = vmatpush1.bf16.msra.mxu0 %v1190
    %1289 = vmatprep.subr.bf16.mxu0 %v1195
    %1290 = vmatpush1.bf16.msra.mxu0 %v1194
    %1291 = vmatprep.subr.bf16.mxu0 %v1199
    %1292 = vmatpush1.bf16.msra.mxu0 %v1198
    %1293 = vmatprep.subr.bf16.mxu0 %v1203
    %1294 = vmatpush1.bf16.msra.mxu0 %v1202
    %1295 = vmatprep.subr.bf16.mxu0 %v1207
    %1296 = vmatpush1.bf16.msra.mxu0 %v1206
    %1297 = vmatprep.subr.bf16.mxu0 0
    %1298 = vmatpush1.bf16.msra.mxu0 0
    %1299 = vmatprep.subr.bf16.mxu0 0
    %1300 = vmatpush1.bf16.msra.mxu0 0
    %1301 = vmatprep.subr.bf16.mxu0 0
    %1302 = vmatpush1.bf16.msra.mxu0 0
    %1303 = vmatprep.subr.bf16.mxu0 0
    %1304 = vmatpush1.bf16.msra.mxu0 0
    %1305 = vmatprep.subr.bf16.mxu0 0
    %1306 = vmatpush1.bf16.msra.mxu0 0
    %1307 = vmatprep.subr.bf16.mxu0 0
    %1308 = vmatpush1.bf16.msra.mxu0 0
    %1309 = vmatprep.subr.bf16.mxu0 0
    %1310 = vmatpush1.bf16.msra.mxu0 0
    %1311 = vmatprep.subr.bf16.mxu0 0
    %1312 = vmatpush1.bf16.msra.mxu0 0
    %1313 = vmatprep.mubr.bf16.mxu0 0
    %1314 = vmatmul.mubr.bf16.gmra.mrb[0].mxu0 0
    %v1315 = vpop.f32.mrb[0].mxu0
    %v1316 = vadd.f32 %v812, %v1315
    %v1317 = vpop.f32.mrb[0].mxu0
    %v1318 = vadd.f32 %v813, %v1317
    %v1319 = vpop.f32.mrb[0].mxu0
    %v1320 = vpop.f32.mrb[0].mxu0
    %1321 = vdwg.mxu0
    %v1322 = vxor.u32 %v1275, 2147483648
    %v1323 = vmul.f32 %v1322, 1.442695
    %v1324 = vpow.pop %v1323
    %v1325 = vadd.f32 %v1324, 1.0
    %v1326 = vrcp.pop %v1325
    %v1327 = vmul.f32 1.0, %v1326
    %v1328 = vxor.u32 %v1277, 2147483648
    %v1329 = vmul.f32 %v1328, 1.442695
    %v1330 = vpow.pop %v1329
    %v1331 = vadd.f32 %v1330, 1.0
    %v1332 = vrcp.pop %v1331
    %v1333 = vmul.f32 1.0, %v1332
    %v1334 = vtanh.pop %v1316
    %v1335 = vxor.u32 %v1318, 2147483648
    %v1336 = vmul.f32 %v1335, 1.442695
    %v1337 = vpow.pop %v1336
    %v1338 = vadd.f32 %v1337, 1.0
    %v1339 = vrcp.pop %v1338
    %v1340 = vmul.f32 1.0, %v1339
    %v1341 = vmul.f32 %v1333, 0.0
    %v1342 = vmul.f32 %v1327, %v1334
    %v1343 = vadd.f32 %v1341, %v1342
    %v1344 = vtanh.pop %v1343
    %v1345 = vmul.f32 %v1340, %v1344
    %v1346 = vld [vmem:[#allocation3] sm:$0xff]
    %v1347 = vadd.f32 %v1346, %v1079
    %1348 = vst [vmem:[#allocation3] sm:$0xff] %v1347
    %v1349 = vld [vmem:[#allocation4] sm:$0xff]
    %v1350 = vadd.f32 %v1349, %v1345
    %1351 = vst [vmem:[#allocation4] sm:$0xff] %v1350
    %v1352 = vpack.c.bf16 %v1079, %v1079
    %v1353 = vpack.c.bf16 %v1345, %v1345
    %s1354 = smul.u32 1, 8
    %s1355 = smul.addr %s1354, 8
    %s1356 = scalar_lea.vmem [#allocation2], %s1355
    %v1357 = vld [vmem:[%s1356] sm:$0xff]
    %v1358 = vld [vmem:[%s1356 + $0x8] sm:$0xff]
    %v1359 = vld [vmem:[%s1356 + $0x10] sm:$0xff]
    %v1360 = vld [vmem:[%s1356 + $0x18] sm:$0xff]
    %s1361 = smul.u32 6, 8
    %s1362 = smul.addr %s1361, 8
    %s1363 = scalar_lea.vmem [#allocation2], %s1362
    %v1364 = vld [vmem:[%s1363 + $0x20] sm:$0xff]
    %v1365 = vld [vmem:[%s1363 + $0x28] sm:$0xff]
    %v1366 = vld [vmem:[%s1363 + $0x30] sm:$0xff]
    %v1367 = vld [vmem:[%s1363 + $0x38] sm:$0xff]
    %1368 = vmatprep.subr.bf16.mxu0 %v911
    %1369 = vmatpush1.bf16.msra.mxu0 %v910
    %1370 = vmatprep.subr.bf16.mxu0 %v915
    %1371 = vmatpush1.bf16.msra.mxu0 %v914
    %1372 = vmatprep.subr.bf16.mxu0 %v919
    %1373 = vmatpush1.bf16.msra.mxu0 %v918
    %1374 = vmatprep.subr.bf16.mxu0 %v923
    %1375 = vmatpush1.bf16.msra.mxu0 %v922
    %1376 = vmatprep.subr.bf16.mxu0 %v927
    %1377 = vmatpush1.bf16.msra.mxu0 %v926
    %1378 = vmatprep.subr.bf16.mxu0 %v931
    %1379 = vmatpush1.bf16.msra.mxu0 %v930
    %1380 = vmatprep.subr.bf16.mxu0 %v935
    %1381 = vmatpush1.bf16.msra.mxu0 %v934
    %1382 = vmatprep.subr.bf16.mxu0 %v939
    %1383 = vmatpush1.bf16.msra.mxu0 %v938
    %1384 = vmatprep.subr.bf16.mxu0 0
    %1385 = vmatpush1.bf16.msra.mxu0 0
    %1386 = vmatprep.subr.bf16.mxu0 0
    %1387 = vmatpush1.bf16.msra.mxu0 0
    %1388 = vmatprep.subr.bf16.mxu0 0
    %1389 = vmatpush1.bf16.msra.mxu0 0
    %1390 = vmatprep.subr.bf16.mxu0 0
    %1391 = vmatpush1.bf16.msra.mxu0 0
    %1392 = vmatprep.subr.bf16.mxu0 0
    %1393 = vmatpush1.bf16.msra.mxu0 0
    %1394 = vmatprep.subr.bf16.mxu0 0
    %1395 = vmatpush1.bf16.msra.mxu0 0
    %1396 = vmatprep.subr.bf16.mxu0 0
    %1397 = vmatpush1.bf16.msra.mxu0 0
    %1398 = vmatprep.subr.bf16.mxu0 0
    %1399 = vmatpush1.bf16.msra.mxu0 0
    %1400 = vmatprep.mubr.bf16.mxu0 0
    %1401 = vmatmul.mubr.bf16.gmra.mrb[0].mxu0 %v1352
    %v1402 = vpop.f32.mrb[0].mxu0
    %v1403 = vadd.f32 %v1357, %v1402
    %v1404 = vpop.f32.mrb[0].mxu0
    %v1405 = vadd.f32 %v1358, %v1404
    %v1406 = vpop.f32.mrb[0].mxu0
    %v1407 = vpop.f32.mrb[0].mxu0
    %1408 = vdwg.mxu0
    %1409 = vmatprep.subr.bf16.mxu0 %v913
    %1410 = vmatpush1.bf16.msra.mxu0 %v912
    %1411 = vmatprep.subr.bf16.mxu0 %v917
    %1412 = vmatpush1.bf16.msra.mxu0 %v916
    %1413 = vmatprep.subr.bf16.mxu0 %v921
    %1414 = vmatpush1.bf16.msra.mxu0 %v920
    %1415 = vmatprep.subr.bf16.mxu0 %v925
    %1416 = vmatpush1.bf16.msra.mxu0 %v924
    %1417 = vmatprep.subr.bf16.mxu0 %v929
    %1418 = vmatpush1.bf16.msra.mxu0 %v928
    %1419 = vmatprep.subr.bf16.mxu0 %v933
    %1420 = vmatpush1.bf16.msra.mxu0 %v932
    %1421 = vmatprep.subr.bf16.mxu0 %v937
    %1422 = vmatpush1.bf16.msra.mxu0 %v936
    %1423 = vmatprep.subr.bf16.mxu0 %v941
    %1424 = vmatpush1.bf16.msra.mxu0 %v940
    %1425 = vmatprep.subr.bf16.mxu0 0
    %1426 = vmatpush1.bf16.msra.mxu0 0
    %1427 = vmatprep.subr.bf16.mxu0 0
    %1428 = vmatpush1.bf16.msra.mxu0 0
    %1429 = vmatprep.subr.bf16.mxu0 0
    %1430 = vmatpush1.bf16.msra.mxu0 0
    %1431 = vmatprep.subr.bf16.mxu0 0
    %1432 = vmatpush1.bf16.msra.mxu0 0
    %1433 = vmatprep.subr.bf16.mxu0 0
    %1434 = vmatpush1.bf16.msra.mxu0 0
    %1435 = vmatprep.subr.bf16.mxu0 0
    %1436 = vmatpush1.bf16.msra.mxu0 0
    %1437 = vmatprep.subr.bf16.mxu0 0
    %1438 = vmatpush1.bf16.msra.mxu0 0
    %1439 = vmatprep.subr.bf16.mxu0 0
    %1440 = vmatpush1.bf16.msra.mxu0 0
    %1441 = vmatprep.mubr.bf16.mxu0 0
    %1442 = vmatmul.mubr.bf16.gmra.mrb[0].mxu0 %v1352
    %v1443 = vpop.f32.mrb[0].mxu0
    %v1444 = vadd.f32 %v1359, %v1443
    %v1445 = vpop.f32.mrb[0].mxu0
    %v1446 = vadd.f32 %v1360, %v1445
    %v1447 = vpop.f32.mrb[0].mxu0
    %v1448 = vpop.f32.mrb[0].mxu0
    %1449 = vdwg.mxu0
    %v1450 = vxor.u32 %v1403, 2147483648
    %v1451 = vmul.f32 %v1450, 1.442695
    %v1452 = vpow.pop %v1451
    %v1453 = vadd.f32 %v1452, 1.0
    %v1454 = vrcp.pop %v1453
    %v1455 = vmul.f32 1.0, %v1454
    %v1456 = vxor.u32 %v1405, 2147483648
    %v1457 = vmul.f32 %v1456, 1.442695
    %v1458 = vpow.pop %v1457
    %v1459 = vadd.f32 %v1458, 1.0
    %v1460 = vrcp.pop %v1459
    %v1461 = vmul.f32 1.0, %v1460
    %v1462 = vtanh.pop %v1444
    %v1463 = vxor.u32 %v1446, 2147483648
    %v1464 = vmul.f32 %v1463, 1.442695
    %v1465 = vpow.pop %v1464
    %v1466 = vadd.f32 %v1465, 1.0
    %v1467 = vrcp.pop %v1466
    %v1468 = vmul.f32 1.0, %v1467
    %v1469 = vmul.f32 %v1461, %v1077
    %v1470 = vmul.f32 %v1455, %v1462
    %v1471 = vadd.f32 %v1469, %v1470
    %v1472 = vtanh.pop %v1471
    %v1473 = vmul.f32 %v1468, %v1472
    %1474 = vmatprep.subr.bf16.mxu0 %v1177
    %1475 = vmatpush1.bf16.msra.mxu0 %v1176
    %1476 = vmatprep.subr.bf16.mxu0 %v1181
    %1477 = vmatpush1.bf16.msra.mxu0 %v1180
    %1478 = vmatprep.subr.bf16.mxu0 %v1185
    %1479 = vmatpush1.bf16.msra.mxu0 %v1184
    %1480 = vmatprep.subr.bf16.mxu0 %v1189
    %1481 = vmatpush1.bf16.msra.mxu0 %v1188
    %1482 = vmatprep.subr.bf16.mxu0 %v1193
    %1483 = vmatpush1.bf16.msra.mxu0 %v1192
    %1484 = vmatprep.subr.bf16.mxu0 %v1197
    %1485 = vmatpush1.bf16.msra.mxu0 %v1196
    %1486 = vmatprep.subr.bf16.mxu0 %v1201
    %1487 = vmatpush1.bf16.msra.mxu0 %v1200
    %1488 = vmatprep.subr.bf16.mxu0 %v1205
    %1489 = vmatpush1.bf16.msra.mxu0 %v1204
    %1490 = vmatprep.subr.bf16.mxu0 0
    %1491 = vmatpush1.bf16.msra.mxu0 0
    %1492 = vmatprep.subr.bf16.mxu0 0
    %1493 = vmatpush1.bf16.msra.mxu0 0
    %1494 = vmatprep.subr.bf16.mxu0 0
    %1495 = vmatpush1.bf16.msra.mxu0 0
    %1496 = vmatprep.subr.bf16.mxu0 0
    %1497 = vmatpush1.bf16.msra.mxu0 0
    %1498 = vmatprep.subr.bf16.mxu0 0
    %1499 = vmatpush1.bf16.msra.mxu0 0
    %1500 = vmatprep.subr.bf16.mxu0 0
    %1501 = vmatpush1.bf16.msra.mxu0 0
    %1502 = vmatprep.subr.bf16.mxu0 0
    %1503 = vmatpush1.bf16.msra.mxu0 0
    %1504 = vmatprep.subr.bf16.mxu0 0
    %1505 = vmatpush1.bf16.msra.mxu0 0
    %1506 = vmatprep.mubr.bf16.mxu0 0
    %1507 = vmatmul.mubr.bf16.gmra.mrb[0].mxu0 %v1353
    %v1508 = vpop.f32.mrb[0].mxu0
    %v1509 = vadd.f32 %v1364, %v1508
    %v1510 = vpop.f32.mrb[0].mxu0
    %v1511 = vadd.f32 %v1365, %v1510
    %v1512 = vpop.f32.mrb[0].mxu0
    %v1513 = vpop.f32.mrb[0].mxu0
    %1514 = vdwg.mxu0
    %1515 = vmatprep.subr.bf16.mxu0 %v1179
    %1516 = vmatpush1.bf16.msra.mxu0 %v1178
    %1517 = vmatprep.subr.bf16.mxu0 %v1183
    %1518 = vmatpush1.bf16.msra.mxu0 %v1182
    %1519 = vmatprep.subr.bf16.mxu0 %v1187
    %1520 = vmatpush1.bf16.msra.mxu0 %v1186
    %1521 = vmatprep.subr.bf16.mxu0 %v1191
    %1522 = vmatpush1.bf16.msra.mxu0 %v1190
    %1523 = vmatprep.subr.bf16.mxu0 %v1195
    %1524 = vmatpush1.bf16.msra.mxu0 %v1194
    %1525 = vmatprep.subr.bf16.mxu0 %v1199
    %1526 = vmatpush1.bf16.msra.mxu0 %v1198
    %1527 = vmatprep.subr.bf16.mxu0 %v1203
    %1528 = vmatpush1.bf16.msra.mxu0 %v1202
    %1529 = vmatprep.subr.bf16.mxu0 %v1207
    %1530 = vmatpush1.bf16.msra.mxu0 %v1206
    %1531 = vmatprep.subr.bf16.mxu0 0
    %1532 = vmatpush1.bf16.msra.mxu0 0
    %1533 = vmatprep.subr.bf16.mxu0 0
    %1534 = vmatpush1.bf16.msra.mxu0 0
    %1535 = vmatprep.subr.bf16.mxu0 0
    %1536 = vmatpush1.bf16.msra.mxu0 0
    %1537 = vmatprep.subr.bf16.mxu0 0
    %1538 = vmatpush1.bf16.msra.mxu0 0
    %1539 = vmatprep.subr.bf16.mxu0 0
    %1540 = vmatpush1.bf16.msra.mxu0 0
    %1541 = vmatprep.subr.bf16.mxu0 0
    %1542 = vmatpush1.bf16.msra.mxu0 0
    %1543 = vmatprep.subr.bf16.mxu0 0
    %1544 = vmatpush1.bf16.msra.mxu0 0
    %1545 = vmatprep.subr.bf16.mxu0 0
    %1546 = vmatpush1.bf16.msra.mxu0 0
    %1547 = vmatprep.mubr.bf16.mxu0 0
    %1548 = vmatmul.mubr.bf16.gmra.mrb[0].mxu0 %v1353
    %v1549 = vpop.f32.mrb[0].mxu0
    %v1550 = vadd.f32 %v1366, %v1549
    %v1551 = vpop.f32.mrb[0].mxu0
    %v1552 = vadd.f32 %v1367, %v1551
    %v1553 = vpop.f32.mrb[0].mxu0
    %v1554 = vpop.f32.mrb[0].mxu0
    %1555 = vdwg.mxu0
    %v1556 = vxor.u32 %v1509, 2147483648
    %v1557 = vmul.f32 %v1556, 1.442695
    %v1558 = vpow.pop %v1557
    %v1559 = vadd.f32 %v1558, 1.0
    %v1560 = vrcp.pop %v1559
    %v1561 = vmul.f32 1.0, %v1560
    %v1562 = vxor.u32 %v1511, 2147483648
    %v1563 = vmul.f32 %v1562, 1.442695
    %v1564 = vpow.pop %v1563
    %v1565 = vadd.f32 %v1564, 1.0
    %v1566 = vrcp.pop %v1565
    %v1567 = vmul.f32 1.0, %v1566
    %v1568 = vtanh.pop %v1550
    %v1569 = vxor.u32 %v1552, 2147483648
    %v1570 = vmul.f32 %v1569, 1.442695
    %v1571 = vpow.pop %v1570
    %v1572 = vadd.f32 %v1571, 1.0
    %v1573 = vrcp.pop %v1572
    %v1574 = vmul.f32 1.0, %v1573
    %v1575 = vmul.f32 %v1567, %v1343
    %v1576 = vmul.f32 %v1561, %v1568
    %v1577 = vadd.f32 %v1575, %v1576
    %v1578 = vtanh.pop %v1577
    %v1579 = vmul.f32 %v1574, %v1578
    %v1580 = vld [vmem:[#allocation3] sm:$0xff]
    %v1581 = vadd.f32 %v1580, %v1473
    %1582 = vst [vmem:[#allocation3] sm:$0xff] %v1581
    %v1583 = vld [vmem:[#allocation4] sm:$0xff]
    %v1584 = vadd.f32 %v1583, %v1579
    %1585 = vst [vmem:[#allocation4] sm:$0xff] %v1584
    %v1586 = vpack.c.bf16 %v1473, %v1473
    %v1587 = vpack.c.bf16 %v1579, %v1579
    %s1588 = smul.u32 2, 8
    %s1589 = smul.addr %s1588, 8
    %s1590 = scalar_lea.vmem [#allocation2], %s1589
    %v1591 = vld [vmem:[%s1590] sm:$0xff]
    %v1592 = vld [vmem:[%s1590 + $0x8] sm:$0xff]
    %v1593 = vld [vmem:[%s1590 + $0x10] sm:$0xff]
    %v1594 = vld [vmem:[%s1590 + $0x18] sm:$0xff]
    %s1595 = smul.u32 5, 8
    %s1596 = smul.addr %s1595, 8
    %s1597 = scalar_lea.vmem [#allocation2], %s1596
    %v1598 = vld [vmem:[%s1597 + $0x20] sm:$0xff]
    %v1599 = vld [vmem:[%s1597 + $0x28] sm:$0xff]
    %v1600 = vld [vmem:[%s1597 + $0x30] sm:$0xff]
    %v1601 = vld [vmem:[%s1597 + $0x38] sm:$0xff]
    %1602 = vmatprep.subr.bf16.mxu0 %v911
    %1603 = vmatpush1.bf16.msra.mxu0 %v910
    %1604 = vmatprep.subr.bf16.mxu0 %v915
    %1605 = vmatpush1.bf16.msra.mxu0 %v914
    %1606 = vmatprep.subr.bf16.mxu0 %v919
    %1607 = vmatpush1.bf16.msra.mxu0 %v918
    %1608 = vmatprep.subr.bf16.mxu0 %v923
    %1609 = vmatpush1.bf16.msra.mxu0 %v922
    %1610 = vmatprep.subr.bf16.mxu0 %v927
    %1611 = vmatpush1.bf16.msra.mxu0 %v926
    %1612 = vmatprep.subr.bf16.mxu0 %v931
    %1613 = vmatpush1.bf16.msra.mxu0 %v930
    %1614 = vmatprep.subr.bf16.mxu0 %v935
    %1615 = vmatpush1.bf16.msra.mxu0 %v934
    %1616 = vmatprep.subr.bf16.mxu0 %v939
    %1617 = vmatpush1.bf16.msra.mxu0 %v938
    %1618 = vmatprep.subr.bf16.mxu0 0
    %1619 = vmatpush1.bf16.msra.mxu0 0
    %1620 = vmatprep.subr.bf16.mxu0 0
    %1621 = vmatpush1.bf16.msra.mxu0 0
    %1622 = vmatprep.subr.bf16.mxu0 0
    %1623 = vmatpush1.bf16.msra.mxu0 0
    %1624 = vmatprep.subr.bf16.mxu0 0
    %1625 = vmatpush1.bf16.msra.mxu0 0
    %1626 = vmatprep.subr.bf16.mxu0 0
    %1627 = vmatpush1.bf16.msra.mxu0 0
    %1628 = vmatprep.subr.bf16.mxu0 0
    %1629 = vmatpush1.bf16.msra.mxu0 0
    %1630 = vmatprep.subr.bf16.mxu0 0
    %1631 = vmatpush1.bf16.msra.mxu0 0
    %1632 = vmatprep.subr.bf16.mxu0 0
    %1633 = vmatpush1.bf16.msra.mxu0 0
    %1634 = vmatprep.mubr.bf16.mxu0 0
    %1635 = vmatmul.mubr.bf16.gmra.mrb[0].mxu0 %v1586
    %v1636 = vpop.f32.mrb[0].mxu0
    %v1637 = vadd.f32 %v1591, %v1636
    %v1638 = vpop.f32.mrb[0].mxu0
    %v1639 = vadd.f32 %v1592, %v1638
    %v1640 = vpop.f32.mrb[0].mxu0
    %v1641 = vpop.f32.mrb[0].mxu0
    %1642 = vdwg.mxu0
    %1643 = vmatprep.subr.bf16.mxu0 %v913
    %1644 = vmatpush1.bf16.msra.mxu0 %v912
    %1645 = vmatprep.subr.bf16.mxu0 %v917
    %1646 = vmatpush1.bf16.msra.mxu0 %v916
    %1647 = vmatprep.subr.bf16.mxu0 %v921
    %1648 = vmatpush1.bf16.msra.mxu0 %v920
    %1649 = vmatprep.subr.bf16.mxu0 %v925
    %1650 = vmatpush1.bf16.msra.mxu0 %v924
    %1651 = vmatprep.subr.bf16.mxu0 %v929
    %1652 = vmatpush1.bf16.msra.mxu0 %v928
    %1653 = vmatprep.subr.bf16.mxu0 %v933
    %1654 = vmatpush1.bf16.msra.mxu0 %v932
    %1655 = vmatprep.subr.bf16.mxu0 %v937
    %1656 = vmatpush1.bf16.msra.mxu0 %v936
    %1657 = vmatprep.subr.bf16.mxu0 %v941
    %1658 = vmatpush1.bf16.msra.mxu0 %v940
    %1659 = vmatprep.subr.bf16.mxu0 0
    %1660 = vmatpush1.bf16.msra.mxu0 0
    %1661 = vmatprep.subr.bf16.mxu0 0
    %1662 = vmatpush1.bf16.msra.mxu0 0
    %1663 = vmatprep.subr.bf16.mxu0 0
    %1664 = vmatpush1.bf16.msra.mxu0 0
    %1665 = vmatprep.subr.bf16.mxu0 0
    %1666 = vmatpush1.bf16.msra.mxu0 0
    %1667 = vmatprep.subr.bf16.mxu0 0
    %1668 = vmatpush1.bf16.msra.mxu0 0
    %1669 = vmatprep.subr.bf16.mxu0 0
    %1670 = vmatpush1.bf16.msra.mxu0 0
    %1671 = vmatprep.subr.bf16.mxu0 0
    %1672 = vmatpush1.bf16.msra.mxu0 0
    %1673 = vmatprep.subr.bf16.mxu0 0
    %1674 = vmatpush1.bf16.msra.mxu0 0
    %1675 = vmatprep.mubr.bf16.mxu0 0
    %1676 = vmatmul.mubr.bf16.gmra.mrb[0].mxu0 %v1586
    %v1677 = vpop.f32.mrb[0].mxu0
    %v1678 = vadd.f32 %v1593, %v1677
    %v1679 = vpop.f32.mrb[0].mxu0
    %v1680 = vadd.f32 %v1594, %v1679
    %v1681 = vpop.f32.mrb[0].mxu0
    %v1682 = vpop.f32.mrb[0].mxu0
    %1683 = vdwg.mxu0
    %v1684 = vxor.u32 %v1637, 2147483648
    %v1685 = vmul.f32 %v1684, 1.442695
    %v1686 = vpow.pop %v1685
    %v1687 = vadd.f32 %v1686, 1.0
    %v1688 = vrcp.pop %v1687
    %v1689 = vmul.f32 1.0, %v1688
    %v1690 = vxor.u32 %v1639, 2147483648
    %v1691 = vmul.f32 %v1690, 1.442695
    %v1692 = vpow.pop %v1691
    %v1693 = vadd.f32 %v1692, 1.0
    %v1694 = vrcp.pop %v1693
    %v1695 = vmul.f32 1.0, %v1694
    %v1696 = vtanh.pop %v1678
    %v1697 = vxor.u32 %v1680, 2147483648
    %v1698 = vmul.f32 %v1697, 1.442695
    %v1699 = vpow.pop %v1698
    %v1700 = vadd.f32 %v1699, 1.0
    %v1701 = vrcp.pop %v1700
    %v1702 = vmul.f32 1.0, %v1701
    %v1703 = vmul.f32 %v1695, %v1471
    %v1704 = vmul.f32 %v1689, %v1696
    %v1705 = vadd.f32 %v1703, %v1704
    %v1706 = vtanh.pop %v1705
    %v1707 = vmul.f32 %v1702, %v1706
    %1708 = vmatprep.subr.bf16.mxu0 %v1177
    %1709 = vmatpush1.bf16.msra.mxu0 %v1176
    %1710 = vmatprep.subr.bf16.mxu0 %v1181
    %1711 = vmatpush1.bf16.msra.mxu0 %v1180
    %1712 = vmatprep.subr.bf16.mxu0 %v1185
    %1713 = vmatpush1.bf16.msra.mxu0 %v1184
    %1714 = vmatprep.subr.bf16.mxu0 %v1189
    %1715 = vmatpush1.bf16.msra.mxu0 %v1188
    %1716 = vmatprep.subr.bf16.mxu0 %v1193
    %1717 = vmatpush1.bf16.msra.mxu0 %v1192
    %1718 = vmatprep.subr.bf16.mxu0 %v1197
    %1719 = vmatpush1.bf16.msra.mxu0 %v1196
    %1720 = vmatprep.subr.bf16.mxu0 %v1201
    %1721 = vmatpush1.bf16.msra.mxu0 %v1200
    %1722 = vmatprep.subr.bf16.mxu0 %v1205
    %1723 = vmatpush1.bf16.msra.mxu0 %v1204
    %1724 = vmatprep.subr.bf16.mxu0 0
    %1725 = vmatpush1.bf16.msra.mxu0 0
    %1726 = vmatprep.subr.bf16.mxu0 0
    %1727 = vmatpush1.bf16.msra.mxu0 0
    %1728 = vmatprep.subr.bf16.mxu0 0
    %1729 = vmatpush1.bf16.msra.mxu0 0
    %1730 = vmatprep.subr.bf16.mxu0 0
    %1731 = vmatpush1.bf16.msra.mxu0 0
    %1732 = vmatprep.subr.bf16.mxu0 0
    %1733 = vmatpush1.bf16.msra.mxu0 0
    %1734 = vmatprep.subr.bf16.mxu0 0
    %1735 = vmatpush1.bf16.msra.mxu0 0
    %1736 = vmatprep.subr.bf16.mxu0 0
    %1737 = vmatpush1.bf16.msra.mxu0 0
    %1738 = vmatprep.subr.bf16.mxu0 0
    %1739 = vmatpush1.bf16.msra.mxu0 0
    %1740 = vmatprep.mubr.bf16.mxu0 0
    %1741 = vmatmul.mubr.bf16.gmra.mrb[0].mxu0 %v1587
    %v1742 = vpop.f32.mrb[0].mxu0
    %v1743 = vadd.f32 %v1598, %v1742
    %v1744 = vpop.f32.mrb[0].mxu0
    %v1745 = vadd.f32 %v1599, %v1744
    %v1746 = vpop.f32.mrb[0].mxu0
    %v1747 = vpop.f32.mrb[0].mxu0
    %1748 = vdwg.mxu0
    %1749 = vmatprep.subr.bf16.mxu0 %v1179
    %1750 = vmatpush1.bf16.msra.mxu0 %v1178
    %1751 = vmatprep.subr.bf16.mxu0 %v1183
    %1752 = vmatpush1.bf16.msra.mxu0 %v1182
    %1753 = vmatprep.subr.bf16.mxu0 %v1187
    %1754 = vmatpush1.bf16.msra.mxu0 %v1186
    %1755 = vmatprep.subr.bf16.mxu0 %v1191
    %1756 = vmatpush1.bf16.msra.mxu0 %v1190
    %1757 = vmatprep.subr.bf16.mxu0 %v1195
    %1758 = vmatpush1.bf16.msra.mxu0 %v1194
    %1759 = vmatprep.subr.bf16.mxu0 %v1199
    %1760 = vmatpush1.bf16.msra.mxu0 %v1198
    %1761 = vmatprep.subr.bf16.mxu0 %v1203
    %1762 = vmatpush1.bf16.msra.mxu0 %v1202
    %1763 = vmatprep.subr.bf16.mxu0 %v1207
    %1764 = vmatpush1.bf16.msra.mxu0 %v1206
    %1765 = vmatprep.subr.bf16.mxu0 0
    %1766 = vmatpush1.bf16.msra.mxu0 0
    %1767 = vmatprep.subr.bf16.mxu0 0
    %1768 = vmatpush1.bf16.msra.mxu0 0
    %1769 = vmatprep.subr.bf16.mxu0 0
    %1770 = vmatpush1.bf16.msra.mxu0 0
    %1771 = vmatprep.subr.bf16.mxu0 0
    %1772 = vmatpush1.bf16.msra.mxu0 0
    %1773 = vmatprep.subr.bf16.mxu0 0
    %1774 = vmatpush1.bf16.msra.mxu0 0
    %1775 = vmatprep.subr.bf16.mxu0 0
    %1776 = vmatpush1.bf16.msra.mxu0 0
    %1777 = vmatprep.subr.bf16.mxu0 0
    %1778 = vmatpush1.bf16.msra.mxu0 0
    %1779 = vmatprep.subr.bf16.mxu0 0
    %1780 = vmatpush1.bf16.msra.mxu0 0
    %1781 = vmatprep.mubr.bf16.mxu0 0
    %1782 = vmatmul.mubr.bf16.gmra.mrb[0].mxu0 %v1587
    %v1783 = vpop.f32.mrb[0].mxu0
    %v1784 = vadd.f32 %v1600, %v1783
    %v1785 = vpop.f32.mrb[0].mxu0
    %v1786 = vadd.f32 %v1601, %v1785
    %v1787 = vpop.f32.mrb[0].mxu0
    %v1788 = vpop.f32.mrb[0].mxu0
    %1789 = vdwg.mxu0
    %v1790 = vxor.u32 %v1743, 2147483648
    %v1791 = vmul.f32 %v1790, 1.442695
    %v1792 = vpow.pop %v1791
    %v1793 = vadd.f32 %v1792, 1.0
    %v1794 = vrcp.pop %v1793
    %v1795 = vmul.f32 1.0, %v1794
    %v1796 = vxor.u32 %v1745, 2147483648
    %v1797 = vmul.f32 %v1796, 1.442695
    %v1798 = vpow.pop %v1797
    %v1799 = vadd.f32 %v1798, 1.0
    %v1800 = vrcp.pop %v1799
    %v1801 = vmul.f32 1.0, %v1800
    %v1802 = vtanh.pop %v1784
    %v1803 = vxor.u32 %v1786, 2147483648
    %v1804 = vmul.f32 %v1803, 1.442695
    %v1805 = vpow.pop %v1804
    %v1806 = vadd.f32 %v1805, 1.0
    %v1807 = vrcp.pop %v1806
    %v1808 = vmul.f32 1.0, %v1807
    %v1809 = vmul.f32 %v1801, %v1577
    %v1810 = vmul.f32 %v1795, %v1802
    %v1811 = vadd.f32 %v1809, %v1810
    %v1812 = vtanh.pop %v1811
    %v1813 = vmul.f32 %v1808, %v1812
    %v1814 = vld [vmem:[#allocation3] sm:$0xff]
    %v1815 = vadd.f32 %v1814, %v1707
    %1816 = vst [vmem:[#allocation3] sm:$0xff] %v1815
    %v1817 = vld [vmem:[#allocation4] sm:$0xff]
    %v1818 = vadd.f32 %v1817, %v1813
    %1819 = vst [vmem:[#allocation4] sm:$0xff] %v1818
    %v1820 = vpack.c.bf16 %v1707, %v1707
    %v1821 = vpack.c.bf16 %v1813, %v1813
    %s1822 = smul.u32 3, 8
    %s1823 = smul.addr %s1822, 8
    %s1824 = scalar_lea.vmem [#allocation2], %s1823
    %v1825 = vld [vmem:[%s1824] sm:$0xff]
    %v1826 = vld [vmem:[%s1824 + $0x8] sm:$0xff]
    %v1827 = vld [vmem:[%s1824 + $0x10] sm:$0xff]
    %v1828 = vld [vmem:[%s1824 + $0x18] sm:$0xff]
    %s1829 = smul.u32 4, 8
    %s1830 = smul.addr %s1829, 8
    %s1831 = scalar_lea.vmem [#allocation2], %s1830
    %v1832 = vld [vmem:[%s1831 + $0x20] sm:$0xff]
    %v1833 = vld [vmem:[%s1831 + $0x28] sm:$0xff]
    %v1834 = vld [vmem:[%s1831 + $0x30] sm:$0xff]
    %v1835 = vld [vmem:[%s1831 + $0x38] sm:$0xff]
    %1836 = vmatprep.subr.bf16.mxu0 %v911
    %1837 = vmatpush1.bf16.msra.mxu0 %v910
    %1838 = vmatprep.subr.bf16.mxu0 %v915
    %1839 = vmatpush1.bf16.msra.mxu0 %v914
    %1840 = vmatprep.subr.bf16.mxu0 %v919
    %1841 = vmatpush1.bf16.msra.mxu0 %v918
    %1842 = vmatprep.subr.bf16.mxu0 %v923
    %1843 = vmatpush1.bf16.msra.mxu0 %v922
    %1844 = vmatprep.subr.bf16.mxu0 %v927
    %1845 = vmatpush1.bf16.msra.mxu0 %v926
    %1846 = vmatprep.subr.bf16.mxu0 %v931
    %1847 = vmatpush1.bf16.msra.mxu0 %v930
    %1848 = vmatprep.subr.bf16.mxu0 %v935
    %1849 = vmatpush1.bf16.msra.mxu0 %v934
    %1850 = vmatprep.subr.bf16.mxu0 %v939
    %1851 = vmatpush1.bf16.msra.mxu0 %v938
    %1852 = vmatprep.subr.bf16.mxu0 0
    %1853 = vmatpush1.bf16.msra.mxu0 0
    %1854 = vmatprep.subr.bf16.mxu0 0
    %1855 = vmatpush1.bf16.msra.mxu0 0
    %1856 = vmatprep.subr.bf16.mxu0 0
    %1857 = vmatpush1.bf16.msra.mxu0 0
    %1858 = vmatprep.subr.bf16.mxu0 0
    %1859 = vmatpush1.bf16.msra.mxu0 0
    %1860 = vmatprep.subr.bf16.mxu0 0
    %1861 = vmatpush1.bf16.msra.mxu0 0
    %1862 = vmatprep.subr.bf16.mxu0 0
    %1863 = vmatpush1.bf16.msra.mxu0 0
    %1864 = vmatprep.subr.bf16.mxu0 0
    %1865 = vmatpush1.bf16.msra.mxu0 0
    %1866 = vmatprep.subr.bf16.mxu0 0
    %1867 = vmatpush1.bf16.msra.mxu0 0
    %1868 = vmatprep.mubr.bf16.mxu0 0
    %1869 = vmatmul.mubr.bf16.gmra.mrb[0].mxu0 %v1820
    %v1870 = vpop.f32.mrb[0].mxu0
    %v1871 = vadd.f32 %v1825, %v1870
    %v1872 = vpop.f32.mrb[0].mxu0
    %v1873 = vadd.f32 %v1826, %v1872
    %v1874 = vpop.f32.mrb[0].mxu0
    %v1875 = vpop.f32.mrb[0].mxu0
    %1876 = vdwg.mxu0
    %1877 = vmatprep.subr.bf16.mxu0 %v913
    %1878 = vmatpush1.bf16.msra.mxu0 %v912
    %1879 = vmatprep.subr.bf16.mxu0 %v917
    %1880 = vmatpush1.bf16.msra.mxu0 %v916
    %1881 = vmatprep.subr.bf16.mxu0 %v921
    %1882 = vmatpush1.bf16.msra.mxu0 %v920
    %1883 = vmatprep.subr.bf16.mxu0 %v925
    %1884 = vmatpush1.bf16.msra.mxu0 %v924
    %1885 = vmatprep.subr.bf16.mxu0 %v929
    %1886 = vmatpush1.bf16.msra.mxu0 %v928
    %1887 = vmatprep.subr.bf16.mxu0 %v933
    %1888 = vmatpush1.bf16.msra.mxu0 %v932
    %1889 = vmatprep.subr.bf16.mxu0 %v937
    %1890 = vmatpush1.bf16.msra.mxu0 %v936
    %1891 = vmatprep.subr.bf16.mxu0 %v941
    %1892 = vmatpush1.bf16.msra.mxu0 %v940
    %1893 = vmatprep.subr.bf16.mxu0 0
    %1894 = vmatpush1.bf16.msra.mxu0 0
    %1895 = vmatprep.subr.bf16.mxu0 0
    %1896 = vmatpush1.bf16.msra.mxu0 0
    %1897 = vmatprep.subr.bf16.mxu0 0
    %1898 = vmatpush1.bf16.msra.mxu0 0
    %1899 = vmatprep.subr.bf16.mxu0 0
    %1900 = vmatpush1.bf16.msra.mxu0 0
    %1901 = vmatprep.subr.bf16.mxu0 0
    %1902 = vmatpush1.bf16.msra.mxu0 0
    %1903 = vmatprep.subr.bf16.mxu0 0
    %1904 = vmatpush1.bf16.msra.mxu0 0
    %1905 = vmatprep.subr.bf16.mxu0 0
    %1906 = vmatpush1.bf16.msra.mxu0 0
    %1907 = vmatprep.subr.bf16.mxu0 0
    %1908 = vmatpush1.bf16.msra.mxu0 0
    %1909 = vmatprep.mubr.bf16.mxu0 0
    %1910 = vmatmul.mubr.bf16.gmra.mrb[0].mxu0 %v1820
    %v1911 = vpop.f32.mrb[0].mxu0
    %v1912 = vadd.f32 %v1827, %v1911
    %v1913 = vpop.f32.mrb[0].mxu0
    %v1914 = vadd.f32 %v1828, %v1913
    %v1915 = vpop.f32.mrb[0].mxu0
    %v1916 = vpop.f32.mrb[0].mxu0
    %1917 = vdwg.mxu0
    %v1918 = vxor.u32 %v1871, 2147483648
    %v1919 = vmul.f32 %v1918, 1.442695
    %v1920 = vpow.pop %v1919
    %v1921 = vadd.f32 %v1920, 1.0
    %v1922 = vrcp.pop %v1921
    %v1923 = vmul.f32 1.0, %v1922
    %v1924 = vxor.u32 %v1873, 2147483648
    %v1925 = vmul.f32 %v1924, 1.442695
    %v1926 = vpow.pop %v1925
    %v1927 = vadd.f32 %v1926, 1.0
    %v1928 = vrcp.pop %v1927
    %v1929 = vmul.f32 1.0, %v1928
    %v1930 = vtanh.pop %v1912
    %v1931 = vxor.u32 %v1914, 2147483648
    %v1932 = vmul.f32 %v1931, 1.442695
    %v1933 = vpow.pop %v1932
    %v1934 = vadd.f32 %v1933, 1.0
    %v1935 = vrcp.pop %v1934
    %v1936 = vmul.f32 1.0, %v1935
    %v1937 = vmul.f32 %v1929, %v1705
    %v1938 = vmul.f32 %v1923, %v1930
    %v1939 = vadd.f32 %v1937, %v1938
    %v1940 = vtanh.pop %v1939
    %v1941 = vmul.f32 %v1936, %v1940
    %1942 = vmatprep.subr.bf16.mxu0 %v1177
    %1943 = vmatpush1.bf16.msra.mxu0 %v1176
    %1944 = vmatprep.subr.bf16.mxu0 %v1181
    %1945 = vmatpush1.bf16.msra.mxu0 %v1180
    %1946 = vmatprep.subr.bf16.mxu0 %v1185
    %1947 = vmatpush1.bf16.msra.mxu0 %v1184
    %1948 = vmatprep.subr.bf16.mxu0 %v1189
    %1949 = vmatpush1.bf16.msra.mxu0 %v1188
    %1950 = vmatprep.subr.bf16.mxu0 %v1193
    %1951 = vmatpush1.bf16.msra.mxu0 %v1192
    %1952 = vmatprep.subr.bf16.mxu0 %v1197
    %1953 = vmatpush1.bf16.msra.mxu0 %v1196
    %1954 = vmatprep.subr.bf16.mxu0 %v1201
    %1955 = vmatpush1.bf16.msra.mxu0 %v1200
    %1956 = vmatprep.subr.bf16.mxu0 %v1205
    %1957 = vmatpush1.bf16.msra.mxu0 %v1204
    %1958 = vmatprep.subr.bf16.mxu0 0
    %1959 = vmatpush1.bf16.msra.mxu0 0
    %1960 = vmatprep.subr.bf16.mxu0 0
    %1961 = vmatpush1.bf16.msra.mxu0 0
    %1962 = vmatprep.subr.bf16.mxu0 0
    %1963 = vmatpush1.bf16.msra.mxu0 0
    %1964 = vmatprep.subr.bf16.mxu0 0
    %1965 = vmatpush1.bf16.msra.mxu0 0
    %1966 = vmatprep.subr.bf16.mxu0 0
    %1967 = vmatpush1.bf16.msra.mxu0 0
    %1968 = vmatprep.subr.bf16.mxu0 0
    %1969 = vmatpush1.bf16.msra.mxu0 0
    %1970 = vmatprep.subr.bf16.mxu0 0
    %1971 = vmatpush1.bf16.msra.mxu0 0
    %1972 = vmatprep.subr.bf16.mxu0 0
    %1973 = vmatpush1.bf16.msra.mxu0 0
    %1974 = vmatprep.mubr.bf16.mxu0 0
    %1975 = vmatmul.mubr.bf16.gmra.mrb[0].mxu0 %v1821
    %v1976 = vpop.f32.mrb[0].mxu0
    %v1977 = vadd.f32 %v1832, %v1976
    %v1978 = vpop.f32.mrb[0].mxu0
    %v1979 = vadd.f32 %v1833, %v1978
    %v1980 = vpop.f32.mrb[0].mxu0
    %v1981 = vpop.f32.mrb[0].mxu0
    %1982 = vdwg.mxu0
    %1983 = vmatprep.subr.bf16.mxu0 %v1179
    %1984 = vmatpush1.bf16.msra.mxu0 %v1178
    %1985 = vmatprep.subr.bf16.mxu0 %v1183
    %1986 = vmatpush1.bf16.msra.mxu0 %v1182
    %1987 = vmatprep.subr.bf16.mxu0 %v1187
    %1988 = vmatpush1.bf16.msra.mxu0 %v1186
    %1989 = vmatprep.subr.bf16.mxu0 %v1191
    %1990 = vmatpush1.bf16.msra.mxu0 %v1190
    %1991 = vmatprep.subr.bf16.mxu0 %v1195
    %1992 = vmatpush1.bf16.msra.mxu0 %v1194
    %1993 = vmatprep.subr.bf16.mxu0 %v1199
    %1994 = vmatpush1.bf16.msra.mxu0 %v1198
    %1995 = vmatprep.subr.bf16.mxu0 %v1203
    %1996 = vmatpush1.bf16.msra.mxu0 %v1202
    %1997 = vmatprep.subr.bf16.mxu0 %v1207
    %1998 = vmatpush1.bf16.msra.mxu0 %v1206
    %1999 = vmatprep.subr.bf16.mxu0 0
    %2000 = vmatpush1.bf16.msra.mxu0 0
    %2001 = vmatprep.subr.bf16.mxu0 0
    %2002 = vmatpush1.bf16.msra.mxu0 0
    %2003 = vmatprep.subr.bf16.mxu0 0
    %2004 = vmatpush1.bf16.msra.mxu0 0
    %2005 = vmatprep.subr.bf16.mxu0 0
    %2006 = vmatpush1.bf16.msra.mxu0 0
    %2007 = vmatprep.subr.bf16.mxu0 0
    %2008 = vmatpush1.bf16.msra.mxu0 0
    %2009 = vmatprep.subr.bf16.mxu0 0
    %2010 = vmatpush1.bf16.msra.mxu0 0
    %2011 = vmatprep.subr.bf16.mxu0 0
    %2012 = vmatpush1.bf16.msra.mxu0 0
    %2013 = vmatprep.subr.bf16.mxu0 0
    %2014 = vmatpush1.bf16.msra.mxu0 0
    %2015 = vmatprep.mubr.bf16.mxu0 0
    %2016 = vmatmul.mubr.bf16.gmra.mrb[0].mxu0 %v1821
    %v2017 = vpop.f32.mrb[0].mxu0
    %v2018 = vadd.f32 %v1834, %v2017
    %v2019 = vpop.f32.mrb[0].mxu0
    %v2020 = vadd.f32 %v1835, %v2019
    %v2021 = vpop.f32.mrb[0].mxu0
    %v2022 = vpop.f32.mrb[0].mxu0
    %2023 = vdwg.mxu0
    %v2024 = vxor.u32 %v1977, 2147483648
    %v2025 = vmul.f32 %v2024, 1.442695
    %v2026 = vpow.pop %v2025
    %v2027 = vadd.f32 %v2026, 1.0
    %v2028 = vrcp.pop %v2027
    %v2029 = vmul.f32 1.0, %v2028
    %v2030 = vxor.u32 %v1979, 2147483648
    %v2031 = vmul.f32 %v2030, 1.442695
    %v2032 = vpow.pop %v2031
    %v2033 = vadd.f32 %v2032, 1.0
    %v2034 = vrcp.pop %v2033
    %v2035 = vmul.f32 1.0, %v2034
    %v2036 = vtanh.pop %v2018
    %v2037 = vxor.u32 %v2020, 2147483648
    %v2038 = vmul.f32 %v2037, 1.442695
    %v2039 = vpow.pop %v2038
    %v2040 = vadd.f32 %v2039, 1.0
    %v2041 = vrcp.pop %v2040
    %v2042 = vmul.f32 1.0, %v2041
    %v2043 = vmul.f32 %v2035, %v1811
    %v2044 = vmul.f32 %v2029, %v2036
    %v2045 = vadd.f32 %v2043, %v2044
    %v2046 = vtanh.pop %v2045
    %v2047 = vmul.f32 %v2042, %v2046
    %v2048 = vld [vmem:[#allocation3] sm:$0xff]
    %v2049 = vadd.f32 %v2048, %v1941
    %2050 = vst [vmem:[#allocation3] sm:$0xff] %v2049
    %v2051 = vld [vmem:[#allocation4] sm:$0xff]
    %v2052 = vadd.f32 %v2051, %v2047
    %2053 = vst [vmem:[#allocation4] sm:$0xff] %v2052
    %v2054 = vpack.c.bf16 %v1941, %v1941
    %v2055 = vpack.c.bf16 %v2047, %v2047
    %v2056 = vld [vmem:[%s1831] sm:$0xff]
    %v2057 = vld [vmem:[%s1831 + $0x8] sm:$0xff]
    %v2058 = vld [vmem:[%s1831 + $0x10] sm:$0xff]
    %v2059 = vld [vmem:[%s1831 + $0x18] sm:$0xff]
    %v2060 = vld [vmem:[%s1824 + $0x20] sm:$0xff]
    %v2061 = vld [vmem:[%s1824 + $0x28] sm:$0xff]
    %v2062 = vld [vmem:[%s1824 + $0x30] sm:$0xff]
    %v2063 = vld [vmem:[%s1824 + $0x38] sm:$0xff]
    %2064 = vmatprep.subr.bf16.mxu0 %v911
    %2065 = vmatpush1.bf16.msra.mxu0 %v910
    %2066 = vmatprep.subr.bf16.mxu0 %v915
    %2067 = vmatpush1.bf16.msra.mxu0 %v914
    %2068 = vmatprep.subr.bf16.mxu0 %v919
    %2069 = vmatpush1.bf16.msra.mxu0 %v918
    %2070 = vmatprep.subr.bf16.mxu0 %v923
    %2071 = vmatpush1.bf16.msra.mxu0 %v922
    %2072 = vmatprep.subr.bf16.mxu0 %v927
    %2073 = vmatpush1.bf16.msra.mxu0 %v926
    %2074 = vmatprep.subr.bf16.mxu0 %v931
    %2075 = vmatpush1.bf16.msra.mxu0 %v930
    %2076 = vmatprep.subr.bf16.mxu0 %v935
    %2077 = vmatpush1.bf16.msra.mxu0 %v934
    %2078 = vmatprep.subr.bf16.mxu0 %v939
    %2079 = vmatpush1.bf16.msra.mxu0 %v938
    %2080 = vmatprep.subr.bf16.mxu0 0
    %2081 = vmatpush1.bf16.msra.mxu0 0
    %2082 = vmatprep.subr.bf16.mxu0 0
    %2083 = vmatpush1.bf16.msra.mxu0 0
    %2084 = vmatprep.subr.bf16.mxu0 0
    %2085 = vmatpush1.bf16.msra.mxu0 0
    %2086 = vmatprep.subr.bf16.mxu0 0
    %2087 = vmatpush1.bf16.msra.mxu0 0
    %2088 = vmatprep.subr.bf16.mxu0 0
    %2089 = vmatpush1.bf16.msra.mxu0 0
    %2090 = vmatprep.subr.bf16.mxu0 0
    %2091 = vmatpush1.bf16.msra.mxu0 0
    %2092 = vmatprep.subr.bf16.mxu0 0
    %2093 = vmatpush1.bf16.msra.mxu0 0
    %2094 = vmatprep.subr.bf16.mxu0 0
    %2095 = vmatpush1.bf16.msra.mxu0 0
    %2096 = vmatprep.mubr.bf16.mxu0 0
    %2097 = vmatmul.mubr.bf16.gmra.mrb[0].mxu0 %v2054
    %v2098 = vpop.f32.mrb[0].mxu0
    %v2099 = vadd.f32 %v2056, %v2098
    %v2100 = vpop.f32.mrb[0].mxu0
    %v2101 = vadd.f32 %v2057, %v2100
    %v2102 = vpop.f32.mrb[0].mxu0
    %v2103 = vpop.f32.mrb[0].mxu0
    %2104 = vdwg.mxu0
    %2105 = vmatprep.subr.bf16.mxu0 %v913
    %2106 = vmatpush1.bf16.msra.mxu0 %v912
    %2107 = vmatprep.subr.bf16.mxu0 %v917
    %2108 = vmatpush1.bf16.msra.mxu0 %v916
    %2109 = vmatprep.subr.bf16.mxu0 %v921
    %2110 = vmatpush1.bf16.msra.mxu0 %v920
    %2111 = vmatprep.subr.bf16.mxu0 %v925
    %2112 = vmatpush1.bf16.msra.mxu0 %v924
    %2113 = vmatprep.subr.bf16.mxu0 %v929
    %2114 = vmatpush1.bf16.msra.mxu0 %v928
    %2115 = vmatprep.subr.bf16.mxu0 %v933
    %2116 = vmatpush1.bf16.msra.mxu0 %v932
    %2117 = vmatprep.subr.bf16.mxu0 %v937
    %2118 = vmatpush1.bf16.msra.mxu0 %v936
    %2119 = vmatprep.subr.bf16.mxu0 %v941
    %2120 = vmatpush1.bf16.msra.mxu0 %v940
    %2121 = vmatprep.subr.bf16.mxu0 0
    %2122 = vmatpush1.bf16.msra.mxu0 0
    %2123 = vmatprep.subr.bf16.mxu0 0
    %2124 = vmatpush1.bf16.msra.mxu0 0
    %2125 = vmatprep.subr.bf16.mxu0 0
    %2126 = vmatpush1.bf16.msra.mxu0 0
    %2127 = vmatprep.subr.bf16.mxu0 0
    %2128 = vmatpush1.bf16.msra.mxu0 0
    %2129 = vmatprep.subr.bf16.mxu0 0
    %2130 = vmatpush1.bf16.msra.mxu0 0
    %2131 = vmatprep.subr.bf16.mxu0 0
    %2132 = vmatpush1.bf16.msra.mxu0 0
    %2133 = vmatprep.subr.bf16.mxu0 0
    %2134 = vmatpush1.bf16.msra.mxu0 0
    %2135 = vmatprep.subr.bf16.mxu0 0
    %2136 = vmatpush1.bf16.msra.mxu0 0
    %2137 = vmatprep.mubr.bf16.mxu0 0
    %2138 = vmatmul.mubr.bf16.gmra.mrb[0].mxu0 %v2054
    %v2139 = vpop.f32.mrb[0].mxu0
    %v2140 = vadd.f32 %v2058, %v2139
    %v2141 = vpop.f32.mrb[0].mxu0
    %v2142 = vadd.f32 %v2059, %v2141
    %v2143 = vpop.f32.mrb[0].mxu0
    %v2144 = vpop.f32.mrb[0].mxu0
    %2145 = vdwg.mxu0
    %v2146 = vxor.u32 %v2099, 2147483648
    %v2147 = vmul.f32 %v2146, 1.442695
    %v2148 = vpow.pop %v2147
    %v2149 = vadd.f32 %v2148, 1.0
    %v2150 = vrcp.pop %v2149
    %v2151 = vmul.f32 1.0, %v2150
    %v2152 = vxor.u32 %v2101, 2147483648
    %v2153 = vmul.f32 %v2152, 1.442695
    %v2154 = vpow.pop %v2153
    %v2155 = vadd.f32 %v2154, 1.0
    %v2156 = vrcp.pop %v2155
    %v2157 = vmul.f32 1.0, %v2156
    %v2158 = vtanh.pop %v2140
    %v2159 = vxor.u32 %v2142, 2147483648
    %v2160 = vmul.f32 %v2159, 1.442695
    %v2161 = vpow.pop %v2160
    %v2162 = vadd.f32 %v2161, 1.0
    %v2163 = vrcp.pop %v2162
    %v2164 = vmul.f32 1.0, %v2163
    %v2165 = vmul.f32 %v2157, %v1939
    %v2166 = vmul.f32 %v2151, %v2158
    %v2167 = vadd.f32 %v2165, %v2166
    %v2168 = vtanh.pop %v2167
    %v2169 = vmul.f32 %v2164, %v2168
    %2170 = vmatprep.subr.bf16.mxu0 %v1177
    %2171 = vmatpush1.bf16.msra.mxu0 %v1176
    %2172 = vmatprep.subr.bf16.mxu0 %v1181
    %2173 = vmatpush1.bf16.msra.mxu0 %v1180
    %2174 = vmatprep.subr.bf16.mxu0 %v1185
    %2175 = vmatpush1.bf16.msra.mxu0 %v1184
    %2176 = vmatprep.subr.bf16.mxu0 %v1189
    %2177 = vmatpush1.bf16.msra.mxu0 %v1188
    %2178 = vmatprep.subr.bf16.mxu0 %v1193
    %2179 = vmatpush1.bf16.msra.mxu0 %v1192
    %2180 = vmatprep.subr.bf16.mxu0 %v1197
    %2181 = vmatpush1.bf16.msra.mxu0 %v1196
    %2182 = vmatprep.subr.bf16.mxu0 %v1201
    %2183 = vmatpush1.bf16.msra.mxu0 %v1200
    %2184 = vmatprep.subr.bf16.mxu0 %v1205
    %2185 = vmatpush1.bf16.msra.mxu0 %v1204
    %2186 = vmatprep.subr.bf16.mxu0 0
    %2187 = vmatpush1.bf16.msra.mxu0 0
    %2188 = vmatprep.subr.bf16.mxu0 0
    %2189 = vmatpush1.bf16.msra.mxu0 0
    %2190 = vmatprep.subr.bf16.mxu0 0
    %2191 = vmatpush1.bf16.msra.mxu0 0
    %2192 = vmatprep.subr.bf16.mxu0 0
    %2193 = vmatpush1.bf16.msra.mxu0 0
    %2194 = vmatprep.subr.bf16.mxu0 0
    %2195 = vmatpush1.bf16.msra.mxu0 0
    %2196 = vmatprep.subr.bf16.mxu0 0
    %2197 = vmatpush1.bf16.msra.mxu0 0
    %2198 = vmatprep.subr.bf16.mxu0 0
    %2199 = vmatpush1.bf16.msra.mxu0 0
    %2200 = vmatprep.subr.bf16.mxu0 0
    %2201 = vmatpush1.bf16.msra.mxu0 0
    %2202 = vmatprep.mubr.bf16.mxu0 0
    %2203 = vmatmul.mubr.bf16.gmra.mrb[0].mxu0 %v2055
    %v2204 = vpop.f32.mrb[0].mxu0
    %v2205 = vadd.f32 %v2060, %v2204
    %v2206 = vpop.f32.mrb[0].mxu0
    %v2207 = vadd.f32 %v2061, %v2206
    %v2208 = vpop.f32.mrb[0].mxu0
    %v2209 = vpop.f32.mrb[0].mxu0
    %2210 = vdwg.mxu0
    %2211 = vmatprep.subr.bf16.mxu0 %v1179
    %2212 = vmatpush1.bf16.msra.mxu0 %v1178
    %2213 = vmatprep.subr.bf16.mxu0 %v1183
    %2214 = vmatpush1.bf16.msra.mxu0 %v1182
    %2215 = vmatprep.subr.bf16.mxu0 %v1187
    %2216 = vmatpush1.bf16.msra.mxu0 %v1186
    %2217 = vmatprep.subr.bf16.mxu0 %v1191
    %2218 = vmatpush1.bf16.msra.mxu0 %v1190
    %2219 = vmatprep.subr.bf16.mxu0 %v1195
    %2220 = vmatpush1.bf16.msra.mxu0 %v1194
    %2221 = vmatprep.subr.bf16.mxu0 %v1199
    %2222 = vmatpush1.bf16.msra.mxu0 %v1198
    %2223 = vmatprep.subr.bf16.mxu0 %v1203
    %2224 = vmatpush1.bf16.msra.mxu0 %v1202
    %2225 = vmatprep.subr.bf16.mxu0 %v1207
    %2226 = vmatpush1.bf16.msra.mxu0 %v1206
    %2227 = vmatprep.subr.bf16.mxu0 0
    %2228 = vmatpush1.bf16.msra.mxu0 0
    %2229 = vmatprep.subr.bf16.mxu0 0
    %2230 = vmatpush1.bf16.msra.mxu0 0
    %2231 = vmatprep.subr.bf16.mxu0 0
    %2232 = vmatpush1.bf16.msra.mxu0 0
    %2233 = vmatprep.subr.bf16.mxu0 0
    %2234 = vmatpush1.bf16.msra.mxu0 0
    %2235 = vmatprep.subr.bf16.mxu0 0
    %2236 = vmatpush1.bf16.msra.mxu0 0
    %2237 = vmatprep.subr.bf16.mxu0 0
    %2238 = vmatpush1.bf16.msra.mxu0 0
    %2239 = vmatprep.subr.bf16.mxu0 0
    %2240 = vmatpush1.bf16.msra.mxu0 0
    %2241 = vmatprep.subr.bf16.mxu0 0
    %2242 = vmatpush1.bf16.msra.mxu0 0
    %2243 = vmatprep.mubr.bf16.mxu0 0
    %2244 = vmatmul.mubr.bf16.gmra.mrb[0].mxu0 %v2055
    %v2245 = vpop.f32.mrb[0].mxu0
    %v2246 = vadd.f32 %v2062, %v2245
    %v2247 = vpop.f32.mrb[0].mxu0
    %v2248 = vadd.f32 %v2063, %v2247
    %v2249 = vpop.f32.mrb[0].mxu0
    %v2250 = vpop.f32.mrb[0].mxu0
    %2251 = vdwg.mxu0
    %v2252 = vxor.u32 %v2205, 2147483648
    %v2253 = vmul.f32 %v2252, 1.442695
    %v2254 = vpow.pop %v2253
    %v2255 = vadd.f32 %v2254, 1.0
    %v2256 = vrcp.pop %v2255
    %v2257 = vmul.f32 1.0, %v2256
    %v2258 = vxor.u32 %v2207, 2147483648
    %v2259 = vmul.f32 %v2258, 1.442695
    %v2260 = vpow.pop %v2259
    %v2261 = vadd.f32 %v2260, 1.0
    %v2262 = vrcp.pop %v2261
    %v2263 = vmul.f32 1.0, %v2262
    %v2264 = vtanh.pop %v2246
    %v2265 = vxor.u32 %v2248, 2147483648
    %v2266 = vmul.f32 %v2265, 1.442695
    %v2267 = vpow.pop %v2266
    %v2268 = vadd.f32 %v2267, 1.0
    %v2269 = vrcp.pop %v2268
    %v2270 = vmul.f32 1.0, %v2269
    %v2271 = vmul.f32 %v2263, %v2045
    %v2272 = vmul.f32 %v2257, %v2264
    %v2273 = vadd.f32 %v2271, %v2272
    %v2274 = vtanh.pop %v2273
    %v2275 = vmul.f32 %v2270, %v2274
    %v2276 = vld [vmem:[#allocation3] sm:$0xff]
    %v2277 = vadd.f32 %v2276, %v2169
    %2278 = vst [vmem:[#allocation3] sm:$0xff] %v2277
    %v2279 = vld [vmem:[#allocation4] sm:$0xff]
    %v2280 = vadd.f32 %v2279, %v2275
    %2281 = vst [vmem:[#allocation4] sm:$0xff] %v2280
    %v2282 = vpack.c.bf16 %v2169, %v2169
    %v2283 = vpack.c.bf16 %v2275, %v2275
    %v2284 = vld [vmem:[%s1597] sm:$0xff]
    %v2285 = vld [vmem:[%s1597 + $0x8] sm:$0xff]
    %v2286 = vld [vmem:[%s1597 + $0x10] sm:$0xff]
    %v2287 = vld [vmem:[%s1597 + $0x18] sm:$0xff]
    %v2288 = vld [vmem:[%s1590 + $0x20] sm:$0xff]
    %v2289 = vld [vmem:[%s1590 + $0x28] sm:$0xff]
    %v2290 = vld [vmem:[%s1590 + $0x30] sm:$0xff]
    %v2291 = vld [vmem:[%s1590 + $0x38] sm:$0xff]
    %2292 = vmatprep.subr.bf16.mxu0 %v911
    %2293 = vmatpush1.bf16.msra.mxu0 %v910
    %2294 = vmatprep.subr.bf16.mxu0 %v915
    %2295 = vmatpush1.bf16.msra.mxu0 %v914
    %2296 = vmatprep.subr.bf16.mxu0 %v919
    %2297 = vmatpush1.bf16.msra.mxu0 %v918
    %2298 = vmatprep.subr.bf16.mxu0 %v923
    %2299 = vmatpush1.bf16.msra.mxu0 %v922
    %2300 = vmatprep.subr.bf16.mxu0 %v927
    %2301 = vmatpush1.bf16.msra.mxu0 %v926
    %2302 = vmatprep.subr.bf16.mxu0 %v931
    %2303 = vmatpush1.bf16.msra.mxu0 %v930
    %2304 = vmatprep.subr.bf16.mxu0 %v935
    %2305 = vmatpush1.bf16.msra.mxu0 %v934
    %2306 = vmatprep.subr.bf16.mxu0 %v939
    %2307 = vmatpush1.bf16.msra.mxu0 %v938
    %2308 = vmatprep.subr.bf16.mxu0 0
    %2309 = vmatpush1.bf16.msra.mxu0 0
    %2310 = vmatprep.subr.bf16.mxu0 0
    %2311 = vmatpush1.bf16.msra.mxu0 0
    %2312 = vmatprep.subr.bf16.mxu0 0
    %2313 = vmatpush1.bf16.msra.mxu0 0
    %2314 = vmatprep.subr.bf16.mxu0 0
    %2315 = vmatpush1.bf16.msra.mxu0 0
    %2316 = vmatprep.subr.bf16.mxu0 0
    %2317 = vmatpush1.bf16.msra.mxu0 0
    %2318 = vmatprep.subr.bf16.mxu0 0
    %2319 = vmatpush1.bf16.msra.mxu0 0
    %2320 = vmatprep.subr.bf16.mxu0 0
    %2321 = vmatpush1.bf16.msra.mxu0 0
    %2322 = vmatprep.subr.bf16.mxu0 0
    %2323 = vmatpush1.bf16.msra.mxu0 0
    %2324 = vmatprep.mubr.bf16.mxu0 0
    %2325 = vmatmul.mubr.bf16.gmra.mrb[0].mxu0 %v2282
    %v2326 = vpop.f32.mrb[0].mxu0
    %v2327 = vadd.f32 %v2284, %v2326
    %v2328 = vpop.f32.mrb[0].mxu0
    %v2329 = vadd.f32 %v2285, %v2328
    %v2330 = vpop.f32.mrb[0].mxu0
    %v2331 = vpop.f32.mrb[0].mxu0
    %2332 = vdwg.mxu0
    %2333 = vmatprep.subr.bf16.mxu0 %v913
    %2334 = vmatpush1.bf16.msra.mxu0 %v912
    %2335 = vmatprep.subr.bf16.mxu0 %v917
    %2336 = vmatpush1.bf16.msra.mxu0 %v916
    %2337 = vmatprep.subr.bf16.mxu0 %v921
    %2338 = vmatpush1.bf16.msra.mxu0 %v920
    %2339 = vmatprep.subr.bf16.mxu0 %v925
    %2340 = vmatpush1.bf16.msra.mxu0 %v924
    %2341 = vmatprep.subr.bf16.mxu0 %v929
    %2342 = vmatpush1.bf16.msra.mxu0 %v928
    %2343 = vmatprep.subr.bf16.mxu0 %v933
    %2344 = vmatpush1.bf16.msra.mxu0 %v932
    %2345 = vmatprep.subr.bf16.mxu0 %v937
    %2346 = vmatpush1.bf16.msra.mxu0 %v936
    %2347 = vmatprep.subr.bf16.mxu0 %v941
    %2348 = vmatpush1.bf16.msra.mxu0 %v940
    %2349 = vmatprep.subr.bf16.mxu0 0
    %2350 = vmatpush1.bf16.msra.mxu0 0
    %2351 = vmatprep.subr.bf16.mxu0 0
    %2352 = vmatpush1.bf16.msra.mxu0 0
    %2353 = vmatprep.subr.bf16.mxu0 0
    %2354 = vmatpush1.bf16.msra.mxu0 0
    %2355 = vmatprep.subr.bf16.mxu0 0
    %2356 = vmatpush1.bf16.msra.mxu0 0
    %2357 = vmatprep.subr.bf16.mxu0 0
    %2358 = vmatpush1.bf16.msra.mxu0 0
    %2359 = vmatprep.subr.bf16.mxu0 0
    %2360 = vmatpush1.bf16.msra.mxu0 0
    %2361 = vmatprep.subr.bf16.mxu0 0
    %2362 = vmatpush1.bf16.msra.mxu0 0
    %2363 = vmatprep.subr.bf16.mxu0 0
    %2364 = vmatpush1.bf16.msra.mxu0 0
    %2365 = vmatprep.mubr.bf16.mxu0 0
    %2366 = vmatmul.mubr.bf16.gmra.mrb[0].mxu0 %v2282
    %v2367 = vpop.f32.mrb[0].mxu0
    %v2368 = vadd.f32 %v2286, %v2367
    %v2369 = vpop.f32.mrb[0].mxu0
    %v2370 = vadd.f32 %v2287, %v2369
    %v2371 = vpop.f32.mrb[0].mxu0
    %v2372 = vpop.f32.mrb[0].mxu0
    %2373 = vdwg.mxu0
    %v2374 = vxor.u32 %v2327, 2147483648
    %v2375 = vmul.f32 %v2374, 1.442695
    %v2376 = vpow.pop %v2375
    %v2377 = vadd.f32 %v2376, 1.0
    %v2378 = vrcp.pop %v2377
    %v2379 = vmul.f32 1.0, %v2378
    %v2380 = vxor.u32 %v2329, 2147483648
    %v2381 = vmul.f32 %v2380, 1.442695
    %v2382 = vpow.pop %v2381
    %v2383 = vadd.f32 %v2382, 1.0
    %v2384 = vrcp.pop %v2383
    %v2385 = vmul.f32 1.0, %v2384
    %v2386 = vtanh.pop %v2368
    %v2387 = vxor.u32 %v2370, 2147483648
    %v2388 = vmul.f32 %v2387, 1.442695
    %v2389 = vpow.pop %v2388
    %v2390 = vadd.f32 %v2389, 1.0
    %v2391 = vrcp.pop %v2390
    %v2392 = vmul.f32 1.0, %v2391
    %v2393 = vmul.f32 %v2385, %v2167
    %v2394 = vmul.f32 %v2379, %v2386
    %v2395 = vadd.f32 %v2393, %v2394
    %v2396 = vtanh.pop %v2395
    %v2397 = vmul.f32 %v2392, %v2396
    %2398 = vmatprep.subr.bf16.mxu0 %v1177
    %2399 = vmatpush1.bf16.msra.mxu0 %v1176
    %2400 = vmatprep.subr.bf16.mxu0 %v1181
    %2401 = vmatpush1.bf16.msra.mxu0 %v1180
    %2402 = vmatprep.subr.bf16.mxu0 %v1185
    %2403 = vmatpush1.bf16.msra.mxu0 %v1184
    %2404 = vmatprep.subr.bf16.mxu0 %v1189
    %2405 = vmatpush1.bf16.msra.mxu0 %v1188
    %2406 = vmatprep.subr.bf16.mxu0 %v1193
    %2407 = vmatpush1.bf16.msra.mxu0 %v1192
    %2408 = vmatprep.subr.bf16.mxu0 %v1197
    %2409 = vmatpush1.bf16.msra.mxu0 %v1196
    %2410 = vmatprep.subr.bf16.mxu0 %v1201
    %2411 = vmatpush1.bf16.msra.mxu0 %v1200
    %2412 = vmatprep.subr.bf16.mxu0 %v1205
    %2413 = vmatpush1.bf16.msra.mxu0 %v1204
    %2414 = vmatprep.subr.bf16.mxu0 0
    %2415 = vmatpush1.bf16.msra.mxu0 0
    %2416 = vmatprep.subr.bf16.mxu0 0
    %2417 = vmatpush1.bf16.msra.mxu0 0
    %2418 = vmatprep.subr.bf16.mxu0 0
    %2419 = vmatpush1.bf16.msra.mxu0 0
    %2420 = vmatprep.subr.bf16.mxu0 0
    %2421 = vmatpush1.bf16.msra.mxu0 0
    %2422 = vmatprep.subr.bf16.mxu0 0
    %2423 = vmatpush1.bf16.msra.mxu0 0
    %2424 = vmatprep.subr.bf16.mxu0 0
    %2425 = vmatpush1.bf16.msra.mxu0 0
    %2426 = vmatprep.subr.bf16.mxu0 0
    %2427 = vmatpush1.bf16.msra.mxu0 0
    %2428 = vmatprep.subr.bf16.mxu0 0
    %2429 = vmatpush1.bf16.msra.mxu0 0
    %2430 = vmatprep.mubr.bf16.mxu0 0
    %2431 = vmatmul.mubr.bf16.gmra.mrb[0].mxu0 %v2283
    %v2432 = vpop.f32.mrb[0].mxu0
    %v2433 = vadd.f32 %v2288, %v2432
    %v2434 = vpop.f32.mrb[0].mxu0
    %v2435 = vadd.f32 %v2289, %v2434
    %v2436 = vpop.f32.mrb[0].mxu0
    %v2437 = vpop.f32.mrb[0].mxu0
    %2438 = vdwg.mxu0
    %2439 = vmatprep.subr.bf16.mxu0 %v1179
    %2440 = vmatpush1.bf16.msra.mxu0 %v1178
    %2441 = vmatprep.subr.bf16.mxu0 %v1183
    %2442 = vmatpush1.bf16.msra.mxu0 %v1182
    %2443 = vmatprep.subr.bf16.mxu0 %v1187
    %2444 = vmatpush1.bf16.msra.mxu0 %v1186
    %2445 = vmatprep.subr.bf16.mxu0 %v1191
    %2446 = vmatpush1.bf16.msra.mxu0 %v1190
    %2447 = vmatprep.subr.bf16.mxu0 %v1195
    %2448 = vmatpush1.bf16.msra.mxu0 %v1194
    %2449 = vmatprep.subr.bf16.mxu0 %v1199
    %2450 = vmatpush1.bf16.msra.mxu0 %v1198
    %2451 = vmatprep.subr.bf16.mxu0 %v1203
    %2452 = vmatpush1.bf16.msra.mxu0 %v1202
    %2453 = vmatprep.subr.bf16.mxu0 %v1207
    %2454 = vmatpush1.bf16.msra.mxu0 %v1206
    %2455 = vmatprep.subr.bf16.mxu0 0
    %2456 = vmatpush1.bf16.msra.mxu0 0
    %2457 = vmatprep.subr.bf16.mxu0 0
    %2458 = vmatpush1.bf16.msra.mxu0 0
    %2459 = vmatprep.subr.bf16.mxu0 0
    %2460 = vmatpush1.bf16.msra.mxu0 0
    %2461 = vmatprep.subr.bf16.mxu0 0
    %2462 = vmatpush1.bf16.msra.mxu0 0
    %2463 = vmatprep.subr.bf16.mxu0 0
    %2464 = vmatpush1.bf16.msra.mxu0 0
    %2465 = vmatprep.subr.bf16.mxu0 0
    %2466 = vmatpush1.bf16.msra.mxu0 0
    %2467 = vmatprep.subr.bf16.mxu0 0
    %2468 = vmatpush1.bf16.msra.mxu0 0
    %2469 = vmatprep.subr.bf16.mxu0 0
    %2470 = vmatpush1.bf16.msra.mxu0 0
    %2471 = vmatprep.mubr.bf16.mxu0 0
    %2472 = vmatmul.mubr.bf16.gmra.mrb[0].mxu0 %v2283
    %v2473 = vpop.f32.mrb[0].mxu0
    %v2474 = vadd.f32 %v2290, %v2473
    %v2475 = vpop.f32.mrb[0].mxu0
    %v2476 = vadd.f32 %v2291, %v2475
    %v2477 = vpop.f32.mrb[0].mxu0
    %v2478 = vpop.f32.mrb[0].mxu0
    %2479 = vdwg.mxu0
    %v2480 = vxor.u32 %v2433, 2147483648
    %v2481 = vmul.f32 %v2480, 1.442695
    %v2482 = vpow.pop %v2481
    %v2483 = vadd.f32 %v2482, 1.0
    %v2484 = vrcp.pop %v2483
    %v2485 = vmul.f32 1.0, %v2484
    %v2486 = vxor.u32 %v2435, 2147483648
    %v2487 = vmul.f32 %v2486, 1.442695
    %v2488 = vpow.pop %v2487
    %v2489 = vadd.f32 %v2488, 1.0
    %v2490 = vrcp.pop %v2489
    %v2491 = vmul.f32 1.0, %v2490
    %v2492 = vtanh.pop %v2474
    %v2493 = vxor.u32 %v2476, 2147483648
    %v2494 = vmul.f32 %v2493, 1.442695
    %v2495 = vpow.pop %v2494
    %v2496 = vadd.f32 %v2495, 1.0
    %v2497 = vrcp.pop %v2496
    %v2498 = vmul.f32 1.0, %v2497
    %v2499 = vmul.f32 %v2491, %v2273
    %v2500 = vmul.f32 %v2485, %v2492
    %v2501 = vadd.f32 %v2499, %v2500
    %v2502 = vtanh.pop %v2501
    %v2503 = vmul.f32 %v2498, %v2502
    %v2504 = vld [vmem:[#allocation3] sm:$0xff]
    %v2505 = vadd.f32 %v2504, %v2397
    %2506 = vst [vmem:[#allocation3] sm:$0xff] %v2505
    %v2507 = vld [vmem:[#allocation4] sm:$0xff]
    %v2508 = vadd.f32 %v2507, %v2503
    %2509 = vst [vmem:[#allocation4] sm:$0xff] %v2508
    %v2510 = vpack.c.bf16 %v2397, %v2397
    %v2511 = vpack.c.bf16 %v2503, %v2503
    %v2512 = vld [vmem:[%s1363] sm:$0xff]
    %v2513 = vld [vmem:[%s1363 + $0x8] sm:$0xff]
    %v2514 = vld [vmem:[%s1363 + $0x10] sm:$0xff]
    %v2515 = vld [vmem:[%s1363 + $0x18] sm:$0xff]
    %v2516 = vld [vmem:[%s1356 + $0x20] sm:$0xff]
    %v2517 = vld [vmem:[%s1356 + $0x28] sm:$0xff]
    %v2518 = vld [vmem:[%s1356 + $0x30] sm:$0xff]
    %v2519 = vld [vmem:[%s1356 + $0x38] sm:$0xff]
    %2520 = vmatprep.subr.bf16.mxu0 %v911
    %2521 = vmatpush1.bf16.msra.mxu0 %v910
    %2522 = vmatprep.subr.bf16.mxu0 %v915
    %2523 = vmatpush1.bf16.msra.mxu0 %v914
    %2524 = vmatprep.subr.bf16.mxu0 %v919
    %2525 = vmatpush1.bf16.msra.mxu0 %v918
    %2526 = vmatprep.subr.bf16.mxu0 %v923
    %2527 = vmatpush1.bf16.msra.mxu0 %v922
    %2528 = vmatprep.subr.bf16.mxu0 %v927
    %2529 = vmatpush1.bf16.msra.mxu0 %v926
    %2530 = vmatprep.subr.bf16.mxu0 %v931
    %2531 = vmatpush1.bf16.msra.mxu0 %v930
    %2532 = vmatprep.subr.bf16.mxu0 %v935
    %2533 = vmatpush1.bf16.msra.mxu0 %v934
    %2534 = vmatprep.subr.bf16.mxu0 %v939
    %2535 = vmatpush1.bf16.msra.mxu0 %v938
    %2536 = vmatprep.subr.bf16.mxu0 0
    %2537 = vmatpush1.bf16.msra.mxu0 0
    %2538 = vmatprep.subr.bf16.mxu0 0
    %2539 = vmatpush1.bf16.msra.mxu0 0
    %2540 = vmatprep.subr.bf16.mxu0 0
    %2541 = vmatpush1.bf16.msra.mxu0 0
    %2542 = vmatprep.subr.bf16.mxu0 0
    %2543 = vmatpush1.bf16.msra.mxu0 0
    %2544 = vmatprep.subr.bf16.mxu0 0
    %2545 = vmatpush1.bf16.msra.mxu0 0
    %2546 = vmatprep.subr.bf16.mxu0 0
    %2547 = vmatpush1.bf16.msra.mxu0 0
    %2548 = vmatprep.subr.bf16.mxu0 0
    %2549 = vmatpush1.bf16.msra.mxu0 0
    %2550 = vmatprep.subr.bf16.mxu0 0
    %2551 = vmatpush1.bf16.msra.mxu0 0
    %2552 = vmatprep.mubr.bf16.mxu0 0
    %2553 = vmatmul.mubr.bf16.gmra.mrb[0].mxu0 %v2510
    %v2554 = vpop.f32.mrb[0].mxu0
    %v2555 = vadd.f32 %v2512, %v2554
    %v2556 = vpop.f32.mrb[0].mxu0
    %v2557 = vadd.f32 %v2513, %v2556
    %v2558 = vpop.f32.mrb[0].mxu0
    %v2559 = vpop.f32.mrb[0].mxu0
    %2560 = vdwg.mxu0
    %2561 = vmatprep.subr.bf16.mxu0 %v913
    %2562 = vmatpush1.bf16.msra.mxu0 %v912
    %2563 = vmatprep.subr.bf16.mxu0 %v917
    %2564 = vmatpush1.bf16.msra.mxu0 %v916
    %2565 = vmatprep.subr.bf16.mxu0 %v921
    %2566 = vmatpush1.bf16.msra.mxu0 %v920
    %2567 = vmatprep.subr.bf16.mxu0 %v925
    %2568 = vmatpush1.bf16.msra.mxu0 %v924
    %2569 = vmatprep.subr.bf16.mxu0 %v929
    %2570 = vmatpush1.bf16.msra.mxu0 %v928
    %2571 = vmatprep.subr.bf16.mxu0 %v933
    %2572 = vmatpush1.bf16.msra.mxu0 %v932
    %2573 = vmatprep.subr.bf16.mxu0 %v937
    %2574 = vmatpush1.bf16.msra.mxu0 %v936
    %2575 = vmatprep.subr.bf16.mxu0 %v941
    %2576 = vmatpush1.bf16.msra.mxu0 %v940
    %2577 = vmatprep.subr.bf16.mxu0 0
    %2578 = vmatpush1.bf16.msra.mxu0 0
    %2579 = vmatprep.subr.bf16.mxu0 0
    %2580 = vmatpush1.bf16.msra.mxu0 0
    %2581 = vmatprep.subr.bf16.mxu0 0
    %2582 = vmatpush1.bf16.msra.mxu0 0
    %2583 = vmatprep.subr.bf16.mxu0 0
    %2584 = vmatpush1.bf16.msra.mxu0 0
    %2585 = vmatprep.subr.bf16.mxu0 0
    %2586 = vmatpush1.bf16.msra.mxu0 0
    %2587 = vmatprep.subr.bf16.mxu0 0
    %2588 = vmatpush1.bf16.msra.mxu0 0
    %2589 = vmatprep.subr.bf16.mxu0 0
    %2590 = vmatpush1.bf16.msra.mxu0 0
    %2591 = vmatprep.subr.bf16.mxu0 0
    %2592 = vmatpush1.bf16.msra.mxu0 0
    %2593 = vmatprep.mubr.bf16.mxu0 0
    %2594 = vmatmul.mubr.bf16.gmra.mrb[0].mxu0 %v2510
    %v2595 = vpop.f32.mrb[0].mxu0
    %v2596 = vadd.f32 %v2514, %v2595
    %v2597 = vpop.f32.mrb[0].mxu0
    %v2598 = vadd.f32 %v2515, %v2597
    %v2599 = vpop.f32.mrb[0].mxu0
    %v2600 = vpop.f32.mrb[0].mxu0
    %2601 = vdwg.mxu0
    %v2602 = vxor.u32 %v2555, 2147483648
    %v2603 = vmul.f32 %v2602, 1.442695
    %v2604 = vpow.pop %v2603
    %v2605 = vadd.f32 %v2604, 1.0
    %v2606 = vrcp.pop %v2605
    %v2607 = vmul.f32 1.0, %v2606
    %v2608 = vxor.u32 %v2557, 2147483648
    %v2609 = vmul.f32 %v2608, 1.442695
    %v2610 = vpow.pop %v2609
    %v2611 = vadd.f32 %v2610, 1.0
    %v2612 = vrcp.pop %v2611
    %v2613 = vmul.f32 1.0, %v2612
    %v2614 = vtanh.pop %v2596
    %v2615 = vxor.u32 %v2598, 2147483648
    %v2616 = vmul.f32 %v2615, 1.442695
    %v2617 = vpow.pop %v2616
    %v2618 = vadd.f32 %v2617, 1.0
    %v2619 = vrcp.pop %v2618
    %v2620 = vmul.f32 1.0, %v2619
    %v2621 = vmul.f32 %v2613, %v2395
    %v2622 = vmul.f32 %v2607, %v2614
    %v2623 = vadd.f32 %v2621, %v2622
    %v2624 = vtanh.pop %v2623
    %v2625 = vmul.f32 %v2620, %v2624
    %2626 = vmatprep.subr.bf16.mxu0 %v1177
    %2627 = vmatpush1.bf16.msra.mxu0 %v1176
    %2628 = vmatprep.subr.bf16.mxu0 %v1181
    %2629 = vmatpush1.bf16.msra.mxu0 %v1180
    %2630 = vmatprep.subr.bf16.mxu0 %v1185
    %2631 = vmatpush1.bf16.msra.mxu0 %v1184
    %2632 = vmatprep.subr.bf16.mxu0 %v1189
    %2633 = vmatpush1.bf16.msra.mxu0 %v1188
    %2634 = vmatprep.subr.bf16.mxu0 %v1193
    %2635 = vmatpush1.bf16.msra.mxu0 %v1192
    %2636 = vmatprep.subr.bf16.mxu0 %v1197
    %2637 = vmatpush1.bf16.msra.mxu0 %v1196
    %2638 = vmatprep.subr.bf16.mxu0 %v1201
    %2639 = vmatpush1.bf16.msra.mxu0 %v1200
    %2640 = vmatprep.subr.bf16.mxu0 %v1205
    %2641 = vmatpush1.bf16.msra.mxu0 %v1204
    %2642 = vmatprep.subr.bf16.mxu0 0
    %2643 = vmatpush1.bf16.msra.mxu0 0
    %2644 = vmatprep.subr.bf16.mxu0 0
    %2645 = vmatpush1.bf16.msra.mxu0 0
    %2646 = vmatprep.subr.bf16.mxu0 0
    %2647 = vmatpush1.bf16.msra.mxu0 0
    %2648 = vmatprep.subr.bf16.mxu0 0
    %2649 = vmatpush1.bf16.msra.mxu0 0
    %2650 = vmatprep.subr.bf16.mxu0 0
    %2651 = vmatpush1.bf16.msra.mxu0 0
    %2652 = vmatprep.subr.bf16.mxu0 0
    %2653 = vmatpush1.bf16.msra.mxu0 0
    %2654 = vmatprep.subr.bf16.mxu0 0
    %2655 = vmatpush1.bf16.msra.mxu0 0
    %2656 = vmatprep.subr.bf16.mxu0 0
    %2657 = vmatpush1.bf16.msra.mxu0 0
    %2658 = vmatprep.mubr.bf16.mxu0 0
    %2659 = vmatmul.mubr.bf16.gmra.mrb[0].mxu0 %v2511
    %v2660 = vpop.f32.mrb[0].mxu0
    %v2661 = vadd.f32 %v2516, %v2660
    %v2662 = vpop.f32.mrb[0].mxu0
    %v2663 = vadd.f32 %v2517, %v2662
    %v2664 = vpop.f32.mrb[0].mxu0
    %v2665 = vpop.f32.mrb[0].mxu0
    %2666 = vdwg.mxu0
    %2667 = vmatprep.subr.bf16.mxu0 %v1179
    %2668 = vmatpush1.bf16.msra.mxu0 %v1178
    %2669 = vmatprep.subr.bf16.mxu0 %v1183
    %2670 = vmatpush1.bf16.msra.mxu0 %v1182
    %2671 = vmatprep.subr.bf16.mxu0 %v1187
    %2672 = vmatpush1.bf16.msra.mxu0 %v1186
    %2673 = vmatprep.subr.bf16.mxu0 %v1191
    %2674 = vmatpush1.bf16.msra.mxu0 %v1190
    %2675 = vmatprep.subr.bf16.mxu0 %v1195
    %2676 = vmatpush1.bf16.msra.mxu0 %v1194
    %2677 = vmatprep.subr.bf16.mxu0 %v1199
    %2678 = vmatpush1.bf16.msra.mxu0 %v1198
    %2679 = vmatprep.subr.bf16.mxu0 %v1203
    %2680 = vmatpush1.bf16.msra.mxu0 %v1202
    %2681 = vmatprep.subr.bf16.mxu0 %v1207
    %2682 = vmatpush1.bf16.msra.mxu0 %v1206
    %2683 = vmatprep.subr.bf16.mxu0 0
    %2684 = vmatpush1.bf16.msra.mxu0 0
    %2685 = vmatprep.subr.bf16.mxu0 0
    %2686 = vmatpush1.bf16.msra.mxu0 0
    %2687 = vmatprep.subr.bf16.mxu0 0
    %2688 = vmatpush1.bf16.msra.mxu0 0
    %2689 = vmatprep.subr.bf16.mxu0 0
    %2690 = vmatpush1.bf16.msra.mxu0 0
    %2691 = vmatprep.subr.bf16.mxu0 0
    %2692 = vmatpush1.bf16.msra.mxu0 0
    %2693 = vmatprep.subr.bf16.mxu0 0
    %2694 = vmatpush1.bf16.msra.mxu0 0
    %2695 = vmatprep.subr.bf16.mxu0 0
    %2696 = vmatpush1.bf16.msra.mxu0 0
    %2697 = vmatprep.subr.bf16.mxu0 0
    %2698 = vmatpush1.bf16.msra.mxu0 0
    %2699 = vmatprep.mubr.bf16.mxu0 0
    %2700 = vmatmul.mubr.bf16.gmra.mrb[0].mxu0 %v2511
    %v2701 = vpop.f32.mrb[0].mxu0
    %v2702 = vadd.f32 %v2518, %v2701
    %v2703 = vpop.f32.mrb[0].mxu0
    %v2704 = vadd.f32 %v2519, %v2703
    %v2705 = vpop.f32.mrb[0].mxu0
    %v2706 = vpop.f32.mrb[0].mxu0
    %2707 = vdwg.mxu0
    %v2708 = vxor.u32 %v2661, 2147483648
    %v2709 = vmul.f32 %v2708, 1.442695
    %v2710 = vpow.pop %v2709
    %v2711 = vadd.f32 %v2710, 1.0
    %v2712 = vrcp.pop %v2711
    %v2713 = vmul.f32 1.0, %v2712
    %v2714 = vxor.u32 %v2663, 2147483648
    %v2715 = vmul.f32 %v2714, 1.442695
    %v2716 = vpow.pop %v2715
    %v2717 = vadd.f32 %v2716, 1.0
    %v2718 = vrcp.pop %v2717
    %v2719 = vmul.f32 1.0, %v2718
    %v2720 = vtanh.pop %v2702
    %v2721 = vxor.u32 %v2704, 2147483648
    %v2722 = vmul.f32 %v2721, 1.442695
    %v2723 = vpow.pop %v2722
    %v2724 = vadd.f32 %v2723, 1.0
    %v2725 = vrcp.pop %v2724
    %v2726 = vmul.f32 1.0, %v2725
    %v2727 = vmul.f32 %v2719, %v2501
    %v2728 = vmul.f32 %v2713, %v2720
    %v2729 = vadd.f32 %v2727, %v2728
    %v2730 = vtanh.pop %v2729
    %v2731 = vmul.f32 %v2726, %v2730
    %v2732 = vld [vmem:[#allocation3] sm:$0xff]
    %v2733 = vadd.f32 %v2732, %v2625
    %2734 = vst [vmem:[#allocation3] sm:$0xff] %v2733
    %v2735 = vld [vmem:[#allocation4] sm:$0xff]
    %v2736 = vadd.f32 %v2735, %v2731
    %2737 = vst [vmem:[#allocation4] sm:$0xff] %v2736
    %v2738 = vpack.c.bf16 %v2625, %v2625
    %v2739 = vpack.c.bf16 %v2731, %v2731
    %v2740 = vld [vmem:[%s809] sm:$0xff]
    %v2741 = vld [vmem:[%s809 + $0x8] sm:$0xff]
    %v2742 = vld [vmem:[%s809 + $0x10] sm:$0xff]
    %v2743 = vld [vmem:[%s809 + $0x18] sm:$0xff]
    %v2744 = vld [vmem:[%s802 + $0x20] sm:$0xff]
    %v2745 = vld [vmem:[%s802 + $0x28] sm:$0xff]
    %v2746 = vld [vmem:[%s802 + $0x30] sm:$0xff]
    %v2747 = vld [vmem:[%s802 + $0x38] sm:$0xff]
    %2748 = vmatprep.subr.bf16.mxu0 %v911
    %2749 = vmatpush1.bf16.msra.mxu0 %v910
    %2750 = vmatprep.subr.bf16.mxu0 %v915
    %2751 = vmatpush1.bf16.msra.mxu0 %v914
    %2752 = vmatprep.subr.bf16.mxu0 %v919
    %2753 = vmatpush1.bf16.msra.mxu0 %v918
    %2754 = vmatprep.subr.bf16.mxu0 %v923
    %2755 = vmatpush1.bf16.msra.mxu0 %v922
    %2756 = vmatprep.subr.bf16.mxu0 %v927
    %2757 = vmatpush1.bf16.msra.mxu0 %v926
    %2758 = vmatprep.subr.bf16.mxu0 %v931
    %2759 = vmatpush1.bf16.msra.mxu0 %v930
    %2760 = vmatprep.subr.bf16.mxu0 %v935
    %2761 = vmatpush1.bf16.msra.mxu0 %v934
    %2762 = vmatprep.subr.bf16.mxu0 %v939
    %2763 = vmatpush1.bf16.msra.mxu0 %v938
    %2764 = vmatprep.subr.bf16.mxu0 0
    %2765 = vmatpush1.bf16.msra.mxu0 0
    %2766 = vmatprep.subr.bf16.mxu0 0
    %2767 = vmatpush1.bf16.msra.mxu0 0
    %2768 = vmatprep.subr.bf16.mxu0 0
    %2769 = vmatpush1.bf16.msra.mxu0 0
    %2770 = vmatprep.subr.bf16.mxu0 0
    %2771 = vmatpush1.bf16.msra.mxu0 0
    %2772 = vmatprep.subr.bf16.mxu0 0
    %2773 = vmatpush1.bf16.msra.mxu0 0
    %2774 = vmatprep.subr.bf16.mxu0 0
    %2775 = vmatpush1.bf16.msra.mxu0 0
    %2776 = vmatprep.subr.bf16.mxu0 0
    %2777 = vmatpush1.bf16.msra.mxu0 0
    %2778 = vmatprep.subr.bf16.mxu0 0
    %2779 = vmatpush1.bf16.msra.mxu0 0
    %2780 = vmatprep.mubr.bf16.mxu0 0
    %2781 = vmatmul.mubr.bf16.gmra.mrb[0].mxu0 %v2738
    %v2782 = vpop.f32.mrb[0].mxu0
    %v2783 = vadd.f32 %v2740, %v2782
    %v2784 = vpop.f32.mrb[0].mxu0
    %v2785 = vadd.f32 %v2741, %v2784
    %v2786 = vpop.f32.mrb[0].mxu0
    %v2787 = vpop.f32.mrb[0].mxu0
    %2788 = vdwg.mxu0
    %2789 = vmatprep.subr.bf16.mxu0 %v913
    %2790 = vmatpush1.bf16.msra.mxu0 %v912
    %2791 = vmatprep.subr.bf16.mxu0 %v917
    %2792 = vmatpush1.bf16.msra.mxu0 %v916
    %2793 = vmatprep.subr.bf16.mxu0 %v921
    %2794 = vmatpush1.bf16.msra.mxu0 %v920
    %2795 = vmatprep.subr.bf16.mxu0 %v925
    %2796 = vmatpush1.bf16.msra.mxu0 %v924
    %2797 = vmatprep.subr.bf16.mxu0 %v929
    %2798 = vmatpush1.bf16.msra.mxu0 %v928
    %2799 = vmatprep.subr.bf16.mxu0 %v933
    %2800 = vmatpush1.bf16.msra.mxu0 %v932
    %2801 = vmatprep.subr.bf16.mxu0 %v937
    %2802 = vmatpush1.bf16.msra.mxu0 %v936
    %2803 = vmatprep.subr.bf16.mxu0 %v941
    %2804 = vmatpush1.bf16.msra.mxu0 %v940
    %2805 = vmatprep.subr.bf16.mxu0 0
    %2806 = vmatpush1.bf16.msra.mxu0 0
    %2807 = vmatprep.subr.bf16.mxu0 0
    %2808 = vmatpush1.bf16.msra.mxu0 0
    %2809 = vmatprep.subr.bf16.mxu0 0
    %2810 = vmatpush1.bf16.msra.mxu0 0
    %2811 = vmatprep.subr.bf16.mxu0 0
    %2812 = vmatpush1.bf16.msra.mxu0 0
    %2813 = vmatprep.subr.bf16.mxu0 0
    %2814 = vmatpush1.bf16.msra.mxu0 0
    %2815 = vmatprep.subr.bf16.mxu0 0
    %2816 = vmatpush1.bf16.msra.mxu0 0
    %2817 = vmatprep.subr.bf16.mxu0 0
    %2818 = vmatpush1.bf16.msra.mxu0 0
    %2819 = vmatprep.subr.bf16.mxu0 0
    %2820 = vmatpush1.bf16.msra.mxu0 0
    %2821 = vmatprep.mubr.bf16.mxu0 0
    %2822 = vmatmul.mubr.bf16.gmra.mrb[0].mxu0 %v2738
    %v2823 = vpop.f32.mrb[0].mxu0
    %v2824 = vadd.f32 %v2742, %v2823
    %v2825 = vpop.f32.mrb[0].mxu0
    %v2826 = vadd.f32 %v2743, %v2825
    %v2827 = vpop.f32.mrb[0].mxu0
    %v2828 = vpop.f32.mrb[0].mxu0
    %2829 = vdwg.mxu0
    %v2830 = vxor.u32 %v2783, 2147483648
    %v2831 = vmul.f32 %v2830, 1.442695
    %v2832 = vpow.pop %v2831
    %v2833 = vadd.f32 %v2832, 1.0
    %v2834 = vrcp.pop %v2833
    %v2835 = vmul.f32 1.0, %v2834
    %v2836 = vxor.u32 %v2785, 2147483648
    %v2837 = vmul.f32 %v2836, 1.442695
    %v2838 = vpow.pop %v2837
    %v2839 = vadd.f32 %v2838, 1.0
    %v2840 = vrcp.pop %v2839
    %v2841 = vmul.f32 1.0, %v2840
    %v2842 = vtanh.pop %v2824
    %v2843 = vxor.u32 %v2826, 2147483648
    %v2844 = vmul.f32 %v2843, 1.442695
    %v2845 = vpow.pop %v2844
    %v2846 = vadd.f32 %v2845, 1.0
    %v2847 = vrcp.pop %v2846
    %v2848 = vmul.f32 1.0, %v2847
    %v2849 = vmul.f32 %v2841, %v2623
    %v2850 = vmul.f32 %v2835, %v2842
    %v2851 = vadd.f32 %v2849, %v2850
    %v2852 = vtanh.pop %v2851
    %v2853 = vmul.f32 %v2848, %v2852
    %2854 = vmatprep.subr.bf16.mxu0 %v1177
    %2855 = vmatpush1.bf16.msra.mxu0 %v1176
    %2856 = vmatprep.subr.bf16.mxu0 %v1181
    %2857 = vmatpush1.bf16.msra.mxu0 %v1180
    %2858 = vmatprep.subr.bf16.mxu0 %v1185
    %2859 = vmatpush1.bf16.msra.mxu0 %v1184
    %2860 = vmatprep.subr.bf16.mxu0 %v1189
    %2861 = vmatpush1.bf16.msra.mxu0 %v1188
    %2862 = vmatprep.subr.bf16.mxu0 %v1193
    %2863 = vmatpush1.bf16.msra.mxu0 %v1192
    %2864 = vmatprep.subr.bf16.mxu0 %v1197
    %2865 = vmatpush1.bf16.msra.mxu0 %v1196
    %2866 = vmatprep.subr.bf16.mxu0 %v1201
    %2867 = vmatpush1.bf16.msra.mxu0 %v1200
    %2868 = vmatprep.subr.bf16.mxu0 %v1205
    %2869 = vmatpush1.bf16.msra.mxu0 %v1204
    %2870 = vmatprep.subr.bf16.mxu0 0
    %2871 = vmatpush1.bf16.msra.mxu0 0
    %2872 = vmatprep.subr.bf16.mxu0 0
    %2873 = vmatpush1.bf16.msra.mxu0 0
    %2874 = vmatprep.subr.bf16.mxu0 0
    %2875 = vmatpush1.bf16.msra.mxu0 0
    %2876 = vmatprep.subr.bf16.mxu0 0
    %2877 = vmatpush1.bf16.msra.mxu0 0
    %2878 = vmatprep.subr.bf16.mxu0 0
    %2879 = vmatpush1.bf16.msra.mxu0 0
    %2880 = vmatprep.subr.bf16.mxu0 0
    %2881 = vmatpush1.bf16.msra.mxu0 0
    %2882 = vmatprep.subr.bf16.mxu0 0
    %2883 = vmatpush1.bf16.msra.mxu0 0
    %2884 = vmatprep.subr.bf16.mxu0 0
    %2885 = vmatpush1.bf16.msra.mxu0 0
    %2886 = vmatprep.mubr.bf16.mxu0 0
    %2887 = vmatmul.mubr.bf16.gmra.mrb[0].mxu0 %v2739
    %v2888 = vpop.f32.mrb[0].mxu0
    %v2889 = vadd.f32 %v2744, %v2888
    %v2890 = vpop.f32.mrb[0].mxu0
    %v2891 = vadd.f32 %v2745, %v2890
    %v2892 = vpop.f32.mrb[0].mxu0
    %v2893 = vpop.f32.mrb[0].mxu0
    %2894 = vdwg.mxu0
    %2895 = vmatprep.subr.bf16.mxu0 %v1179
    %2896 = vmatpush1.bf16.msra.mxu0 %v1178
    %2897 = vmatprep.subr.bf16.mxu0 %v1183
    %2898 = vmatpush1.bf16.msra.mxu0 %v1182
    %2899 = vmatprep.subr.bf16.mxu0 %v1187
    %2900 = vmatpush1.bf16.msra.mxu0 %v1186
    %2901 = vmatprep.subr.bf16.mxu0 %v1191
    %2902 = vmatpush1.bf16.msra.mxu0 %v1190
    %2903 = vmatprep.subr.bf16.mxu0 %v1195
    %2904 = vmatpush1.bf16.msra.mxu0 %v1194
    %2905 = vmatprep.subr.bf16.mxu0 %v1199
    %2906 = vmatpush1.bf16.msra.mxu0 %v1198
    %2907 = vmatprep.subr.bf16.mxu0 %v1203
    %2908 = vmatpush1.bf16.msra.mxu0 %v1202
    %2909 = vmatprep.subr.bf16.mxu0 %v1207
    %2910 = vmatpush1.bf16.msra.mxu0 %v1206
    %2911 = vmatprep.subr.bf16.mxu0 0
    %2912 = vmatpush1.bf16.msra.mxu0 0
    %2913 = vmatprep.subr.bf16.mxu0 0
    %2914 = vmatpush1.bf16.msra.mxu0 0
    %2915 = vmatprep.subr.bf16.mxu0 0
    %2916 = vmatpush1.bf16.msra.mxu0 0
    %2917 = vmatprep.subr.bf16.mxu0 0
    %2918 = vmatpush1.bf16.msra.mxu0 0
    %2919 = vmatprep.subr.bf16.mxu0 0
    %2920 = vmatpush1.bf16.msra.mxu0 0
    %2921 = vmatprep.subr.bf16.mxu0 0
    %2922 = vmatpush1.bf16.msra.mxu0 0
    %2923 = vmatprep.subr.bf16.mxu0 0
    %2924 = vmatpush1.bf16.msra.mxu0 0
    %2925 = vmatprep.subr.bf16.mxu0 0
    %2926 = vmatpush1.bf16.msra.mxu0 0
    %2927 = vmatprep.mubr.bf16.mxu0 0
    %2928 = vmatmul.mubr.bf16.gmra.mrb[0].mxu0 %v2739
    %v2929 = vpop.f32.mrb[0].mxu0
    %v2930 = vadd.f32 %v2746, %v2929
    %v2931 = vpop.f32.mrb[0].mxu0
    %v2932 = vadd.f32 %v2747, %v2931
    %v2933 = vpop.f32.mrb[0].mxu0
    %v2934 = vpop.f32.mrb[0].mxu0
    %2935 = vdwg.mxu0
    %v2936 = vxor.u32 %v2889, 2147483648
    %v2937 = vmul.f32 %v2936, 1.442695
    %v2938 = vpow.pop %v2937
    %v2939 = vadd.f32 %v2938, 1.0
    %v2940 = vrcp.pop %v2939
    %v2941 = vmul.f32 1.0, %v2940
    %v2942 = vxor.u32 %v2891, 2147483648
    %v2943 = vmul.f32 %v2942, 1.442695
    %v2944 = vpow.pop %v2943
    %v2945 = vadd.f32 %v2944, 1.0
    %v2946 = vrcp.pop %v2945
    %v2947 = vmul.f32 1.0, %v2946
    %v2948 = vtanh.pop %v2930
    %v2949 = vxor.u32 %v2932, 2147483648
    %v2950 = vmul.f32 %v2949, 1.442695
    %v2951 = vpow.pop %v2950
    %v2952 = vadd.f32 %v2951, 1.0
    %v2953 = vrcp.pop %v2952
    %v2954 = vmul.f32 1.0, %v2953
    %v2955 = vmul.f32 %v2947, %v2729
    %v2956 = vmul.f32 %v2941, %v2948
    %v2957 = vadd.f32 %v2955, %v2956
    %v2958 = vtanh.pop %v2957
    %v2959 = vmul.f32 %v2954, %v2958
    %v2960 = vld [vmem:[#allocation3] sm:$0xff]
    %v2961 = vadd.f32 %v2960, %v2853
    %2962 = vst [vmem:[#allocation3] sm:$0xff] %v2961
    %v2963 = vld [vmem:[#allocation4] sm:$0xff]
    %v2964 = vadd.f32 %v2963, %v2959
    %2965 = vst [vmem:[#allocation4] sm:$0xff] %v2964
    %v2966 = vld [vmem:[#allocation3] sm:$0xff]
    %v2967 = vld [vmem:[#allocation4] sm:$0xff]
    %v2968 = vmul.f32 %v2966, 0.125
    %v2969 = vmul.f32 %v2967, 0.125
    %v2970 = vpack.c.bf16 %v2968, %v2968
    %v2971 = vpack.c.bf16 %v2969, %v2969
    %v2972 = vld [vmem:[#allocation11] sm:$0xff]
    %v2973 = vld [vmem:[#allocation11 + $0x8] sm:$0xff]
    %v2974 = vld [vmem:[#allocation11 + $0x10] sm:$0xff]
    %v2975 = vld [vmem:[#allocation11 + $0x18] sm:$0xff]
    %v2976 = vld [vmem:[#allocation11 + $0x20] sm:$0xff]
    %v2977 = vld [vmem:[#allocation11 + $0x28] sm:$0xff]
    %v2978 = vld [vmem:[#allocation11 + $0x30] sm:$0xff]
    %v2979 = vld [vmem:[#allocation11 + $0x38] sm:$0xff]
    %v2980 = vld [vmem:[#allocation11 + $0x40] sm:$0xff]
    %v2981 = vld [vmem:[#allocation11 + $0x48] sm:$0xff]
    %v2982 = vld [vmem:[#allocation11 + $0x50] sm:$0xff]
    %v2983 = vld [vmem:[#allocation11 + $0x58] sm:$0xff]
    %v2984 = vld [vmem:[#allocation11 + $0x60] sm:$0xff]
    %v2985 = vld [vmem:[#allocation11 + $0x68] sm:$0xff]
    %v2986 = vld [vmem:[#allocation11 + $0x70] sm:$0xff]
    %v2987 = vld [vmem:[#allocation11 + $0x78] sm:$0xff]
    %v2988 = vld [vmem:[#allocation11 + $0x80] sm:$0xff]
    %v2989 = vld [vmem:[#allocation11 + $0x88] sm:$0xff]
    %v2990 = vld [vmem:[#allocation11 + $0x90] sm:$0xff]
    %v2991 = vld [vmem:[#allocation11 + $0x98] sm:$0xff]
    %v2992 = vld [vmem:[#allocation11 + $0xa0] sm:$0xff]
    %v2993 = vld [vmem:[#allocation11 + $0xa8] sm:$0xff]
    %v2994 = vld [vmem:[#allocation11 + $0xb0] sm:$0xff]
    %v2995 = vld [vmem:[#allocation11 + $0xb8] sm:$0xff]
    %v2996 = vld [vmem:[#allocation11 + $0xc0] sm:$0xff]
    %v2997 = vld [vmem:[#allocation11 + $0xc8] sm:$0xff]
    %v2998 = vld [vmem:[#allocation11 + $0xd0] sm:$0xff]
    %v2999 = vld [vmem:[#allocation11 + $0xd8] sm:$0xff]
    %v3000 = vld [vmem:[#allocation11 + $0xe0] sm:$0xff]
    %v3001 = vld [vmem:[#allocation11 + $0xe8] sm:$0xff]
    %v3002 = vld [vmem:[#allocation11 + $0xf0] sm:$0xff]
    %v3003 = vld [vmem:[#allocation11 + $0xf8] sm:$0xff]
    %v3004 = vld [vmem:[#allocation11 + $0x100] sm:$0xff]
    %v3005 = vld [vmem:[#allocation11 + $0x108] sm:$0xff]
    %v3006 = vld [vmem:[#allocation11 + $0x110] sm:$0xff]
    %v3007 = vld [vmem:[#allocation11 + $0x118] sm:$0xff]
    %v3008 = vld [vmem:[#allocation11 + $0x120] sm:$0xff]
    %v3009 = vld [vmem:[#allocation11 + $0x128] sm:$0xff]
    %v3010 = vld [vmem:[#allocation11 + $0x130] sm:$0xff]
    %v3011 = vld [vmem:[#allocation11 + $0x138] sm:$0xff]
    %v3012 = vld [vmem:[#allocation11 + $0x140] sm:$0xff]
    %v3013 = vld [vmem:[#allocation11 + $0x148] sm:$0xff]
    %v3014 = vld [vmem:[#allocation11 + $0x150] sm:$0xff]
    %v3015 = vld [vmem:[#allocation11 + $0x158] sm:$0xff]
    %v3016 = vld [vmem:[#allocation11 + $0x160] sm:$0xff]
    %v3017 = vld [vmem:[#allocation11 + $0x168] sm:$0xff]
    %v3018 = vld [vmem:[#allocation11 + $0x170] sm:$0xff]
    %v3019 = vld [vmem:[#allocation11 + $0x178] sm:$0xff]
    %v3020 = vld [vmem:[#allocation11 + $0x180] sm:$0xff]
    %v3021 = vld [vmem:[#allocation11 + $0x188] sm:$0xff]
    %v3022 = vld [vmem:[#allocation11 + $0x190] sm:$0xff]
    %v3023 = vld [vmem:[#allocation11 + $0x198] sm:$0xff]
    %v3024 = vld [vmem:[#allocation11 + $0x1a0] sm:$0xff]
    %v3025 = vld [vmem:[#allocation11 + $0x1a8] sm:$0xff]
    %v3026 = vld [vmem:[#allocation11 + $0x1b0] sm:$0xff]
    %v3027 = vld [vmem:[#allocation11 + $0x1b8] sm:$0xff]
    %v3028 = vld [vmem:[#allocation11 + $0x1c0] sm:$0xff]
    %v3029 = vld [vmem:[#allocation11 + $0x1c8] sm:$0xff]
    %v3030 = vld [vmem:[#allocation11 + $0x1d0] sm:$0xff]
    %v3031 = vld [vmem:[#allocation11 + $0x1d8] sm:$0xff]
    %v3032 = vld [vmem:[#allocation11 + $0x1e0] sm:$0xff]
    %v3033 = vld [vmem:[#allocation11 + $0x1e8] sm:$0xff]
    %v3034 = vld [vmem:[#allocation11 + $0x1f0] sm:$0xff]
    %v3035 = vld [vmem:[#allocation11 + $0x1f8] sm:$0xff]
    %v3036 = vld [vmem:[%s6] sm:$0xf]
    %v3038 = vlaneseq
    %v3039 = vshrl.u32 %v3038, 7
    %v3040 = vsub.s32 0, %v3039
    %v3041 = vrot.slane %v3036, %v3040
    %v3042 = vlaneseq
    %v3043 = vshrl.u32 %v3042, 7
    %v3044 = vsub.s32 1, %v3043
    %v3045 = vrot.slane %v3036, %v3044
    %v3046 = vlaneseq
    %v3047 = vshrl.u32 %v3046, 7
    %v3048 = vsub.s32 2, %v3047
    %v3049 = vrot.slane %v3036, %v3048
    %v3050 = vlaneseq
    %v3051 = vshrl.u32 %v3050, 7
    %v3052 = vsub.s32 3, %v3051
    %v3053 = vrot.slane %v3036, %v3052
    %v3122 = vunpack.c.l.b16 %v2972
    %v3123 = vunpack.c.h.b16 %v2972
    %v3124 = vunpack.c.l.b16 %v2973
    %v3125 = vunpack.c.h.b16 %v2973
    %v3126 = vunpack.c.l.b16 %v2974
    %v3127 = vunpack.c.h.b16 %v2974
    %v3128 = vunpack.c.l.b16 %v2975
    %v3129 = vunpack.c.h.b16 %v2975
    %v3130 = vunpack.c.l.b16 %v2976
    %v3131 = vunpack.c.h.b16 %v2976
    %v3132 = vunpack.c.l.b16 %v2977
    %v3133 = vunpack.c.h.b16 %v2977
    %v3134 = vunpack.c.l.b16 %v2978
    %v3135 = vunpack.c.h.b16 %v2978
    %v3136 = vunpack.c.l.b16 %v2979
    %v3137 = vunpack.c.h.b16 %v2979
    %v3138 = vunpack.c.l.b16 %v2980
    %v3139 = vunpack.c.h.b16 %v2980
    %v3140 = vunpack.c.l.b16 %v2981
    %v3141 = vunpack.c.h.b16 %v2981
    %v3142 = vunpack.c.l.b16 %v2982
    %v3143 = vunpack.c.h.b16 %v2982
    %v3144 = vunpack.c.l.b16 %v2983
    %v3145 = vunpack.c.h.b16 %v2983
    %v3146 = vunpack.c.l.b16 %v2984
    %v3147 = vunpack.c.h.b16 %v2984
    %v3148 = vunpack.c.l.b16 %v2985
    %v3149 = vunpack.c.h.b16 %v2985
    %v3150 = vunpack.c.l.b16 %v2986
    %v3151 = vunpack.c.h.b16 %v2986
    %v3152 = vunpack.c.l.b16 %v2987
    %v3153 = vunpack.c.h.b16 %v2987
    %v3154 = vunpack.c.l.b16 %v2988
    %v3155 = vunpack.c.h.b16 %v2988
    %v3156 = vunpack.c.l.b16 %v2989
    %v3157 = vunpack.c.h.b16 %v2989
    %v3158 = vunpack.c.l.b16 %v2990
    %v3159 = vunpack.c.h.b16 %v2990
    %v3160 = vunpack.c.l.b16 %v2991
    %v3161 = vunpack.c.h.b16 %v2991
    %v3162 = vunpack.c.l.b16 %v2992
    %v3163 = vunpack.c.h.b16 %v2992
    %v3164 = vunpack.c.l.b16 %v2993
    %v3165 = vunpack.c.h.b16 %v2993
    %v3166 = vunpack.c.l.b16 %v2994
    %v3167 = vunpack.c.h.b16 %v2994
    %v3168 = vunpack.c.l.b16 %v2995
    %v3169 = vunpack.c.h.b16 %v2995
    %v3170 = vunpack.c.l.b16 %v2996
    %v3171 = vunpack.c.h.b16 %v2996
    %v3172 = vunpack.c.l.b16 %v2997
    %v3173 = vunpack.c.h.b16 %v2997
    %v3174 = vunpack.c.l.b16 %v2998
    %v3175 = vunpack.c.h.b16 %v2998
    %v3176 = vunpack.c.l.b16 %v2999
    %v3177 = vunpack.c.h.b16 %v2999
    %v3178 = vunpack.c.l.b16 %v3000
    %v3179 = vunpack.c.h.b16 %v3000
    %v3180 = vunpack.c.l.b16 %v3001
    %v3181 = vunpack.c.h.b16 %v3001
    %v3182 = vunpack.c.l.b16 %v3002
    %v3183 = vunpack.c.h.b16 %v3002
    %v3184 = vunpack.c.l.b16 %v3003
    %v3185 = vunpack.c.h.b16 %v3003
    %v3186 = vunpack.c.l.b16 %v3004
    %v3187 = vunpack.c.h.b16 %v3004
    %v3188 = vunpack.c.l.b16 %v3005
    %v3189 = vunpack.c.h.b16 %v3005
    %v3190 = vunpack.c.l.b16 %v3006
    %v3191 = vunpack.c.h.b16 %v3006
    %v3192 = vunpack.c.l.b16 %v3007
    %v3193 = vunpack.c.h.b16 %v3007
    %v3194 = vunpack.c.l.b16 %v3008
    %v3195 = vunpack.c.h.b16 %v3008
    %v3196 = vunpack.c.l.b16 %v3009
    %v3197 = vunpack.c.h.b16 %v3009
    %v3198 = vunpack.c.l.b16 %v3010
    %v3199 = vunpack.c.h.b16 %v3010
    %v3200 = vunpack.c.l.b16 %v3011
    %v3201 = vunpack.c.h.b16 %v3011
    %v3202 = vunpack.c.l.b16 %v3012
    %v3203 = vunpack.c.h.b16 %v3012
    %v3204 = vunpack.c.l.b16 %v3013
    %v3205 = vunpack.c.h.b16 %v3013
    %v3206 = vunpack.c.l.b16 %v3014
    %v3207 = vunpack.c.h.b16 %v3014
    %v3208 = vunpack.c.l.b16 %v3015
    %v3209 = vunpack.c.h.b16 %v3015
    %v3210 = vunpack.c.l.b16 %v3016
    %v3211 = vunpack.c.h.b16 %v3016
    %v3212 = vunpack.c.l.b16 %v3017
    %v3213 = vunpack.c.h.b16 %v3017
    %v3214 = vunpack.c.l.b16 %v3018
    %v3215 = vunpack.c.h.b16 %v3018
    %v3216 = vunpack.c.l.b16 %v3019
    %v3217 = vunpack.c.h.b16 %v3019
    %v3218 = vunpack.c.l.b16 %v3020
    %v3219 = vunpack.c.h.b16 %v3020
    %v3220 = vunpack.c.l.b16 %v3021
    %v3221 = vunpack.c.h.b16 %v3021
    %v3222 = vunpack.c.l.b16 %v3022
    %v3223 = vunpack.c.h.b16 %v3022
    %v3224 = vunpack.c.l.b16 %v3023
    %v3225 = vunpack.c.h.b16 %v3023
    %v3226 = vunpack.c.l.b16 %v3024
    %v3227 = vunpack.c.h.b16 %v3024
    %v3228 = vunpack.c.l.b16 %v3025
    %v3229 = vunpack.c.h.b16 %v3025
    %v3230 = vunpack.c.l.b16 %v3026
    %v3231 = vunpack.c.h.b16 %v3026
    %v3232 = vunpack.c.l.b16 %v3027
    %v3233 = vunpack.c.h.b16 %v3027
    %v3234 = vunpack.c.l.b16 %v3028
    %v3235 = vunpack.c.h.b16 %v3028
    %v3236 = vunpack.c.l.b16 %v3029
    %v3237 = vunpack.c.h.b16 %v3029
    %v3238 = vunpack.c.l.b16 %v3030
    %v3239 = vunpack.c.h.b16 %v3030
    %v3240 = vunpack.c.l.b16 %v3031
    %v3241 = vunpack.c.h.b16 %v3031
    %v3242 = vunpack.c.l.b16 %v3032
    %v3243 = vunpack.c.h.b16 %v3032
    %v3244 = vunpack.c.l.b16 %v3033
    %v3245 = vunpack.c.h.b16 %v3033
    %v3246 = vunpack.c.l.b16 %v3034
    %v3247 = vunpack.c.h.b16 %v3034
    %v3248 = vunpack.c.l.b16 %v3035
    %v3249 = vunpack.c.h.b16 %v3035
    %v3250 = vpack.c.b16 %v3126, %v3122
    %v3251 = vpack.c.b16 %v3127, %v3123
    %v3252 = vpack.c.b16 %v3128, %v3124
    %v3253 = vpack.c.b16 %v3129, %v3125
    %v3254 = vpack.c.b16 %v3134, %v3130
    %v3255 = vpack.c.b16 %v3135, %v3131
    %v3256 = vpack.c.b16 %v3136, %v3132
    %v3257 = vpack.c.b16 %v3137, %v3133
    %v3258 = vpack.c.b16 %v3142, %v3138
    %v3259 = vpack.c.b16 %v3143, %v3139
    %v3260 = vpack.c.b16 %v3144, %v3140
    %v3261 = vpack.c.b16 %v3145, %v3141
    %v3262 = vpack.c.b16 %v3150, %v3146
    %v3263 = vpack.c.b16 %v3151, %v3147
    %v3264 = vpack.c.b16 %v3152, %v3148
    %v3265 = vpack.c.b16 %v3153, %v3149
    %v3266 = vpack.c.b16 %v3158, %v3154
    %v3267 = vpack.c.b16 %v3159, %v3155
    %v3268 = vpack.c.b16 %v3160, %v3156
    %v3269 = vpack.c.b16 %v3161, %v3157
    %v3270 = vpack.c.b16 %v3166, %v3162
    %v3271 = vpack.c.b16 %v3167, %v3163
    %v3272 = vpack.c.b16 %v3168, %v3164
    %v3273 = vpack.c.b16 %v3169, %v3165
    %v3274 = vpack.c.b16 %v3174, %v3170
    %v3275 = vpack.c.b16 %v3175, %v3171
    %v3276 = vpack.c.b16 %v3176, %v3172
    %v3277 = vpack.c.b16 %v3177, %v3173
    %v3278 = vpack.c.b16 %v3182, %v3178
    %v3279 = vpack.c.b16 %v3183, %v3179
    %v3280 = vpack.c.b16 %v3184, %v3180
    %v3281 = vpack.c.b16 %v3185, %v3181
    %v3282 = vpack.c.b16 %v3190, %v3186
    %v3283 = vpack.c.b16 %v3191, %v3187
    %v3284 = vpack.c.b16 %v3192, %v3188
    %v3285 = vpack.c.b16 %v3193, %v3189
    %v3286 = vpack.c.b16 %v3198, %v3194
    %v3287 = vpack.c.b16 %v3199, %v3195
    %v3288 = vpack.c.b16 %v3200, %v3196
    %v3289 = vpack.c.b16 %v3201, %v3197
    %v3290 = vpack.c.b16 %v3206, %v3202
    %v3291 = vpack.c.b16 %v3207, %v3203
    %v3292 = vpack.c.b16 %v3208, %v3204
    %v3293 = vpack.c.b16 %v3209, %v3205
    %v3294 = vpack.c.b16 %v3214, %v3210
    %v3295 = vpack.c.b16 %v3215, %v3211
    %v3296 = vpack.c.b16 %v3216, %v3212
    %v3297 = vpack.c.b16 %v3217, %v3213
    %v3298 = vpack.c.b16 %v3222, %v3218
    %v3299 = vpack.c.b16 %v3223, %v3219
    %v3300 = vpack.c.b16 %v3224, %v3220
    %v3301 = vpack.c.b16 %v3225, %v3221
    %v3302 = vpack.c.b16 %v3230, %v3226
    %v3303 = vpack.c.b16 %v3231, %v3227
    %v3304 = vpack.c.b16 %v3232, %v3228
    %v3305 = vpack.c.b16 %v3233, %v3229
    %v3306 = vpack.c.b16 %v3238, %v3234
    %v3307 = vpack.c.b16 %v3239, %v3235
    %v3308 = vpack.c.b16 %v3240, %v3236
    %v3309 = vpack.c.b16 %v3241, %v3237
    %v3310 = vpack.c.b16 %v3246, %v3242
    %v3311 = vpack.c.b16 %v3247, %v3243
    %v3312 = vpack.c.b16 %v3248, %v3244
    %v3313 = vpack.c.b16 %v3249, %v3245
    %3378 = vmatprep.subr.bf16.mxu0 %v3251
    %3379 = vmatpush1.bf16.msra.mxu0 %v3250
    %3380 = vmatprep.subr.bf16.mxu0 %v3255
    %3381 = vmatpush1.bf16.msra.mxu0 %v3254
    %3382 = vmatprep.subr.bf16.mxu0 %v3259
    %3383 = vmatpush1.bf16.msra.mxu0 %v3258
    %3384 = vmatprep.subr.bf16.mxu0 %v3263
    %3385 = vmatpush1.bf16.msra.mxu0 %v3262
    %3386 = vmatprep.subr.bf16.mxu0 %v3267
    %3387 = vmatpush1.bf16.msra.mxu0 %v3266
    %3388 = vmatprep.subr.bf16.mxu0 %v3271
    %3389 = vmatpush1.bf16.msra.mxu0 %v3270
    %3390 = vmatprep.subr.bf16.mxu0 %v3275
    %3391 = vmatpush1.bf16.msra.mxu0 %v3274
    %3392 = vmatprep.subr.bf16.mxu0 %v3279
    %3393 = vmatpush1.bf16.msra.mxu0 %v3278
    %3394 = vmatprep.subr.bf16.mxu0 %v3283
    %3395 = vmatpush1.bf16.msra.mxu0 %v3282
    %3396 = vmatprep.subr.bf16.mxu0 %v3287
    %3397 = vmatpush1.bf16.msra.mxu0 %v3286
    %3398 = vmatprep.subr.bf16.mxu0 %v3291
    %3399 = vmatpush1.bf16.msra.mxu0 %v3290
    %3400 = vmatprep.subr.bf16.mxu0 %v3295
    %3401 = vmatpush1.bf16.msra.mxu0 %v3294
    %3402 = vmatprep.subr.bf16.mxu0 %v3299
    %3403 = vmatpush1.bf16.msra.mxu0 %v3298
    %3404 = vmatprep.subr.bf16.mxu0 %v3303
    %3405 = vmatpush1.bf16.msra.mxu0 %v3302
    %3406 = vmatprep.subr.bf16.mxu0 %v3307
    %3407 = vmatpush1.bf16.msra.mxu0 %v3306
    %3408 = vmatprep.subr.bf16.mxu0 %v3311
    %3409 = vmatpush1.bf16.msra.mxu0 %v3310
    %3410 = vmatprep.mubr.bf16.mxu0 %v2971
    %3411 = vmatmul.mubr.bf16.gmra.mrb[0].mxu0 %v2970
    %v3412 = vpop.f32.mrb[0].mxu0
    %v3413 = vadd.f32 %v3041, %v3412
    %v3414 = vpop.f32.mrb[0].mxu0
    %v3415 = vadd.f32 %v3045, %v3414
    %v3416 = vpop.f32.mrb[0].mxu0
    %v3417 = vpop.f32.mrb[0].mxu0
    %3418 = vdwg.mxu0
    %3419 = vmatprep.subr.bf16.mxu0 %v3253
    %3420 = vmatpush1.bf16.msra.mxu0 %v3252
    %3421 = vmatprep.subr.bf16.mxu0 %v3257
    %3422 = vmatpush1.bf16.msra.mxu0 %v3256
    %3423 = vmatprep.subr.bf16.mxu0 %v3261
    %3424 = vmatpush1.bf16.msra.mxu0 %v3260
    %3425 = vmatprep.subr.bf16.mxu0 %v3265
    %3426 = vmatpush1.bf16.msra.mxu0 %v3264
    %3427 = vmatprep.subr.bf16.mxu0 %v3269
    %3428 = vmatpush1.bf16.msra.mxu0 %v3268
    %3429 = vmatprep.subr.bf16.mxu0 %v3273
    %3430 = vmatpush1.bf16.msra.mxu0 %v3272
    %3431 = vmatprep.subr.bf16.mxu0 %v3277
    %3432 = vmatpush1.bf16.msra.mxu0 %v3276
    %3433 = vmatprep.subr.bf16.mxu0 %v3281
    %3434 = vmatpush1.bf16.msra.mxu0 %v3280
    %3435 = vmatprep.subr.bf16.mxu0 %v3285
    %3436 = vmatpush1.bf16.msra.mxu0 %v3284
    %3437 = vmatprep.subr.bf16.mxu0 %v3289
    %3438 = vmatpush1.bf16.msra.mxu0 %v3288
    %3439 = vmatprep.subr.bf16.mxu0 %v3293
    %3440 = vmatpush1.bf16.msra.mxu0 %v3292
    %3441 = vmatprep.subr.bf16.mxu0 %v3297
    %3442 = vmatpush1.bf16.msra.mxu0 %v3296
    %3443 = vmatprep.subr.bf16.mxu0 %v3301
    %3444 = vmatpush1.bf16.msra.mxu0 %v3300
    %3445 = vmatprep.subr.bf16.mxu0 %v3305
    %3446 = vmatpush1.bf16.msra.mxu0 %v3304
    %3447 = vmatprep.subr.bf16.mxu0 %v3309
    %3448 = vmatpush1.bf16.msra.mxu0 %v3308
    %3449 = vmatprep.subr.bf16.mxu0 %v3313
    %3450 = vmatpush1.bf16.msra.mxu0 %v3312
    %3451 = vmatprep.mubr.bf16.mxu0 %v2971
    %3452 = vmatmul.mubr.bf16.gmra.mrb[0].mxu0 %v2970
    %v3453 = vpop.f32.mrb[0].mxu0
    %v3454 = vadd.f32 %v3049, %v3453
    %v3455 = vpop.f32.mrb[0].mxu0
    %v3456 = vadd.f32 %v3053, %v3455
    %v3457 = vpop.f32.mrb[0].mxu0
    %v3458 = vpop.f32.mrb[0].mxu0
    %3459 = vdwg.mxu0
    %v3460 = vmax.f32 %v3413, 0.0
    %v3461 = vmax.f32 %v3415, 0.0
    %v3462 = vmax.f32 %v3454, 0.0
    %v3463 = vmax.f32 %v3456, 0.0
    %v3464 = vpack.c.bf16 %v3460, %v3460
    %v3465 = vpack.c.bf16 %v3461, %v3461
    %v3466 = vpack.c.bf16 %v3462, %v3462
    %v3467 = vpack.c.bf16 %v3463, %v3463
    %v3468 = vld [vmem:[#allocation13] sm:$0xf]
    %v3469 = vld [vmem:[#allocation13 + $0x4] sm:$0xf]
    %v3470 = vld [vmem:[#allocation13 + $0x8] sm:$0xf]
    %v3471 = vld [vmem:[#allocation13 + $0xc] sm:$0xf]
    %v3472 = vld [vmem:[#allocation13 + $0x10] sm:$0xf]
    %v3473 = vld [vmem:[#allocation13 + $0x14] sm:$0xf]
    %v3474 = vld [vmem:[#allocation13 + $0x18] sm:$0xf]
    %v3475 = vld [vmem:[#allocation13 + $0x1c] sm:$0xf]
    %v3476 = vld [vmem:[#allocation13 + $0x20] sm:$0xf]
    %v3477 = vld [vmem:[#allocation13 + $0x24] sm:$0xf]
    %v3478 = vld [vmem:[#allocation13 + $0x28] sm:$0xf]
    %v3479 = vld [vmem:[#allocation13 + $0x2c] sm:$0xf]
    %v3480 = vld [vmem:[#allocation13 + $0x30] sm:$0xf]
    %v3481 = vld [vmem:[#allocation13 + $0x34] sm:$0xf]
    %v3482 = vld [vmem:[#allocation13 + $0x38] sm:$0xf]
    %v3483 = vld [vmem:[#allocation13 + $0x3c] sm:$0xf]
    %v3484 = vld [vmem:[#allocation13 + $0x40] sm:$0xf]
    %v3485 = vld [vmem:[#allocation13 + $0x44] sm:$0xf]
    %v3486 = vld [vmem:[#allocation13 + $0x48] sm:$0xf]
    %v3487 = vld [vmem:[#allocation13 + $0x4c] sm:$0xf]
    %v3488 = vld [vmem:[#allocation13 + $0x50] sm:$0xf]
    %v3489 = vld [vmem:[#allocation13 + $0x54] sm:$0xf]
    %v3490 = vld [vmem:[#allocation13 + $0x58] sm:$0xf]
    %v3491 = vld [vmem:[#allocation13 + $0x5c] sm:$0xf]
    %v3492 = vld [vmem:[#allocation13 + $0x60] sm:$0xf]
    %v3493 = vld [vmem:[#allocation13 + $0x64] sm:$0xf]
    %v3494 = vld [vmem:[#allocation13 + $0x68] sm:$0xf]
    %v3495 = vld [vmem:[#allocation13 + $0x6c] sm:$0xf]
    %v3496 = vld [vmem:[#allocation13 + $0x70] sm:$0xf]
    %v3497 = vld [vmem:[#allocation13 + $0x74] sm:$0xf]
    %v3498 = vld [vmem:[#allocation13 + $0x78] sm:$0xf]
    %v3499 = vld [vmem:[#allocation13 + $0x7c] sm:$0xf]
    %v3500 = vld [vmem:[#allocation13 + $0x80] sm:$0xf]
    %v3501 = vld [vmem:[#allocation13 + $0x84] sm:$0xf]
    %v3502 = vld [vmem:[#allocation13 + $0x88] sm:$0xf]
    %v3503 = vld [vmem:[#allocation13 + $0x8c] sm:$0xf]
    %v3504 = vld [vmem:[#allocation13 + $0x90] sm:$0xf]
    %v3505 = vld [vmem:[#allocation13 + $0x94] sm:$0xf]
    %v3506 = vld [vmem:[#allocation13 + $0x98] sm:$0xf]
    %v3507 = vld [vmem:[#allocation13 + $0x9c] sm:$0xf]
    %v3508 = vld [vmem:[#allocation13 + $0xa0] sm:$0xf]
    %v3509 = vld [vmem:[#allocation13 + $0xa4] sm:$0xf]
    %v3510 = vld [vmem:[#allocation13 + $0xa8] sm:$0xf]
    %v3511 = vld [vmem:[#allocation13 + $0xac] sm:$0xf]
    %v3512 = vld [vmem:[#allocation13 + $0xb0] sm:$0xf]
    %v3513 = vld [vmem:[#allocation13 + $0xb4] sm:$0xf]
    %v3514 = vld [vmem:[#allocation13 + $0xb8] sm:$0xf]
    %v3515 = vld [vmem:[#allocation13 + $0xbc] sm:$0xf]
    %v3516 = vld [vmem:[#allocation13 + $0xc0] sm:$0xf]
    %v3517 = vld [vmem:[#allocation13 + $0xc4] sm:$0xf]
    %v3518 = vld [vmem:[#allocation13 + $0xc8] sm:$0xf]
    %v3519 = vld [vmem:[#allocation13 + $0xcc] sm:$0xf]
    %v3520 = vld [vmem:[#allocation13 + $0xd0] sm:$0xf]
    %v3521 = vld [vmem:[#allocation13 + $0xd4] sm:$0xf]
    %v3522 = vld [vmem:[#allocation13 + $0xd8] sm:$0xf]
    %v3523 = vld [vmem:[#allocation13 + $0xdc] sm:$0xf]
    %v3524 = vld [vmem:[#allocation13 + $0xe0] sm:$0xf]
    %v3525 = vld [vmem:[#allocation13 + $0xe4] sm:$0xf]
    %v3526 = vld [vmem:[#allocation13 + $0xe8] sm:$0xf]
    %v3527 = vld [vmem:[#allocation13 + $0xec] sm:$0xf]
    %v3528 = vld [vmem:[#allocation13 + $0xf0] sm:$0xf]
    %v3529 = vld [vmem:[#allocation13 + $0xf4] sm:$0xf]
    %v3530 = vld [vmem:[#allocation13 + $0xf8] sm:$0xf]
    %v3531 = vld [vmem:[#allocation13 + $0xfc] sm:$0xf]
    %v3532 = vld [vmem:[%s8] sm:$0x1]
    %v3534 = vlaneseq
    %v3535 = vshrl.u32 %v3534, 7
    %v3536 = vsub.s32 0, %v3535
    %v3537 = vrot.slane %v3532, %v3536
    %v3603 = vunpack.c.l.b16 %v3468
    %v3604 = vunpack.c.l.b16 %v3469
    %v3605 = vunpack.c.l.b16 %v3470
    %v3606 = vunpack.c.l.b16 %v3471
    %v3607 = vunpack.c.l.b16 %v3472
    %v3608 = vunpack.c.l.b16 %v3473
    %v3609 = vunpack.c.l.b16 %v3474
    %v3610 = vunpack.c.l.b16 %v3475
    %v3611 = vunpack.c.l.b16 %v3476
    %v3612 = vunpack.c.l.b16 %v3477
    %v3613 = vunpack.c.l.b16 %v3478
    %v3614 = vunpack.c.l.b16 %v3479
    %v3615 = vunpack.c.l.b16 %v3480
    %v3616 = vunpack.c.l.b16 %v3481
    %v3617 = vunpack.c.l.b16 %v3482
    %v3618 = vunpack.c.l.b16 %v3483
    %v3619 = vunpack.c.l.b16 %v3484
    %v3620 = vunpack.c.l.b16 %v3485
    %v3621 = vunpack.c.l.b16 %v3486
    %v3622 = vunpack.c.l.b16 %v3487
    %v3623 = vunpack.c.l.b16 %v3488
    %v3624 = vunpack.c.l.b16 %v3489
    %v3625 = vunpack.c.l.b16 %v3490
    %v3626 = vunpack.c.l.b16 %v3491
    %v3627 = vunpack.c.l.b16 %v3492
    %v3628 = vunpack.c.l.b16 %v3493
    %v3629 = vunpack.c.l.b16 %v3494
    %v3630 = vunpack.c.l.b16 %v3495
    %v3631 = vunpack.c.l.b16 %v3496
    %v3632 = vunpack.c.l.b16 %v3497
    %v3633 = vunpack.c.l.b16 %v3498
    %v3634 = vunpack.c.l.b16 %v3499
    %v3635 = vunpack.c.l.b16 %v3500
    %v3636 = vunpack.c.l.b16 %v3501
    %v3637 = vunpack.c.l.b16 %v3502
    %v3638 = vunpack.c.l.b16 %v3503
    %v3639 = vunpack.c.l.b16 %v3504
    %v3640 = vunpack.c.l.b16 %v3505
    %v3641 = vunpack.c.l.b16 %v3506
    %v3642 = vunpack.c.l.b16 %v3507
    %v3643 = vunpack.c.l.b16 %v3508
    %v3644 = vunpack.c.l.b16 %v3509
    %v3645 = vunpack.c.l.b16 %v3510
    %v3646 = vunpack.c.l.b16 %v3511
    %v3647 = vunpack.c.l.b16 %v3512
    %v3648 = vunpack.c.l.b16 %v3513
    %v3649 = vunpack.c.l.b16 %v3514
    %v3650 = vunpack.c.l.b16 %v3515
    %v3651 = vunpack.c.l.b16 %v3516
    %v3652 = vunpack.c.l.b16 %v3517
    %v3653 = vunpack.c.l.b16 %v3518
    %v3654 = vunpack.c.l.b16 %v3519
    %v3655 = vunpack.c.l.b16 %v3520
    %v3656 = vunpack.c.l.b16 %v3521
    %v3657 = vunpack.c.l.b16 %v3522
    %v3658 = vunpack.c.l.b16 %v3523
    %v3659 = vunpack.c.l.b16 %v3524
    %v3660 = vunpack.c.l.b16 %v3525
    %v3661 = vunpack.c.l.b16 %v3526
    %v3662 = vunpack.c.l.b16 %v3527
    %v3663 = vunpack.c.l.b16 %v3528
    %v3664 = vunpack.c.l.b16 %v3529
    %v3665 = vunpack.c.l.b16 %v3530
    %v3666 = vunpack.c.l.b16 %v3531
    %v3667 = vpack.c.b16 %v3604, %v3603
    %v3668 = vpack.c.b16 %v3606, %v3605
    %v3669 = vpack.c.b16 %v3608, %v3607
    %v3670 = vpack.c.b16 %v3610, %v3609
    %v3671 = vpack.c.b16 %v3612, %v3611
    %v3672 = vpack.c.b16 %v3614, %v3613
    %v3673 = vpack.c.b16 %v3616, %v3615
    %v3674 = vpack.c.b16 %v3618, %v3617
    %v3675 = vpack.c.b16 %v3620, %v3619
    %v3676 = vpack.c.b16 %v3622, %v3621
    %v3677 = vpack.c.b16 %v3624, %v3623
    %v3678 = vpack.c.b16 %v3626, %v3625
    %v3679 = vpack.c.b16 %v3628, %v3627
    %v3680 = vpack.c.b16 %v3630, %v3629
    %v3681 = vpack.c.b16 %v3632, %v3631
    %v3682 = vpack.c.b16 %v3634, %v3633
    %v3683 = vpack.c.b16 %v3636, %v3635
    %v3684 = vpack.c.b16 %v3638, %v3637
    %v3685 = vpack.c.b16 %v3640, %v3639
    %v3686 = vpack.c.b16 %v3642, %v3641
    %v3687 = vpack.c.b16 %v3644, %v3643
    %v3688 = vpack.c.b16 %v3646, %v3645
    %v3689 = vpack.c.b16 %v3648, %v3647
    %v3690 = vpack.c.b16 %v3650, %v3649
    %v3691 = vpack.c.b16 %v3652, %v3651
    %v3692 = vpack.c.b16 %v3654, %v3653
    %v3693 = vpack.c.b16 %v3656, %v3655
    %v3694 = vpack.c.b16 %v3658, %v3657
    %v3695 = vpack.c.b16 %v3660, %v3659
    %v3696 = vpack.c.b16 %v3662, %v3661
    %v3697 = vpack.c.b16 %v3664, %v3663
    %v3698 = vpack.c.b16 %v3666, %v3665
    %3731 = vmatprep.subr.bf16.mxu0 0
    %3732 = vmatpush1.bf16.msra.mxu0 %v3667
    %3733 = vmatprep.subr.bf16.mxu0 0
    %3734 = vmatpush1.bf16.msra.mxu0 %v3668
    %3735 = vmatprep.subr.bf16.mxu0 0
    %3736 = vmatpush1.bf16.msra.mxu0 %v3669
    %3737 = vmatprep.subr.bf16.mxu0 0
    %3738 = vmatpush1.bf16.msra.mxu0 %v3670
    %3739 = vmatprep.subr.bf16.mxu0 0
    %3740 = vmatpush1.bf16.msra.mxu0 %v3671
    %3741 = vmatprep.subr.bf16.mxu0 0
    %3742 = vmatpush1.bf16.msra.mxu0 %v3672
    %3743 = vmatprep.subr.bf16.mxu0 0
    %3744 = vmatpush1.bf16.msra.mxu0 %v3673
    %3745 = vmatprep.subr.bf16.mxu0 0
    %3746 = vmatpush1.bf16.msra.mxu0 %v3674
    %3747 = vmatprep.subr.bf16.mxu0 0
    %3748 = vmatpush1.bf16.msra.mxu0 %v3675
    %3749 = vmatprep.subr.bf16.mxu0 0
    %3750 = vmatpush1.bf16.msra.mxu0 %v3676
    %3751 = vmatprep.subr.bf16.mxu0 0
    %3752 = vmatpush1.bf16.msra.mxu0 %v3677
    %3753 = vmatprep.subr.bf16.mxu0 0
    %3754 = vmatpush1.bf16.msra.mxu0 %v3678
    %3755 = vmatprep.subr.bf16.mxu0 0
    %3756 = vmatpush1.bf16.msra.mxu0 %v3679
    %3757 = vmatprep.subr.bf16.mxu0 0
    %3758 = vmatpush1.bf16.msra.mxu0 %v3680
    %3759 = vmatprep.subr.bf16.mxu0 0
    %3760 = vmatpush1.bf16.msra.mxu0 %v3681
    %3761 = vmatprep.subr.bf16.mxu0 0
    %3762 = vmatpush1.bf16.msra.mxu0 %v3682
    %3763 = vmatprep.mubr.bf16.mxu0 %v3465
    %3764 = vmatmul.mubr.bf16.gmra.mrb[0].mxu0 %v3464
    %v3765 = vpop.f32.mrb[0].mxu0
    %v3766 = vadd.f32 %v3537, %v3765
    %v3767 = vpop.f32.mrb[0].mxu0
    %v3768 = vpop.f32.mrb[0].mxu0
    %v3769 = vpop.f32.mrb[0].mxu0
    %3770 = vdwg.mxu0
    %3771 = vmatprep.subr.bf16.mxu0 0
    %3772 = vmatpush1.bf16.msra.mxu0 %v3683
    %3773 = vmatprep.subr.bf16.mxu0 0
    %3774 = vmatpush1.bf16.msra.mxu0 %v3684
    %3775 = vmatprep.subr.bf16.mxu0 0
    %3776 = vmatpush1.bf16.msra.mxu0 %v3685
    %3777 = vmatprep.subr.bf16.mxu0 0
    %3778 = vmatpush1.bf16.msra.mxu0 %v3686
    %3779 = vmatprep.subr.bf16.mxu0 0
    %3780 = vmatpush1.bf16.msra.mxu0 %v3687
    %3781 = vmatprep.subr.bf16.mxu0 0
    %3782 = vmatpush1.bf16.msra.mxu0 %v3688
    %3783 = vmatprep.subr.bf16.mxu0 0
    %3784 = vmatpush1.bf16.msra.mxu0 %v3689
    %3785 = vmatprep.subr.bf16.mxu0 0
    %3786 = vmatpush1.bf16.msra.mxu0 %v3690
    %3787 = vmatprep.subr.bf16.mxu0 0
    %3788 = vmatpush1.bf16.msra.mxu0 %v3691
    %3789 = vmatprep.subr.bf16.mxu0 0
    %3790 = vmatpush1.bf16.msra.mxu0 %v3692
    %3791 = vmatprep.subr.bf16.mxu0 0
    %3792 = vmatpush1.bf16.msra.mxu0 %v3693
    %3793 = vmatprep.subr.bf16.mxu0 0
    %3794 = vmatpush1.bf16.msra.mxu0 %v3694
    %3795 = vmatprep.subr.bf16.mxu0 0
    %3796 = vmatpush1.bf16.msra.mxu0 %v3695
    %3797 = vmatprep.subr.bf16.mxu0 0
    %3798 = vmatpush1.bf16.msra.mxu0 %v3696
    %3799 = vmatprep.subr.bf16.mxu0 0
    %3800 = vmatpush1.bf16.msra.mxu0 %v3697
    %3801 = vmatprep.subr.bf16.mxu0 0
    %3802 = vmatpush1.bf16.msra.mxu0 %v3698
    %3803 = vmatprep.mubr.bf16.mxu0 %v3467
    %3804 = vmatmul.mubr.bf16.gmra.mrb[0].mxu0 %v3466
    %v3805 = vpop.f32.mrb[0].mxu0
    %v3806 = vadd.f32 %v3766, %v3805
    %v3807 = vpop.f32.mrb[0].mxu0
    %v3808 = vpop.f32.mrb[0].mxu0
    %v3809 = vpop.f32.mrb[0].mxu0
    %3810 = vdwg.mxu0
    %3811 = vst [vmem:[#allocation14] sm:$0xff] %v3806
    // Predicated region
    $region58: #{tpu_custom_call.1} parent=1 // pred_check
      _
    $region59: #{tpu_custom_call.1} parent=1 // pred_check_branch
      %3813 = sbr.rel (0) target = $region61
    $region60: #{tpu_custom_call.1} parent=1 // pred_region
      %s3815 = ssub.s32 128, 128
      %3816 = vsyncadd [#allocation7], %s3815
      %s3818 = sshll.u32 [#allocation14], 4
      %s3819 = int_to_ptr.vmem [resolvable:$true] %s3818
      %3821 = dma.vmem_to_hbm [thread:$0]  %s3819, 128, %s9, [#allocation7]
    $region61: #{tpu_custom_call.1} parent=1 // pred_fallthru
      _
    // Predicated region
    $region62: #{tpu_custom_call.1} parent=1 // pred_check
      _
    $region63: #{tpu_custom_call.1} parent=1 // pred_check_branch
      %3823 = sbr.rel (0) target = $region65
    $region64: #{tpu_custom_call.1} parent=1 // pred_region
      %3824 = dma.done [#allocation7], 128
    $region65: #{tpu_custom_call.1} parent=1 // pred_fallthru
      _
    %3825 = vsyncpa [#allocation6], 1
    %3826 = vsyncpa [#allocation9], 1
    %3827 = vsyncpa [#allocation12], 1
    %3828 = vsyncpa [#allocation7], 1

</llo_original>
